<compile_context>
chip_gen: v5e
topology: v5e:2x2
jax: 0.10.0
libtpu: 0.0.40
codegen_flags: <defaults>
</compile_context>

<pallas_src>
import jax
import jax.numpy as jnp
from jax import lax
from jax.experimental import pallas as pl
from jax.experimental.pallas import tpu as pltpu

# --- module hyper-params (match the PyTorch script) --------------------------
LETTER = [c for c in 'SE?abcdefghijklmnopqrstuvwxyz']
SOURCE_N_VOCAB = len(LETTER)   # 29
EMB_DIM = 16
ENC_HID_DIM = 17
DEC_HID_DIM = 19
DROPOUT = 0.5                  # identity at inference

GATE_LANES = 128               # one 128-lane block per (direction, gate): vreg-aligned slices


def _encoder_kernel(src_ref,      # (T*B, 1) int32, row k = t*B + b (time-major)
                    emb_ref,      # (V, E)
                    wih_ref,      # (E, 6*L)    [dir-f gates r,z,n | dir-b gates r,z,n]
                    whh_ref,      # (2, H, 3*L) per direction, gate g at lanes [g*L, g*L+H)
                    bias_ref,     # (1, 9*L)    [6 folded gi-bias blocks | bhn_f | bhn_b | fc_b]
                    fcw_ref,      # (2H, D)
                    out_f_ref,    # (T, B, H)   forward hidden states
                    out_b_ref,    # (T, B, H)   backward hidden states
                    s_ref,        # (B, D)
                    gi_ref):      # VMEM scratch (T*B, 6*L) for the hoisted input projections
    T, B, H = out_f_ref.shape
    V, E = emb_ref.shape
    D = s_ref.shape[1]
    Lc = GATE_LANES
    f32 = jnp.float32

    def mm(a, b, precision=None):
        return jnp.dot(a, b, preferred_element_type=f32, precision=precision)

    # ---- one-time pre-loop work (off the serial recurrence) -------------------
    # Embedding lookup via one-hot matmul; HIGHEST => exact table rows.
    ids = src_ref[...]                                                    # (T*B, 1)
    onehot = (ids == lax.broadcasted_iota(jnp.int32, (T * B, V), 1)).astype(f32)
    x_all = mm(onehot, emb_ref[...], precision=lax.Precision.HIGHEST)     # (T*B, E)

    # Fused input->hidden precompute: ONE matmul + ONE bias add for both directions
    # and all three gates (bih + bhh already folded for r,z at pack time).  Kept at
    # HIGHEST: single pre-loop matmul, cost amortized over the whole recurrence,
    # keeps the kernel close to the full-f32 reference.
    gi_ref[...] = (mm(x_all, wih_ref[...], precision=lax.Precision.HIGHEST)
                   + bias_ref[:, 0:6 * Lc])                               # (T*B, 6L)

    # Hoisted recurrent weights (lane-padded) and the remaining hh bias (n gate).
    whh_f = whh_ref[0]                                                    # (H, 3L)
    whh_b = whh_ref[1]
    bhn_f = jnp.broadcast_to(bias_ref[:, 6 * Lc:6 * Lc + H], (B, H))
    bhn_b = jnp.broadcast_to(bias_ref[:, 7 * Lc:7 * Lc + H], (B, H))

    # ---- serial recurrence: default (single-pass) MXU precision, ONE fused matmul
    # per direction per step, every gate slice at a vreg-aligned lane offset. -----
    def cell(h, t, base, whh, bhn):
        lo = t * B                                     # static (loop is unrolled)
        gi = gi_ref[lo:lo + B, base:base + 3 * Lc]     # (B, 3L) from VMEM scratch
        g = mm(h, whh)                                 # (B, 3L): r|z|n in one push
        r = jax.nn.sigmoid(gi[:, 0:H] + g[:, 0:H])
        z = jax.nn.sigmoid(gi[:, Lc:Lc + H] + g[:, Lc:Lc + H])
        n = jnp.tanh(gi[:, 2 * Lc:2 * Lc + H] + r * (g[:, 2 * Lc:2 * Lc + H] + bhn))
        return (1.0 - z) * n + z * h

    h_f = jnp.zeros((B, H), f32)
    h_b = jnp.zeros((B, H), f32)
    # Fully unrolled; fwd step t and bwd step T-1-t are independent, so their MXU
    # pushes / EUP transcendentals / VPU gate math interleave.
    for i in range(T):
        tf, tb = i, T - 1 - i
        h_f = cell(h_f, tf, 0, whh_f, bhn_f)
        h_b = cell(h_b, tb, 3 * Lc, whh_b, bhn_b)
        out_f_ref[tf, :, :] = h_f                      # lane-offset-0 stores
        out_b_ref[tb, :, :] = h_b

    # s = tanh(fc(cat(h_fwd_last, h_bwd_last))): one (B,2H)x(2H,D) matmul -> a single
    # MXU accumulation, no separate VPU add of two partial products.
    h_cat = jnp.concatenate([h_f, h_b], axis=1)        # (B, 2H), once
    s_ref[...] = jnp.tanh(mm(h_cat, fcw_ref[...]) + bias_ref[:, 8 * Lc:8 * Lc + D])


def pack_params(p):
    """Fold biases and pack the 13 natural-layout arrays into 5 dense kernel inputs."""
    E, H, D, L = EMB_DIM, ENC_HID_DIM, DEC_HID_DIM, GATE_LANES
    wih_all = jnp.zeros((E, 6 * L), jnp.float32)
    whh_all = jnp.zeros((2, H, 3 * L), jnp.float32)
    bias_all = jnp.zeros((1, 9 * L), jnp.float32)
    for d, sfx in enumerate(("f", "b")):
        wih, whh = p[f"wih_{sfx}"], p[f"whh_{sfx}"]
        bih, bhh = p[f"bih_{sfx}"], p[f"bhh_{sfx}"]
        for g in range(3):                      # gate order: 0 = r, 1 = z, 2 = n
            blk = (3 * d + g) * L
            wih_all = wih_all.at[:, blk:blk + H].set(wih[g])
            whh_all = whh_all.at[d, :, g * L:g * L + H].set(whh[g])
            gi_bias = (bih[g] + bhh[g]) if g < 2 else bih[g]   # fold bhh for r,z only
            bias_all = bias_all.at[:, blk:blk + H].set(gi_bias)
        bias_all = bias_all.at[:, (6 + d) * L:(6 + d) * L + H].set(bhh[2])   # bhn
    bias_all = bias_all.at[:, 8 * L:8 * L + D].set(p["fc_b"])
    fc_w = jnp.concatenate([p["fc_w_f"], p["fc_w_b"]], axis=0)               # (2H, D)
    return {"embedding": p["embedding"], "wih_all": wih_all, "whh_all": whh_all,
            "bias_all": bias_all, "fc_w": fc_w}


def encoder_forward(src, kp):
    """src: (B, T) int32 token ids. Returns (enc_output (B, T, 2H), s (B, D))."""
    B, T = src.shape
    H = kp["whh_all"].shape[1]
    D = kp["fc_w"].shape[1]
    # Remaining glue: flatten tokens time-major (a few dozen int32s) and concat /
    # transpose the kernel's two lane-offset-0 outputs back to batch_first.
    src_flat = jnp.transpose(src).reshape(T * B, 1).astype(jnp.int32)

    vmem = pl.BlockSpec(memory_space=pltpu.MemorySpace.VMEM)
    out_f, out_b, s = pl.pallas_call(
        _encoder_kernel,
        out_shape=(jax.ShapeDtypeStruct((T, B, H), jnp.float32),
                   jax.ShapeDtypeStruct((T, B, H), jnp.float32),
                   jax.ShapeDtypeStruct((B, D), jnp.float32)),
        in_specs=[vmem] * 6,
        out_specs=(vmem, vmem, vmem),
        scratch_shapes=[pltpu.VMEM((T * B, 6 * GATE_LANES), jnp.float32)],
    )(src_flat, kp["embedding"], kp["wih_all"], kp["whh_all"], kp["bias_all"], kp["fc_w"])

    enc_output = jnp.transpose(jnp.concatenate([out_f, out_b], axis=-1), (1, 0, 2))
    return enc_output, s


# ----------------------- pure-JAX reference (for checking) -------------------
def _ref_gru_dir(emb_tm, wih, whh, bih, bhh, reverse):
    T, B, _ = emb_tm.shape
    H = whh.shape[-1]
    xs = emb_tm[::-1] if reverse else emb_tm
    HIGH = lax.Precision.HIGHEST

    def cell(h, x):
        r = jax.nn.sigmoid(jnp.dot(x, wih[0], precision=HIGH) + bih[0]
                           + jnp.dot(h, whh[0], precision=HIGH) + bhh[0])
        z = jax.nn.sigmoid(jnp.dot(x, wih[1], precision=HIGH) + bih[1]
                           + jnp.dot(h, whh[1], precision=HIGH) + bhh[1])
        n = jnp.tanh(jnp.dot(x, wih[2], precision=HIGH) + bih[2]
                     + r * (jnp.dot(h, whh[2], precision=HIGH) + bhh[2]))
        h_new = (1.0 - z) * n + z * h
        return h_new, h_new

    h_last, hs = lax.scan(cell, jnp.zeros((B, H), jnp.float32), xs)
    if reverse:
        hs = hs[::-1]
    return hs, h_last


def encoder_forward_ref(src, params):
    embedded = params["embedding"][src]                 # (B, T, E); dropout == identity (eval)
    emb_tm = jnp.transpose(embedded, (1, 0, 2))         # (T, B, E)
    hs_f, h_f = _ref_gru_dir(emb_tm, params["wih_f"], params["whh_f"],
                             params["bih_f"], params["bhh_f"], reverse=False)
    hs_b, h_b = _ref_gru_dir(emb_tm, params["wih_b"], params["whh_b"],
                             params["bih_b"], params["bhh_b"], reverse=True)
    enc_output = jnp.transpose(jnp.concatenate([hs_f, hs_b], axis=-1), (1, 0, 2))
    mid = jnp.concatenate([h_f, h_b], axis=1)
    fc_w = jnp.concatenate([params["fc_w_f"], params["fc_w_b"]], axis=0)
    s = jnp.tanh(jnp.dot(mid, fc_w, precision=lax.Precision.HIGHEST) + params["fc_b"])
    return enc_output, s


# ----------------------------- param init ------------------------------------
def init_params(key):
    E, H, D, V = EMB_DIM, ENC_HID_DIM, DEC_HID_DIM, SOURCE_N_VOCAB
    ks = jax.random.split(key, 12)
    k_gru = 1.0 / jnp.sqrt(H)
    k_fc = 1.0 / jnp.sqrt(2.0 * H)

    def u(k, shape, scale):
        return jax.random.uniform(k, shape, jnp.float32, -scale, scale)

    return {
        "embedding": jax.random.normal(ks[0], (V, E), jnp.float32),
        # GRU weights stored per-gate ([r, z, n]) and pre-transposed for x @ W / h @ W.
        "wih_f": u(ks[1], (3, E, H), k_gru),
        "whh_f": u(ks[2], (3, H, H), k_gru),
        "bih_f": u(ks[3], (3, 1, H), k_gru),
        "bhh_f": u(ks[4], (3, 1, H), k_gru),
        "wih_b": u(ks[5], (3, E, H), k_gru),
        "whh_b": u(ks[6], (3, H, H), k_gru),
        "bih_b": u(ks[7], (3, 1, H), k_gru),
        "bhh_b": u(ks[8], (3, 1, H), k_gru),
        "fc_w_f": u(ks[9], (H, D), k_fc),
        "fc_w_b": u(ks[10], (H, D), k_fc),
        "fc_b": u(ks[11], (1, D), k_fc),
    }


if __name__ == "__main__":
    key = jax.random.PRNGKey(0)
    params = init_params(key)
    kparams = pack_params(params)

    B, T = 4, 8
    src = jax.random.randint(jax.random.PRNGKey(1), (B, T), 0, SOURCE_N_VOCAB, jnp.int32)

    enc_output, s = jax.jit(encoder_forward)(src, kparams)
    jax.block_until_ready((enc_output, s))

    enc_expected, s_expected = jax.jit(encoder_forward_ref)(src, params)
    assert enc_output.shape == (B, T, 2 * ENC_HID_DIM)
    assert s.shape == (B, DEC_HID_DIM)
    # Kernel recurrence + fc run at default (single bf16 pass) MXU precision while the
    # reference is full f32 (HIGHEST); typical drift is ~1e-3 at these shapes, whereas
    # any structural bug (gate order, lane offsets, direction swap) is O(0.1)+.
    assert jnp.allclose(enc_output, enc_expected, atol=5e-3), "enc_output mismatch"
    assert jnp.allclose(s, s_expected, atol=5e-3), "s mismatch"

    print("KERNEL_OK")
</pallas_src>

<mosaic_0001>
module attributes {stable_mosaic.version = 11 : i64} {
  func.func @_encoder_kernel(%arg0: memref<32x1xi32, #tpu.memory_space<vmem>>, %arg1: memref<29x16xf32, #tpu.memory_space<vmem>>, %arg2: memref<16x768xf32, #tpu.memory_space<vmem>>, %arg3: memref<2x17x384xf32, #tpu.memory_space<vmem>>, %arg4: memref<1x1152xf32, #tpu.memory_space<vmem>>, %arg5: memref<34x19xf32, #tpu.memory_space<vmem>>, %arg6: memref<8x4x17xf32, #tpu.memory_space<vmem>>, %arg7: memref<8x4x17xf32, #tpu.memory_space<vmem>>, %arg8: memref<4x19xf32, #tpu.memory_space<vmem>>, %arg9: memref<32x768xf32, #tpu.memory_space<vmem>>) attributes {dimension_semantics = [], scalar_prefetch = 0 : i64, scratch_operands = 1 : i64, tpu.core_type = #tpu.core_type<tc>} {
    %c0 = arith.constant 0 : index
    %c0_0 = arith.constant 0 : index
    %0 = vector.load %arg0[%c0, %c0_0] : memref<32x1xi32, #tpu.memory_space<vmem>>, vector<32x1xi32>
    %1 = tpu.iota {dimensions = array<i32: 1>} : vector<32x29xi32>
    %2 = vector.broadcast %0 : vector<32x1xi32> to vector<32x29xi32>
    %3 = arith.cmpi eq, %2, %1 : vector<32x29xi32>
    %4 = arith.extui %3 : vector<32x29xi1> to vector<32x29xi32>
    %5 = arith.sitofp %4 : vector<32x29xi32> to vector<32x29xf32>
    %c0_1 = arith.constant 0 : index
    %c0_2 = arith.constant 0 : index
    %6 = vector.load %arg1[%c0_1, %c0_2] : memref<29x16xf32, #tpu.memory_space<vmem>>, vector<29x16xf32>
    %cst = arith.constant dense<0.000000e+00> : vector<32x16xf32>
    %7 = tpu.matmul %5, %6, %cst {dimension_numbers = #tpu.dot_dimension_numbers<[1], [0], [0], [1], [0, 0, 1, 1], [], []>, precision = #tpu.contract_precision<fp32>} : vector<32x29xf32>, vector<29x16xf32>, vector<32x16xf32> -> vector<32x16xf32>
    %c0_3 = arith.constant 0 : index
    %c0_4 = arith.constant 0 : index
    %8 = vector.load %arg2[%c0_3, %c0_4] : memref<16x768xf32, #tpu.memory_space<vmem>>, vector<16x768xf32>
    %cst_5 = arith.constant dense<0.000000e+00> : vector<32x768xf32>
    %9 = tpu.matmul %7, %8, %cst_5 {dimension_numbers = #tpu.dot_dimension_numbers<[1], [0], [0], [1], [0, 0, 1, 1], [], []>, precision = #tpu.contract_precision<fp32>} : vector<32x16xf32>, vector<16x768xf32>, vector<32x768xf32> -> vector<32x768xf32>
    %c0_6 = arith.constant 0 : index
    %c0_7 = arith.constant 0 : index
    %10 = vector.load %arg4[%c0_6, %c0_7] : memref<1x1152xf32, #tpu.memory_space<vmem>>, vector<1x768xf32>
    %11 = vector.broadcast %10 : vector<1x768xf32> to vector<32x768xf32>
    %12 = arith.addf %9, %11 : vector<32x768xf32>
    %c0_8 = arith.constant 0 : index
    %c0_9 = arith.constant 0 : index
    %13 = vector.load %arg9[%c0_8, %c0_9] : memref<32x768xf32, #tpu.memory_space<vmem>>, vector<32x768xf32>
    tpu.vector_store %arg9[%c0_8, %c0_9], %12 {strides = array<i32>} : memref<32x768xf32, #tpu.memory_space<vmem>>, vector<32x768xf32>,
    %c0_10 = arith.constant 0 : index
    %c0_11 = arith.constant 0 : index
    %c0_12 = arith.constant 0 : index
    %14 = vector.load %arg3[%c0_10, %c0_11, %c0_12] : memref<2x17x384xf32, #tpu.memory_space<vmem>>, vector<1x17x384xf32>
    %15 = vector.shape_cast %14 : vector<1x17x384xf32> to vector<17x384xf32>
    %c1 = arith.constant 1 : index
    %c0_13 = arith.constant 0 : index
    %c0_14 = arith.constant 0 : index
    %16 = vector.load %arg3[%c1, %c0_13, %c0_14] : memref<2x17x384xf32, #tpu.memory_space<vmem>>, vector<1x17x384xf32>
    %17 = vector.shape_cast %16 : vector<1x17x384xf32> to vector<17x384xf32>
    %c0_15 = arith.constant 0 : index
    %c768 = arith.constant 768 : index
    %18 = vector.load %arg4[%c0_15, %c768] : memref<1x1152xf32, #tpu.memory_space<vmem>>, vector<1x17xf32>
    %19 = vector.shape_cast %18 : vector<1x17xf32> to vector<1x17xf32>
    %20 = vector.broadcast %19 : vector<1x17xf32> to vector<4x17xf32>
    %c0_16 = arith.constant 0 : index
    %c896 = arith.constant 896 : index
    %21 = vector.load %arg4[%c0_16, %c896] : memref<1x1152xf32, #tpu.memory_space<vmem>>, vector<1x17xf32>
    %22 = vector.shape_cast %21 : vector<1x17xf32> to vector<1x17xf32>
    %23 = vector.broadcast %22 : vector<1x17xf32> to vector<4x17xf32>
    %cst_17 = arith.constant 0.000000e+00 : f32
    %24 = vector.broadcast %cst_17 : f32 to vector<4x17xf32>
    %cst_18 = arith.constant 0.000000e+00 : f32
    %25 = vector.broadcast %cst_18 : f32 to vector<4x17xf32>
    %c0_19 = arith.constant 0 : index
    %c0_20 = arith.constant 0 : index
    %26 = vector.load %arg9[%c0_19, %c0_20] : memref<32x768xf32, #tpu.memory_space<vmem>>, vector<4x384xf32>
    %cst_21 = arith.constant dense<0.000000e+00> : vector<4x384xf32>
    %27 = tpu.matmul %24, %15, %cst_21 {dimension_numbers = #tpu.dot_dimension_numbers<[1], [0], [0], [1], [0, 0, 1, 1], [], []>} : vector<4x17xf32>, vector<17x384xf32>, vector<4x384xf32> -> vector<4x384xf32>
    %28 = vector.extract_strided_slice %26 {offsets = [0, 0], sizes = [4, 17], strides = [1, 1]} : vector<4x384xf32> to vector<4x17xf32>
    %29 = vector.extract_strided_slice %27 {offsets = [0, 0], sizes = [4, 17], strides = [1, 1]} : vector<4x384xf32> to vector<4x17xf32>
    %30 = arith.addf %28, %29 : vector<4x17xf32>
    %31 = arith.negf %30 : vector<4x17xf32>
    %32 = math.exp %31 : vector<4x17xf32>
    %cst_22 = arith.constant 1.000000e+00 : f32
    %33 = vector.broadcast %cst_22 : f32 to vector<4x17xf32>
    %34 = arith.addf %33, %32 : vector<4x17xf32>
    %35 = arith.divf %33, %34 : vector<4x17xf32>
    %36 = vector.extract_strided_slice %26 {offsets = [0, 128], sizes = [4, 17], strides = [1, 1]} : vector<4x384xf32> to vector<4x17xf32>
    %37 = vector.extract_strided_slice %27 {offsets = [0, 128], sizes = [4, 17], strides = [1, 1]} : vector<4x384xf32> to vector<4x17xf32>
    %38 = arith.addf %36, %37 : vector<4x17xf32>
    %39 = arith.negf %38 : vector<4x17xf32>
    %40 = math.exp %39 : vector<4x17xf32>
    %cst_23 = arith.constant 1.000000e+00 : f32
    %41 = vector.broadcast %cst_23 : f32 to vector<4x17xf32>
    %42 = arith.addf %41, %40 : vector<4x17xf32>
    %43 = arith.divf %41, %42 : vector<4x17xf32>
    %44 = vector.extract_strided_slice %26 {offsets = [0, 256], sizes = [4, 17], strides = [1, 1]} : vector<4x384xf32> to vector<4x17xf32>
    %45 = vector.extract_strided_slice %27 {offsets = [0, 256], sizes = [4, 17], strides = [1, 1]} : vector<4x384xf32> to vector<4x17xf32>
    %46 = arith.addf %45, %20 : vector<4x17xf32>
    %47 = arith.mulf %35, %46 : vector<4x17xf32>
    %48 = arith.addf %44, %47 : vector<4x17xf32>
    %49 = math.tanh %48 : vector<4x17xf32>
    %cst_24 = arith.constant 1.000000e+00 : f32
    %50 = vector.broadcast %cst_24 : f32 to vector<4x17xf32>
    %51 = arith.subf %50, %43 : vector<4x17xf32>
    %52 = arith.mulf %51, %49 : vector<4x17xf32>
    %53 = arith.mulf %43, %24 : vector<4x17xf32>
    %54 = arith.addf %52, %53 : vector<4x17xf32>
    %c28 = arith.constant 28 : index
    %c384 = arith.constant 384 : index
    %55 = vector.load %arg9[%c28, %c384] : memref<32x768xf32, #tpu.memory_space<vmem>>, vector<4x384xf32>
    %cst_25 = arith.constant dense<0.000000e+00> : vector<4x384xf32>
    %56 = tpu.matmul %25, %17, %cst_25 {dimension_numbers = #tpu.dot_dimension_numbers<[1], [0], [0], [1], [0, 0, 1, 1], [], []>} : vector<4x17xf32>, vector<17x384xf32>, vector<4x384xf32> -> vector<4x384xf32>
    %57 = vector.extract_strided_slice %55 {offsets = [0, 0], sizes = [4, 17], strides = [1, 1]} : vector<4x384xf32> to vector<4x17xf32>
    %58 = vector.extract_strided_slice %56 {offsets = [0, 0], sizes = [4, 17], strides = [1, 1]} : vector<4x384xf32> to vector<4x17xf32>
    %59 = arith.addf %57, %58 : vector<4x17xf32>
    %60 = arith.negf %59 : vector<4x17xf32>
    %61 = math.exp %60 : vector<4x17xf32>
    %cst_26 = arith.constant 1.000000e+00 : f32
    %62 = vector.broadcast %cst_26 : f32 to vector<4x17xf32>
    %63 = arith.addf %62, %61 : vector<4x17xf32>
    %64 = arith.divf %62, %63 : vector<4x17xf32>
    %65 = vector.extract_strided_slice %55 {offsets = [0, 128], sizes = [4, 17], strides = [1, 1]} : vector<4x384xf32> to vector<4x17xf32>
    %66 = vector.extract_strided_slice %56 {offsets = [0, 128], sizes = [4, 17], strides = [1, 1]} : vector<4x384xf32> to vector<4x17xf32>
    %67 = arith.addf %65, %66 : vector<4x17xf32>
    %68 = arith.negf %67 : vector<4x17xf32>
    %69 = math.exp %68 : vector<4x17xf32>
    %cst_27 = arith.constant 1.000000e+00 : f32
    %70 = vector.broadcast %cst_27 : f32 to vector<4x17xf32>
    %71 = arith.addf %70, %69 : vector<4x17xf32>
    %72 = arith.divf %70, %71 : vector<4x17xf32>
    %73 = vector.extract_strided_slice %55 {offsets = [0, 256], sizes = [4, 17], strides = [1, 1]} : vector<4x384xf32> to vector<4x17xf32>
    %74 = vector.extract_strided_slice %56 {offsets = [0, 256], sizes = [4, 17], strides = [1, 1]} : vector<4x384xf32> to vector<4x17xf32>
    %75 = arith.addf %74, %23 : vector<4x17xf32>
    %76 = arith.mulf %64, %75 : vector<4x17xf32>
    %77 = arith.addf %73, %76 : vector<4x17xf32>
    %78 = math.tanh %77 : vector<4x17xf32>
    %cst_28 = arith.constant 1.000000e+00 : f32
    %79 = vector.broadcast %cst_28 : f32 to vector<4x17xf32>
    %80 = arith.subf %79, %72 : vector<4x17xf32>
    %81 = arith.mulf %80, %78 : vector<4x17xf32>
    %82 = arith.mulf %72, %25 : vector<4x17xf32>
    %83 = arith.addf %81, %82 : vector<4x17xf32>
    %c0_29 = arith.constant 0 : index
    %c0_30 = arith.constant 0 : index
    %c0_31 = arith.constant 0 : index
    %84 = vector.load %arg6[%c0_29, %c0_30, %c0_31] : memref<8x4x17xf32, #tpu.memory_space<vmem>>, vector<1x4x17xf32>
    %85 = vector.shape_cast %84 : vector<1x4x17xf32> to vector<4x17xf32>
    %86 = vector.shape_cast %54 : vector<4x17xf32> to vector<1x4x17xf32>
    tpu.vector_store %arg6[%c0_29, %c0_30, %c0_31], %86 {strides = array<i32>} : memref<8x4x17xf32, #tpu.memory_space<vmem>>, vector<1x4x17xf32>,
    %c7 = arith.constant 7 : index
    %c0_32 = arith.constant 0 : index
    %c0_33 = arith.constant 0 : index
    %87 = vector.load %arg7[%c7, %c0_32, %c0_33] : memref<8x4x17xf32, #tpu.memory_space<vmem>>, vector<1x4x17xf32>
    %88 = vector.shape_cast %87 : vector<1x4x17xf32> to vector<4x17xf32>
    %89 = vector.shape_cast %83 : vector<4x17xf32> to vector<1x4x17xf32>
    tpu.vector_store %arg7[%c7, %c0_32, %c0_33], %89 {strides = array<i32>} : memref<8x4x17xf32, #tpu.memory_space<vmem>>, vector<1x4x17xf32>,
    %c4 = arith.constant 4 : index
    %c0_34 = arith.constant 0 : index
    %90 = vector.load %arg9[%c4, %c0_34] : memref<32x768xf32, #tpu.memory_space<vmem>>, vector<4x384xf32>
    %cst_35 = arith.constant dense<0.000000e+00> : vector<4x384xf32>
    %91 = tpu.matmul %54, %15, %cst_35 {dimension_numbers = #tpu.dot_dimension_numbers<[1], [0], [0], [1], [0, 0, 1, 1], [], []>} : vector<4x17xf32>, vector<17x384xf32>, vector<4x384xf32> -> vector<4x384xf32>
    %92 = vector.extract_strided_slice %90 {offsets = [0, 0], sizes = [4, 17], strides = [1, 1]} : vector<4x384xf32> to vector<4x17xf32>
    %93 = vector.extract_strided_slice %91 {offsets = [0, 0], sizes = [4, 17], strides = [1, 1]} : vector<4x384xf32> to vector<4x17xf32>
    %94 = arith.addf %92, %93 : vector<4x17xf32>
    %95 = arith.negf %94 : vector<4x17xf32>
    %96 = math.exp %95 : vector<4x17xf32>
    %cst_36 = arith.constant 1.000000e+00 : f32
    %97 = vector.broadcast %cst_36 : f32 to vector<4x17xf32>
    %98 = arith.addf %97, %96 : vector<4x17xf32>
    %99 = arith.divf %97, %98 : vector<4x17xf32>
    %100 = vector.extract_strided_slice %90 {offsets = [0, 128], sizes = [4, 17], strides = [1, 1]} : vector<4x384xf32> to vector<4x17xf32>
    %101 = vector.extract_strided_slice %91 {offsets = [0, 128], sizes = [4, 17], strides = [1, 1]} : vector<4x384xf32> to vector<4x17xf32>
    %102 = arith.addf %100, %101 : vector<4x17xf32>
    %103 = arith.negf %102 : vector<4x17xf32>
    %104 = math.exp %103 : vector<4x17xf32>
    %cst_37 = arith.constant 1.000000e+00 : f32
    %105 = vector.broadcast %cst_37 : f32 to vector<4x17xf32>
    %106 = arith.addf %105, %104 : vector<4x17xf32>
    %107 = arith.divf %105, %106 : vector<4x17xf32>
    %108 = vector.extract_strided_slice %90 {offsets = [0, 256], sizes = [4, 17], strides = [1, 1]} : vector<4x384xf32> to vector<4x17xf32>
    %109 = vector.extract_strided_slice %91 {offsets = [0, 256], sizes = [4, 17], strides = [1, 1]} : vector<4x384xf32> to vector<4x17xf32>
    %110 = arith.addf %109, %20 : vector<4x17xf32>
    %111 = arith.mulf %99, %110 : vector<4x17xf32>
    %112 = arith.addf %108, %111 : vector<4x17xf32>
    %113 = math.tanh %112 : vector<4x17xf32>
    %cst_38 = arith.constant 1.000000e+00 : f32
    %114 = vector.broadcast %cst_38 : f32 to vector<4x17xf32>
    %115 = arith.subf %114, %107 : vector<4x17xf32>
    %116 = arith.mulf %115, %113 : vector<4x17xf32>
    %117 = arith.mulf %107, %54 : vector<4x17xf32>
    %118 = arith.addf %116, %117 : vector<4x17xf32>
    %c24 = arith.constant 24 : index
    %c384_39 = arith.constant 384 : index
    %119 = vector.load %arg9[%c24, %c384_39] : memref<32x768xf32, #tpu.memory_space<vmem>>, vector<4x384xf32>
    %cst_40 = arith.constant dense<0.000000e+00> : vector<4x384xf32>
    %120 = tpu.matmul %83, %17, %cst_40 {dimension_numbers = #tpu.dot_dimension_numbers<[1], [0], [0], [1], [0, 0, 1, 1], [], []>} : vector<4x17xf32>, vector<17x384xf32>, vector<4x384xf32> -> vector<4x384xf32>
    %121 = vector.extract_strided_slice %119 {offsets = [0, 0], sizes = [4, 17], strides = [1, 1]} : vector<4x384xf32> to vector<4x17xf32>
    %122 = vector.extract_strided_slice %120 {offsets = [0, 0], sizes = [4, 17], strides = [1, 1]} : vector<4x384xf32> to vector<4x17xf32>
    %123 = arith.addf %121, %122 : vector<4x17xf32>
    %124 = arith.negf %123 : vector<4x17xf32>
    %125 = math.exp %124 : vector<4x17xf32>
    %cst_41 = arith.constant 1.000000e+00 : f32
    %126 = vector.broadcast %cst_41 : f32 to vector<4x17xf32>
    %127 = arith.addf %126, %125 : vector<4x17xf32>
    %128 = arith.divf %126, %127 : vector<4x17xf32>
    %129 = vector.extract_strided_slice %119 {offsets = [0, 128], sizes = [4, 17], strides = [1, 1]} : vector<4x384xf32> to vector<4x17xf32>
    %130 = vector.extract_strided_slice %120 {offsets = [0, 128], sizes = [4, 17], strides = [1, 1]} : vector<4x384xf32> to vector<4x17xf32>
    %131 = arith.addf %129, %130 : vector<4x17xf32>
    %132 = arith.negf %131 : vector<4x17xf32>
    %133 = math.exp %132 : vector<4x17xf32>
    %cst_42 = arith.constant 1.000000e+00 : f32
    %134 = vector.broadcast %cst_42 : f32 to vector<4x17xf32>
    %135 = arith.addf %134, %133 : vector<4x17xf32>
    %136 = arith.divf %134, %135 : vector<4x17xf32>
    %137 = vector.extract_strided_slice %119 {offsets = [0, 256], sizes = [4, 17], strides = [1, 1]} : vector<4x384xf32> to vector<4x17xf32>
    %138 = vector.extract_strided_slice %120 {offsets = [0, 256], sizes = [4, 17], strides = [1, 1]} : vector<4x384xf32> to vector<4x17xf32>
    %139 = arith.addf %138, %23 : vector<4x17xf32>
    %140 = arith.mulf %128, %139 : vector<4x17xf32>
    %141 = arith.addf %137, %140 : vector<4x17xf32>
    %142 = math.tanh %141 : vector<4x17xf32>
    %cst_43 = arith.constant 1.000000e+00 : f32
    %143 = vector.broadcast %cst_43 : f32 to vector<4x17xf32>
    %144 = arith.subf %143, %136 : vector<4x17xf32>
    %145 = arith.mulf %144, %142 : vector<4x17xf32>
    %146 = arith.mulf %136, %83 : vector<4x17xf32>
    %147 = arith.addf %145, %146 : vector<4x17xf32>
    %c1_44 = arith.constant 1 : index
    %c0_45 = arith.constant 0 : index
    %c0_46 = arith.constant 0 : index
    %148 = vector.load %arg6[%c1_44, %c0_45, %c0_46] : memref<8x4x17xf32, #tpu.memory_space<vmem>>, vector<1x4x17xf32>
    %149 = vector.shape_cast %148 : vector<1x4x17xf32> to vector<4x17xf32>
    %150 = vector.shape_cast %118 : vector<4x17xf32> to vector<1x4x17xf32>
    tpu.vector_store %arg6[%c1_44, %c0_45, %c0_46], %150 {strides = array<i32>} : memref<8x4x17xf32, #tpu.memory_space<vmem>>, vector<1x4x17xf32>,
    %c6 = arith.constant 6 : index
    %c0_47 = arith.constant 0 : index
    %c0_48 = arith.constant 0 : index
    %151 = vector.load %arg7[%c6, %c0_47, %c0_48] : memref<8x4x17xf32, #tpu.memory_space<vmem>>, vector<1x4x17xf32>
    %152 = vector.shape_cast %151 : vector<1x4x17xf32> to vector<4x17xf32>
    %153 = vector.shape_cast %147 : vector<4x17xf32> to vector<1x4x17xf32>
    tpu.vector_store %arg7[%c6, %c0_47, %c0_48], %153 {strides = array<i32>} : memref<8x4x17xf32, #tpu.memory_space<vmem>>, vector<1x4x17xf32>,
    %c8 = arith.constant 8 : index
    %c0_49 = arith.constant 0 : index
    %154 = vector.load %arg9[%c8, %c0_49] : memref<32x768xf32, #tpu.memory_space<vmem>>, vector<4x384xf32>
    %cst_50 = arith.constant dense<0.000000e+00> : vector<4x384xf32>
    %155 = tpu.matmul %118, %15, %cst_50 {dimension_numbers = #tpu.dot_dimension_numbers<[1], [0], [0], [1], [0, 0, 1, 1], [], []>} : vector<4x17xf32>, vector<17x384xf32>, vector<4x384xf32> -> vector<4x384xf32>
    %156 = vector.extract_strided_slice %154 {offsets = [0, 0], sizes = [4, 17], strides = [1, 1]} : vector<4x384xf32> to vector<4x17xf32>
    %157 = vector.extract_strided_slice %155 {offsets = [0, 0], sizes = [4, 17], strides = [1, 1]} : vector<4x384xf32> to vector<4x17xf32>
    %158 = arith.addf %156, %157 : vector<4x17xf32>
    %159 = arith.negf %158 : vector<4x17xf32>
    %160 = math.exp %159 : vector<4x17xf32>
    %cst_51 = arith.constant 1.000000e+00 : f32
    %161 = vector.broadcast %cst_51 : f32 to vector<4x17xf32>
    %162 = arith.addf %161, %160 : vector<4x17xf32>
    %163 = arith.divf %161, %162 : vector<4x17xf32>
    %164 = vector.extract_strided_slice %154 {offsets = [0, 128], sizes = [4, 17], strides = [1, 1]} : vector<4x384xf32> to vector<4x17xf32>
    %165 = vector.extract_strided_slice %155 {offsets = [0, 128], sizes = [4, 17], strides = [1, 1]} : vector<4x384xf32> to vector<4x17xf32>
    %166 = arith.addf %164, %165 : vector<4x17xf32>
    %167 = arith.negf %166 : vector<4x17xf32>
    %168 = math.exp %167 : vector<4x17xf32>
    %cst_52 = arith.constant 1.000000e+00 : f32
    %169 = vector.broadcast %cst_52 : f32 to vector<4x17xf32>
    %170 = arith.addf %169, %168 : vector<4x17xf32>
    %171 = arith.divf %169, %170 : vector<4x17xf32>
    %172 = vector.extract_strided_slice %154 {offsets = [0, 256], sizes = [4, 17], strides = [1, 1]} : vector<4x384xf32> to vector<4x17xf32>
    %173 = vector.extract_strided_slice %155 {offsets = [0, 256], sizes = [4, 17], strides = [1, 1]} : vector<4x384xf32> to vector<4x17xf32>
    %174 = arith.addf %173, %20 : vector<4x17xf32>
    %175 = arith.mulf %163, %174 : vector<4x17xf32>
    %176 = arith.addf %172, %175 : vector<4x17xf32>
    %177 = math.tanh %176 : vector<4x17xf32>
    %cst_53 = arith.constant 1.000000e+00 : f32
    %178 = vector.broadcast %cst_53 : f32 to vector<4x17xf32>
    %179 = arith.subf %178, %171 : vector<4x17xf32>
    %180 = arith.mulf %179, %177 : vector<4x17xf32>
    %181 = arith.mulf %171, %118 : vector<4x17xf32>
    %182 = arith.addf %180, %181 : vector<4x17xf32>
    %c20 = arith.constant 20 : index
    %c384_54 = arith.constant 384 : index
    %183 = vector.load %arg9[%c20, %c384_54] : memref<32x768xf32, #tpu.memory_space<vmem>>, vector<4x384xf32>
    %cst_55 = arith.constant dense<0.000000e+00> : vector<4x384xf32>
    %184 = tpu.matmul %147, %17, %cst_55 {dimension_numbers = #tpu.dot_dimension_numbers<[1], [0], [0], [1], [0, 0, 1, 1], [], []>} : vector<4x17xf32>, vector<17x384xf32>, vector<4x384xf32> -> vector<4x384xf32>
    %185 = vector.extract_strided_slice %183 {offsets = [0, 0], sizes = [4, 17], strides = [1, 1]} : vector<4x384xf32> to vector<4x17xf32>
    %186 = vector.extract_strided_slice %184 {offsets = [0, 0], sizes = [4, 17], strides = [1, 1]} : vector<4x384xf32> to vector<4x17xf32>
    %187 = arith.addf %185, %186 : vector<4x17xf32>
    %188 = arith.negf %187 : vector<4x17xf32>
    %189 = math.exp %188 : vector<4x17xf32>
    %cst_56 = arith.constant 1.000000e+00 : f32
    %190 = vector.broadcast %cst_56 : f32 to vector<4x17xf32>
    %191 = arith.addf %190, %189 : vector<4x17xf32>
    %192 = arith.divf %190, %191 : vector<4x17xf32>
    %193 = vector.extract_strided_slice %183 {offsets = [0, 128], sizes = [4, 17], strides = [1, 1]} : vector<4x384xf32> to vector<4x17xf32>
    %194 = vector.extract_strided_slice %184 {offsets = [0, 128], sizes = [4, 17], strides = [1, 1]} : vector<4x384xf32> to vector<4x17xf32>
    %195 = arith.addf %193, %194 : vector<4x17xf32>
    %196 = arith.negf %195 : vector<4x17xf32>
    %197 = math.exp %196 : vector<4x17xf32>
    %cst_57 = arith.constant 1.000000e+00 : f32
    %198 = vector.broadcast %cst_57 : f32 to vector<4x17xf32>
    %199 = arith.addf %198, %197 : vector<4x17xf32>
    %200 = arith.divf %198, %199 : vector<4x17xf32>
    %201 = vector.extract_strided_slice %183 {offsets = [0, 256], sizes = [4, 17], strides = [1, 1]} : vector<4x384xf32> to vector<4x17xf32>
    %202 = vector.extract_strided_slice %184 {offsets = [0, 256], sizes = [4, 17], strides = [1, 1]} : vector<4x384xf32> to vector<4x17xf32>
    %203 = arith.addf %202, %23 : vector<4x17xf32>
    %204 = arith.mulf %192, %203 : vector<4x17xf32>
    %205 = arith.addf %201, %204 : vector<4x17xf32>
    %206 = math.tanh %205 : vector<4x17xf32>
    %cst_58 = arith.constant 1.000000e+00 : f32
    %207 = vector.broadcast %cst_58 : f32 to vector<4x17xf32>
    %208 = arith.subf %207, %200 : vector<4x17xf32>
    %209 = arith.mulf %208, %206 : vector<4x17xf32>
    %210 = arith.mulf %200, %147 : vector<4x17xf32>
    %211 = arith.addf %209, %210 : vector<4x17xf32>
    %c2 = arith.constant 2 : index
    %c0_59 = arith.constant 0 : index
    %c0_60 = arith.constant 0 : index
    %212 = vector.load %arg6[%c2, %c0_59, %c0_60] : memref<8x4x17xf32, #tpu.memory_space<vmem>>, vector<1x4x17xf32>
    %213 = vector.shape_cast %212 : vector<1x4x17xf32> to vector<4x17xf32>
    %214 = vector.shape_cast %182 : vector<4x17xf32> to vector<1x4x17xf32>
    tpu.vector_store %arg6[%c2, %c0_59, %c0_60], %214 {strides = array<i32>} : memref<8x4x17xf32, #tpu.memory_space<vmem>>, vector<1x4x17xf32>,
    %c5 = arith.constant 5 : index
    %c0_61 = arith.constant 0 : index
    %c0_62 = arith.constant 0 : index
    %215 = vector.load %arg7[%c5, %c0_61, %c0_62] : memref<8x4x17xf32, #tpu.memory_space<vmem>>, vector<1x4x17xf32>
    %216 = vector.shape_cast %215 : vector<1x4x17xf32> to vector<4x17xf32>
    %217 = vector.shape_cast %211 : vector<4x17xf32> to vector<1x4x17xf32>
    tpu.vector_store %arg7[%c5, %c0_61, %c0_62], %217 {strides = array<i32>} : memref<8x4x17xf32, #tpu.memory_space<vmem>>, vector<1x4x17xf32>,
    %c12 = arith.constant 12 : index
    %c0_63 = arith.constant 0 : index
    %218 = vector.load %arg9[%c12, %c0_63] : memref<32x768xf32, #tpu.memory_space<vmem>>, vector<4x384xf32>
    %cst_64 = arith.constant dense<0.000000e+00> : vector<4x384xf32>
    %219 = tpu.matmul %182, %15, %cst_64 {dimension_numbers = #tpu.dot_dimension_numbers<[1], [0], [0], [1], [0, 0, 1, 1], [], []>} : vector<4x17xf32>, vector<17x384xf32>, vector<4x384xf32> -> vector<4x384xf32>
    %220 = vector.extract_strided_slice %218 {offsets = [0, 0], sizes = [4, 17], strides = [1, 1]} : vector<4x384xf32> to vector<4x17xf32>
    %221 = vector.extract_strided_slice %219 {offsets = [0, 0], sizes = [4, 17], strides = [1, 1]} : vector<4x384xf32> to vector<4x17xf32>
    %222 = arith.addf %220, %221 : vector<4x17xf32>
    %223 = arith.negf %222 : vector<4x17xf32>
    %224 = math.exp %223 : vector<4x17xf32>
    %cst_65 = arith.constant 1.000000e+00 : f32
    %225 = vector.broadcast %cst_65 : f32 to vector<4x17xf32>
    %226 = arith.addf %225, %224 : vector<4x17xf32>
    %227 = arith.divf %225, %226 : vector<4x17xf32>
    %228 = vector.extract_strided_slice %218 {offsets = [0, 128], sizes = [4, 17], strides = [1, 1]} : vector<4x384xf32> to vector<4x17xf32>
    %229 = vector.extract_strided_slice %219 {offsets = [0, 128], sizes = [4, 17], strides = [1, 1]} : vector<4x384xf32> to vector<4x17xf32>
    %230 = arith.addf %228, %229 : vector<4x17xf32>
    %231 = arith.negf %230 : vector<4x17xf32>
    %232 = math.exp %231 : vector<4x17xf32>
    %cst_66 = arith.constant 1.000000e+00 : f32
    %233 = vector.broadcast %cst_66 : f32 to vector<4x17xf32>
    %234 = arith.addf %233, %232 : vector<4x17xf32>
    %235 = arith.divf %233, %234 : vector<4x17xf32>
    %236 = vector.extract_strided_slice %218 {offsets = [0, 256], sizes = [4, 17], strides = [1, 1]} : vector<4x384xf32> to vector<4x17xf32>
    %237 = vector.extract_strided_slice %219 {offsets = [0, 256], sizes = [4, 17], strides = [1, 1]} : vector<4x384xf32> to vector<4x17xf32>
    %238 = arith.addf %237, %20 : vector<4x17xf32>
    %239 = arith.mulf %227, %238 : vector<4x17xf32>
    %240 = arith.addf %236, %239 : vector<4x17xf32>
    %241 = math.tanh %240 : vector<4x17xf32>
    %cst_67 = arith.constant 1.000000e+00 : f32
    %242 = vector.broadcast %cst_67 : f32 to vector<4x17xf32>
    %243 = arith.subf %242, %235 : vector<4x17xf32>
    %244 = arith.mulf %243, %241 : vector<4x17xf32>
    %245 = arith.mulf %235, %182 : vector<4x17xf32>
    %246 = arith.addf %244, %245 : vector<4x17xf32>
    %c16 = arith.constant 16 : index
    %c384_68 = arith.constant 384 : index
    %247 = vector.load %arg9[%c16, %c384_68] : memref<32x768xf32, #tpu.memory_space<vmem>>, vector<4x384xf32>
    %cst_69 = arith.constant dense<0.000000e+00> : vector<4x384xf32>
    %248 = tpu.matmul %211, %17, %cst_69 {dimension_numbers = #tpu.dot_dimension_numbers<[1], [0], [0], [1], [0, 0, 1, 1], [], []>} : vector<4x17xf32>, vector<17x384xf32>, vector<4x384xf32> -> vector<4x384xf32>
    %249 = vector.extract_strided_slice %247 {offsets = [0, 0], sizes = [4, 17], strides = [1, 1]} : vector<4x384xf32> to vector<4x17xf32>
    %250 = vector.extract_strided_slice %248 {offsets = [0, 0], sizes = [4, 17], strides = [1, 1]} : vector<4x384xf32> to vector<4x17xf32>
    %251 = arith.addf %249, %250 : vector<4x17xf32>
    %252 = arith.negf %251 : vector<4x17xf32>
    %253 = math.exp %252 : vector<4x17xf32>
    %cst_70 = arith.constant 1.000000e+00 : f32
    %254 = vector.broadcast %cst_70 : f32 to vector<4x17xf32>
    %255 = arith.addf %254, %253 : vector<4x17xf32>
    %256 = arith.divf %254, %255 : vector<4x17xf32>
    %257 = vector.extract_strided_slice %247 {offsets = [0, 128], sizes = [4, 17], strides = [1, 1]} : vector<4x384xf32> to vector<4x17xf32>
    %258 = vector.extract_strided_slice %248 {offsets = [0, 128], sizes = [4, 17], strides = [1, 1]} : vector<4x384xf32> to vector<4x17xf32>
    %259 = arith.addf %257, %258 : vector<4x17xf32>
    %260 = arith.negf %259 : vector<4x17xf32>
    %261 = math.exp %260 : vector<4x17xf32>
    %cst_71 = arith.constant 1.000000e+00 : f32
    %262 = vector.broadcast %cst_71 : f32 to vector<4x17xf32>
    %263 = arith.addf %262, %261 : vector<4x17xf32>
    %264 = arith.divf %262, %263 : vector<4x17xf32>
    %265 = vector.extract_strided_slice %247 {offsets = [0, 256], sizes = [4, 17], strides = [1, 1]} : vector<4x384xf32> to vector<4x17xf32>
    %266 = vector.extract_strided_slice %248 {offsets = [0, 256], sizes = [4, 17], strides = [1, 1]} : vector<4x384xf32> to vector<4x17xf32>
    %267 = arith.addf %266, %23 : vector<4x17xf32>
    %268 = arith.mulf %256, %267 : vector<4x17xf32>
    %269 = arith.addf %265, %268 : vector<4x17xf32>
    %270 = math.tanh %269 : vector<4x17xf32>
    %cst_72 = arith.constant 1.000000e+00 : f32
    %271 = vector.broadcast %cst_72 : f32 to vector<4x17xf32>
    %272 = arith.subf %271, %264 : vector<4x17xf32>
    %273 = arith.mulf %272, %270 : vector<4x17xf32>
    %274 = arith.mulf %264, %211 : vector<4x17xf32>
    %275 = arith.addf %273, %274 : vector<4x17xf32>
    %c3 = arith.constant 3 : index
    %c0_73 = arith.constant 0 : index
    %c0_74 = arith.constant 0 : index
    %276 = vector.load %arg6[%c3, %c0_73, %c0_74] : memref<8x4x17xf32, #tpu.memory_space<vmem>>, vector<1x4x17xf32>
    %277 = vector.shape_cast %276 : vector<1x4x17xf32> to vector<4x17xf32>
    %278 = vector.shape_cast %246 : vector<4x17xf32> to vector<1x4x17xf32>
    tpu.vector_store %arg6[%c3, %c0_73, %c0_74], %278 {strides = array<i32>} : memref<8x4x17xf32, #tpu.memory_space<vmem>>, vector<1x4x17xf32>,
    %c4_75 = arith.constant 4 : index
    %c0_76 = arith.constant 0 : index
    %c0_77 = arith.constant 0 : index
    %279 = vector.load %arg7[%c4_75, %c0_76, %c0_77] : memref<8x4x17xf32, #tpu.memory_space<vmem>>, vector<1x4x17xf32>
    %280 = vector.shape_cast %279 : vector<1x4x17xf32> to vector<4x17xf32>
    %281 = vector.shape_cast %275 : vector<4x17xf32> to vector<1x4x17xf32>
    tpu.vector_store %arg7[%c4_75, %c0_76, %c0_77], %281 {strides = array<i32>} : memref<8x4x17xf32, #tpu.memory_space<vmem>>, vector<1x4x17xf32>,
    %c16_78 = arith.constant 16 : index
    %c0_79 = arith.constant 0 : index
    %282 = vector.load %arg9[%c16_78, %c0_79] : memref<32x768xf32, #tpu.memory_space<vmem>>, vector<4x384xf32>
    %cst_80 = arith.constant dense<0.000000e+00> : vector<4x384xf32>
    %283 = tpu.matmul %246, %15, %cst_80 {dimension_numbers = #tpu.dot_dimension_numbers<[1], [0], [0], [1], [0, 0, 1, 1], [], []>} : vector<4x17xf32>, vector<17x384xf32>, vector<4x384xf32> -> vector<4x384xf32>
    %284 = vector.extract_strided_slice %282 {offsets = [0, 0], sizes = [4, 17], strides = [1, 1]} : vector<4x384xf32> to vector<4x17xf32>
    %285 = vector.extract_strided_slice %283 {offsets = [0, 0], sizes = [4, 17], strides = [1, 1]} : vector<4x384xf32> to vector<4x17xf32>
    %286 = arith.addf %284, %285 : vector<4x17xf32>
    %287 = arith.negf %286 : vector<4x17xf32>
    %288 = math.exp %287 : vector<4x17xf32>
    %cst_81 = arith.constant 1.000000e+00 : f32
    %289 = vector.broadcast %cst_81 : f32 to vector<4x17xf32>
    %290 = arith.addf %289, %288 : vector<4x17xf32>
    %291 = arith.divf %289, %290 : vector<4x17xf32>
    %292 = vector.extract_strided_slice %282 {offsets = [0, 128], sizes = [4, 17], strides = [1, 1]} : vector<4x384xf32> to vector<4x17xf32>
    %293 = vector.extract_strided_slice %283 {offsets = [0, 128], sizes = [4, 17], strides = [1, 1]} : vector<4x384xf32> to vector<4x17xf32>
    %294 = arith.addf %292, %293 : vector<4x17xf32>
    %295 = arith.negf %294 : vector<4x17xf32>
    %296 = math.exp %295 : vector<4x17xf32>
    %cst_82 = arith.constant 1.000000e+00 : f32
    %297 = vector.broadcast %cst_82 : f32 to vector<4x17xf32>
    %298 = arith.addf %297, %296 : vector<4x17xf32>
    %299 = arith.divf %297, %298 : vector<4x17xf32>
    %300 = vector.extract_strided_slice %282 {offsets = [0, 256], sizes = [4, 17], strides = [1, 1]} : vector<4x384xf32> to vector<4x17xf32>
    %301 = vector.extract_strided_slice %283 {offsets = [0, 256], sizes = [4, 17], strides = [1, 1]} : vector<4x384xf32> to vector<4x17xf32>
    %302 = arith.addf %301, %20 : vector<4x17xf32>
    %303 = arith.mulf %291, %302 : vector<4x17xf32>
    %304 = arith.addf %300, %303 : vector<4x17xf32>
    %305 = math.tanh %304 : vector<4x17xf32>
    %cst_83 = arith.constant 1.000000e+00 : f32
    %306 = vector.broadcast %cst_83 : f32 to vector<4x17xf32>
    %307 = arith.subf %306, %299 : vector<4x17xf32>
    %308 = arith.mulf %307, %305 : vector<4x17xf32>
    %309 = arith.mulf %299, %246 : vector<4x17xf32>
    %310 = arith.addf %308, %309 : vector<4x17xf32>
    %c12_84 = arith.constant 12 : index
    %c384_85 = arith.constant 384 : index
    %311 = vector.load %arg9[%c12_84, %c384_85] : memref<32x768xf32, #tpu.memory_space<vmem>>, vector<4x384xf32>
    %cst_86 = arith.constant dense<0.000000e+00> : vector<4x384xf32>
    %312 = tpu.matmul %275, %17, %cst_86 {dimension_numbers = #tpu.dot_dimension_numbers<[1], [0], [0], [1], [0, 0, 1, 1], [], []>} : vector<4x17xf32>, vector<17x384xf32>, vector<4x384xf32> -> vector<4x384xf32>
    %313 = vector.extract_strided_slice %311 {offsets = [0, 0], sizes = [4, 17], strides = [1, 1]} : vector<4x384xf32> to vector<4x17xf32>
    %314 = vector.extract_strided_slice %312 {offsets = [0, 0], sizes = [4, 17], strides = [1, 1]} : vector<4x384xf32> to vector<4x17xf32>
    %315 = arith.addf %313, %314 : vector<4x17xf32>
    %316 = arith.negf %315 : vector<4x17xf32>
    %317 = math.exp %316 : vector<4x17xf32>
    %cst_87 = arith.constant 1.000000e+00 : f32
    %318 = vector.broadcast %cst_87 : f32 to vector<4x17xf32>
    %319 = arith.addf %318, %317 : vector<4x17xf32>
    %320 = arith.divf %318, %319 : vector<4x17xf32>
    %321 = vector.extract_strided_slice %311 {offsets = [0, 128], sizes = [4, 17], strides = [1, 1]} : vector<4x384xf32> to vector<4x17xf32>
    %322 = vector.extract_strided_slice %312 {offsets = [0, 128], sizes = [4, 17], strides = [1, 1]} : vector<4x384xf32> to vector<4x17xf32>
    %323 = arith.addf %321, %322 : vector<4x17xf32>
    %324 = arith.negf %323 : vector<4x17xf32>
    %325 = math.exp %324 : vector<4x17xf32>
    %cst_88 = arith.constant 1.000000e+00 : f32
    %326 = vector.broadcast %cst_88 : f32 to vector<4x17xf32>
    %327 = arith.addf %326, %325 : vector<4x17xf32>
    %328 = arith.divf %326, %327 : vector<4x17xf32>
    %329 = vector.extract_strided_slice %311 {offsets = [0, 256], sizes = [4, 17], strides = [1, 1]} : vector<4x384xf32> to vector<4x17xf32>
    %330 = vector.extract_strided_slice %312 {offsets = [0, 256], sizes = [4, 17], strides = [1, 1]} : vector<4x384xf32> to vector<4x17xf32>
    %331 = arith.addf %330, %23 : vector<4x17xf32>
    %332 = arith.mulf %320, %331 : vector<4x17xf32>
    %333 = arith.addf %329, %332 : vector<4x17xf32>
    %334 = math.tanh %333 : vector<4x17xf32>
    %cst_89 = arith.constant 1.000000e+00 : f32
    %335 = vector.broadcast %cst_89 : f32 to vector<4x17xf32>
    %336 = arith.subf %335, %328 : vector<4x17xf32>
    %337 = arith.mulf %336, %334 : vector<4x17xf32>
    %338 = arith.mulf %328, %275 : vector<4x17xf32>
    %339 = arith.addf %337, %338 : vector<4x17xf32>
    %c4_90 = arith.constant 4 : index
    %c0_91 = arith.constant 0 : index
    %c0_92 = arith.constant 0 : index
    %340 = vector.load %arg6[%c4_90, %c0_91, %c0_92] : memref<8x4x17xf32, #tpu.memory_space<vmem>>, vector<1x4x17xf32>
    %341 = vector.shape_cast %340 : vector<1x4x17xf32> to vector<4x17xf32>
    %342 = vector.shape_cast %310 : vector<4x17xf32> to vector<1x4x17xf32>
    tpu.vector_store %arg6[%c4_90, %c0_91, %c0_92], %342 {strides = array<i32>} : memref<8x4x17xf32, #tpu.memory_space<vmem>>, vector<1x4x17xf32>,
    %c3_93 = arith.constant 3 : index
    %c0_94 = arith.constant 0 : index
    %c0_95 = arith.constant 0 : index
    %343 = vector.load %arg7[%c3_93, %c0_94, %c0_95] : memref<8x4x17xf32, #tpu.memory_space<vmem>>, vector<1x4x17xf32>
    %344 = vector.shape_cast %343 : vector<1x4x17xf32> to vector<4x17xf32>
    %345 = vector.shape_cast %339 : vector<4x17xf32> to vector<1x4x17xf32>
    tpu.vector_store %arg7[%c3_93, %c0_94, %c0_95], %345 {strides = array<i32>} : memref<8x4x17xf32, #tpu.memory_space<vmem>>, vector<1x4x17xf32>,
    %c20_96 = arith.constant 20 : index
    %c0_97 = arith.constant 0 : index
    %346 = vector.load %arg9[%c20_96, %c0_97] : memref<32x768xf32, #tpu.memory_space<vmem>>, vector<4x384xf32>
    %cst_98 = arith.constant dense<0.000000e+00> : vector<4x384xf32>
    %347 = tpu.matmul %310, %15, %cst_98 {dimension_numbers = #tpu.dot_dimension_numbers<[1], [0], [0], [1], [0, 0, 1, 1], [], []>} : vector<4x17xf32>, vector<17x384xf32>, vector<4x384xf32> -> vector<4x384xf32>
    %348 = vector.extract_strided_slice %346 {offsets = [0, 0], sizes = [4, 17], strides = [1, 1]} : vector<4x384xf32> to vector<4x17xf32>
    %349 = vector.extract_strided_slice %347 {offsets = [0, 0], sizes = [4, 17], strides = [1, 1]} : vector<4x384xf32> to vector<4x17xf32>
    %350 = arith.addf %348, %349 : vector<4x17xf32>
    %351 = arith.negf %350 : vector<4x17xf32>
    %352 = math.exp %351 : vector<4x17xf32>
    %cst_99 = arith.constant 1.000000e+00 : f32
    %353 = vector.broadcast %cst_99 : f32 to vector<4x17xf32>
    %354 = arith.addf %353, %352 : vector<4x17xf32>
    %355 = arith.divf %353, %354 : vector<4x17xf32>
    %356 = vector.extract_strided_slice %346 {offsets = [0, 128], sizes = [4, 17], strides = [1, 1]} : vector<4x384xf32> to vector<4x17xf32>
    %357 = vector.extract_strided_slice %347 {offsets = [0, 128], sizes = [4, 17], strides = [1, 1]} : vector<4x384xf32> to vector<4x17xf32>
    %358 = arith.addf %356, %357 : vector<4x17xf32>
    %359 = arith.negf %358 : vector<4x17xf32>
    %360 = math.exp %359 : vector<4x17xf32>
    %cst_100 = arith.constant 1.000000e+00 : f32
    %361 = vector.broadcast %cst_100 : f32 to vector<4x17xf32>
    %362 = arith.addf %361, %360 : vector<4x17xf32>
    %363 = arith.divf %361, %362 : vector<4x17xf32>
    %364 = vector.extract_strided_slice %346 {offsets = [0, 256], sizes = [4, 17], strides = [1, 1]} : vector<4x384xf32> to vector<4x17xf32>
    %365 = vector.extract_strided_slice %347 {offsets = [0, 256], sizes = [4, 17], strides = [1, 1]} : vector<4x384xf32> to vector<4x17xf32>
    %366 = arith.addf %365, %20 : vector<4x17xf32>
    %367 = arith.mulf %355, %366 : vector<4x17xf32>
    %368 = arith.addf %364, %367 : vector<4x17xf32>
    %369 = math.tanh %368 : vector<4x17xf32>
    %cst_101 = arith.constant 1.000000e+00 : f32
    %370 = vector.broadcast %cst_101 : f32 to vector<4x17xf32>
    %371 = arith.subf %370, %363 : vector<4x17xf32>
    %372 = arith.mulf %371, %369 : vector<4x17xf32>
    %373 = arith.mulf %363, %310 : vector<4x17xf32>
    %374 = arith.addf %372, %373 : vector<4x17xf32>
    %c8_102 = arith.constant 8 : index
    %c384_103 = arith.constant 384 : index
    %375 = vector.load %arg9[%c8_102, %c384_103] : memref<32x768xf32, #tpu.memory_space<vmem>>, vector<4x384xf32>
    %cst_104 = arith.constant dense<0.000000e+00> : vector<4x384xf32>
    %376 = tpu.matmul %339, %17, %cst_104 {dimension_numbers = #tpu.dot_dimension_numbers<[1], [0], [0], [1], [0, 0, 1, 1], [], []>} : vector<4x17xf32>, vector<17x384xf32>, vector<4x384xf32> -> vector<4x384xf32>
    %377 = vector.extract_strided_slice %375 {offsets = [0, 0], sizes = [4, 17], strides = [1, 1]} : vector<4x384xf32> to vector<4x17xf32>
    %378 = vector.extract_strided_slice %376 {offsets = [0, 0], sizes = [4, 17], strides = [1, 1]} : vector<4x384xf32> to vector<4x17xf32>
    %379 = arith.addf %377, %378 : vector<4x17xf32>
    %380 = arith.negf %379 : vector<4x17xf32>
    %381 = math.exp %380 : vector<4x17xf32>
    %cst_105 = arith.constant 1.000000e+00 : f32
    %382 = vector.broadcast %cst_105 : f32 to vector<4x17xf32>
    %383 = arith.addf %382, %381 : vector<4x17xf32>
    %384 = arith.divf %382, %383 : vector<4x17xf32>
    %385 = vector.extract_strided_slice %375 {offsets = [0, 128], sizes = [4, 17], strides = [1, 1]} : vector<4x384xf32> to vector<4x17xf32>
    %386 = vector.extract_strided_slice %376 {offsets = [0, 128], sizes = [4, 17], strides = [1, 1]} : vector<4x384xf32> to vector<4x17xf32>
    %387 = arith.addf %385, %386 : vector<4x17xf32>
    %388 = arith.negf %387 : vector<4x17xf32>
    %389 = math.exp %388 : vector<4x17xf32>
    %cst_106 = arith.constant 1.000000e+00 : f32
    %390 = vector.broadcast %cst_106 : f32 to vector<4x17xf32>
    %391 = arith.addf %390, %389 : vector<4x17xf32>
    %392 = arith.divf %390, %391 : vector<4x17xf32>
    %393 = vector.extract_strided_slice %375 {offsets = [0, 256], sizes = [4, 17], strides = [1, 1]} : vector<4x384xf32> to vector<4x17xf32>
    %394 = vector.extract_strided_slice %376 {offsets = [0, 256], sizes = [4, 17], strides = [1, 1]} : vector<4x384xf32> to vector<4x17xf32>
    %395 = arith.addf %394, %23 : vector<4x17xf32>
    %396 = arith.mulf %384, %395 : vector<4x17xf32>
    %397 = arith.addf %393, %396 : vector<4x17xf32>
    %398 = math.tanh %397 : vector<4x17xf32>
    %cst_107 = arith.constant 1.000000e+00 : f32
    %399 = vector.broadcast %cst_107 : f32 to vector<4x17xf32>
    %400 = arith.subf %399, %392 : vector<4x17xf32>
    %401 = arith.mulf %400, %398 : vector<4x17xf32>
    %402 = arith.mulf %392, %339 : vector<4x17xf32>
    %403 = arith.addf %401, %402 : vector<4x17xf32>
    %c5_108 = arith.constant 5 : index
    %c0_109 = arith.constant 0 : index
    %c0_110 = arith.constant 0 : index
    %404 = vector.load %arg6[%c5_108, %c0_109, %c0_110] : memref<8x4x17xf32, #tpu.memory_space<vmem>>, vector<1x4x17xf32>
    %405 = vector.shape_cast %404 : vector<1x4x17xf32> to vector<4x17xf32>
    %406 = vector.shape_cast %374 : vector<4x17xf32> to vector<1x4x17xf32>
    tpu.vector_store %arg6[%c5_108, %c0_109, %c0_110], %406 {strides = array<i32>} : memref<8x4x17xf32, #tpu.memory_space<vmem>>, vector<1x4x17xf32>,
    %c2_111 = arith.constant 2 : index
    %c0_112 = arith.constant 0 : index
    %c0_113 = arith.constant 0 : index
    %407 = vector.load %arg7[%c2_111, %c0_112, %c0_113] : memref<8x4x17xf32, #tpu.memory_space<vmem>>, vector<1x4x17xf32>
    %408 = vector.shape_cast %407 : vector<1x4x17xf32> to vector<4x17xf32>
    %409 = vector.shape_cast %403 : vector<4x17xf32> to vector<1x4x17xf32>
    tpu.vector_store %arg7[%c2_111, %c0_112, %c0_113], %409 {strides = array<i32>} : memref<8x4x17xf32, #tpu.memory_space<vmem>>, vector<1x4x17xf32>,
    %c24_114 = arith.constant 24 : index
    %c0_115 = arith.constant 0 : index
    %410 = vector.load %arg9[%c24_114, %c0_115] : memref<32x768xf32, #tpu.memory_space<vmem>>, vector<4x384xf32>
    %cst_116 = arith.constant dense<0.000000e+00> : vector<4x384xf32>
    %411 = tpu.matmul %374, %15, %cst_116 {dimension_numbers = #tpu.dot_dimension_numbers<[1], [0], [0], [1], [0, 0, 1, 1], [], []>} : vector<4x17xf32>, vector<17x384xf32>, vector<4x384xf32> -> vector<4x384xf32>
    %412 = vector.extract_strided_slice %410 {offsets = [0, 0], sizes = [4, 17], strides = [1, 1]} : vector<4x384xf32> to vector<4x17xf32>
    %413 = vector.extract_strided_slice %411 {offsets = [0, 0], sizes = [4, 17], strides = [1, 1]} : vector<4x384xf32> to vector<4x17xf32>
    %414 = arith.addf %412, %413 : vector<4x17xf32>
    %415 = arith.negf %414 : vector<4x17xf32>
    %416 = math.exp %415 : vector<4x17xf32>
    %cst_117 = arith.constant 1.000000e+00 : f32
    %417 = vector.broadcast %cst_117 : f32 to vector<4x17xf32>
    %418 = arith.addf %417, %416 : vector<4x17xf32>
    %419 = arith.divf %417, %418 : vector<4x17xf32>
    %420 = vector.extract_strided_slice %410 {offsets = [0, 128], sizes = [4, 17], strides = [1, 1]} : vector<4x384xf32> to vector<4x17xf32>
    %421 = vector.extract_strided_slice %411 {offsets = [0, 128], sizes = [4, 17], strides = [1, 1]} : vector<4x384xf32> to vector<4x17xf32>
    %422 = arith.addf %420, %421 : vector<4x17xf32>
    %423 = arith.negf %422 : vector<4x17xf32>
    %424 = math.exp %423 : vector<4x17xf32>
    %cst_118 = arith.constant 1.000000e+00 : f32
    %425 = vector.broadcast %cst_118 : f32 to vector<4x17xf32>
    %426 = arith.addf %425, %424 : vector<4x17xf32>
    %427 = arith.divf %425, %426 : vector<4x17xf32>
    %428 = vector.extract_strided_slice %410 {offsets = [0, 256], sizes = [4, 17], strides = [1, 1]} : vector<4x384xf32> to vector<4x17xf32>
    %429 = vector.extract_strided_slice %411 {offsets = [0, 256], sizes = [4, 17], strides = [1, 1]} : vector<4x384xf32> to vector<4x17xf32>
    %430 = arith.addf %429, %20 : vector<4x17xf32>
    %431 = arith.mulf %419, %430 : vector<4x17xf32>
    %432 = arith.addf %428, %431 : vector<4x17xf32>
    %433 = math.tanh %432 : vector<4x17xf32>
    %cst_119 = arith.constant 1.000000e+00 : f32
    %434 = vector.broadcast %cst_119 : f32 to vector<4x17xf32>
    %435 = arith.subf %434, %427 : vector<4x17xf32>
    %436 = arith.mulf %435, %433 : vector<4x17xf32>
    %437 = arith.mulf %427, %374 : vector<4x17xf32>
    %438 = arith.addf %436, %437 : vector<4x17xf32>
    %c4_120 = arith.constant 4 : index
    %c384_121 = arith.constant 384 : index
    %439 = vector.load %arg9[%c4_120, %c384_121] : memref<32x768xf32, #tpu.memory_space<vmem>>, vector<4x384xf32>
    %cst_122 = arith.constant dense<0.000000e+00> : vector<4x384xf32>
    %440 = tpu.matmul %403, %17, %cst_122 {dimension_numbers = #tpu.dot_dimension_numbers<[1], [0], [0], [1], [0, 0, 1, 1], [], []>} : vector<4x17xf32>, vector<17x384xf32>, vector<4x384xf32> -> vector<4x384xf32>
    %441 = vector.extract_strided_slice %439 {offsets = [0, 0], sizes = [4, 17], strides = [1, 1]} : vector<4x384xf32> to vector<4x17xf32>
    %442 = vector.extract_strided_slice %440 {offsets = [0, 0], sizes = [4, 17], strides = [1, 1]} : vector<4x384xf32> to vector<4x17xf32>
    %443 = arith.addf %441, %442 : vector<4x17xf32>
    %444 = arith.negf %443 : vector<4x17xf32>
    %445 = math.exp %444 : vector<4x17xf32>
    %cst_123 = arith.constant 1.000000e+00 : f32
    %446 = vector.broadcast %cst_123 : f32 to vector<4x17xf32>
    %447 = arith.addf %446, %445 : vector<4x17xf32>
    %448 = arith.divf %446, %447 : vector<4x17xf32>
    %449 = vector.extract_strided_slice %439 {offsets = [0, 128], sizes = [4, 17], strides = [1, 1]} : vector<4x384xf32> to vector<4x17xf32>
    %450 = vector.extract_strided_slice %440 {offsets = [0, 128], sizes = [4, 17], strides = [1, 1]} : vector<4x384xf32> to vector<4x17xf32>
    %451 = arith.addf %449, %450 : vector<4x17xf32>
    %452 = arith.negf %451 : vector<4x17xf32>
    %453 = math.exp %452 : vector<4x17xf32>
    %cst_124 = arith.constant 1.000000e+00 : f32
    %454 = vector.broadcast %cst_124 : f32 to vector<4x17xf32>
    %455 = arith.addf %454, %453 : vector<4x17xf32>
    %456 = arith.divf %454, %455 : vector<4x17xf32>
    %457 = vector.extract_strided_slice %439 {offsets = [0, 256], sizes = [4, 17], strides = [1, 1]} : vector<4x384xf32> to vector<4x17xf32>
    %458 = vector.extract_strided_slice %440 {offsets = [0, 256], sizes = [4, 17], strides = [1, 1]} : vector<4x384xf32> to vector<4x17xf32>
    %459 = arith.addf %458, %23 : vector<4x17xf32>
    %460 = arith.mulf %448, %459 : vector<4x17xf32>
    %461 = arith.addf %457, %460 : vector<4x17xf32>
    %462 = math.tanh %461 : vector<4x17xf32>
    %cst_125 = arith.constant 1.000000e+00 : f32
    %463 = vector.broadcast %cst_125 : f32 to vector<4x17xf32>
    %464 = arith.subf %463, %456 : vector<4x17xf32>
    %465 = arith.mulf %464, %462 : vector<4x17xf32>
    %466 = arith.mulf %456, %403 : vector<4x17xf32>
    %467 = arith.addf %465, %466 : vector<4x17xf32>
    %c6_126 = arith.constant 6 : index
    %c0_127 = arith.constant 0 : index
    %c0_128 = arith.constant 0 : index
    %468 = vector.load %arg6[%c6_126, %c0_127, %c0_128] : memref<8x4x17xf32, #tpu.memory_space<vmem>>, vector<1x4x17xf32>
    %469 = vector.shape_cast %468 : vector<1x4x17xf32> to vector<4x17xf32>
    %470 = vector.shape_cast %438 : vector<4x17xf32> to vector<1x4x17xf32>
    tpu.vector_store %arg6[%c6_126, %c0_127, %c0_128], %470 {strides = array<i32>} : memref<8x4x17xf32, #tpu.memory_space<vmem>>, vector<1x4x17xf32>,
    %c1_129 = arith.constant 1 : index
    %c0_130 = arith.constant 0 : index
    %c0_131 = arith.constant 0 : index
    %471 = vector.load %arg7[%c1_129, %c0_130, %c0_131] : memref<8x4x17xf32, #tpu.memory_space<vmem>>, vector<1x4x17xf32>
    %472 = vector.shape_cast %471 : vector<1x4x17xf32> to vector<4x17xf32>
    %473 = vector.shape_cast %467 : vector<4x17xf32> to vector<1x4x17xf32>
    tpu.vector_store %arg7[%c1_129, %c0_130, %c0_131], %473 {strides = array<i32>} : memref<8x4x17xf32, #tpu.memory_space<vmem>>, vector<1x4x17xf32>,
    %c28_132 = arith.constant 28 : index
    %c0_133 = arith.constant 0 : index
    %474 = vector.load %arg9[%c28_132, %c0_133] : memref<32x768xf32, #tpu.memory_space<vmem>>, vector<4x384xf32>
    %cst_134 = arith.constant dense<0.000000e+00> : vector<4x384xf32>
    %475 = tpu.matmul %438, %15, %cst_134 {dimension_numbers = #tpu.dot_dimension_numbers<[1], [0], [0], [1], [0, 0, 1, 1], [], []>} : vector<4x17xf32>, vector<17x384xf32>, vector<4x384xf32> -> vector<4x384xf32>
    %476 = vector.extract_strided_slice %474 {offsets = [0, 0], sizes = [4, 17], strides = [1, 1]} : vector<4x384xf32> to vector<4x17xf32>
    %477 = vector.extract_strided_slice %475 {offsets = [0, 0], sizes = [4, 17], strides = [1, 1]} : vector<4x384xf32> to vector<4x17xf32>
    %478 = arith.addf %476, %477 : vector<4x17xf32>
    %479 = arith.negf %478 : vector<4x17xf32>
    %480 = math.exp %479 : vector<4x17xf32>
    %cst_135 = arith.constant 1.000000e+00 : f32
    %481 = vector.broadcast %cst_135 : f32 to vector<4x17xf32>
    %482 = arith.addf %481, %480 : vector<4x17xf32>
    %483 = arith.divf %481, %482 : vector<4x17xf32>
    %484 = vector.extract_strided_slice %474 {offsets = [0, 128], sizes = [4, 17], strides = [1, 1]} : vector<4x384xf32> to vector<4x17xf32>
    %485 = vector.extract_strided_slice %475 {offsets = [0, 128], sizes = [4, 17], strides = [1, 1]} : vector<4x384xf32> to vector<4x17xf32>
    %486 = arith.addf %484, %485 : vector<4x17xf32>
    %487 = arith.negf %486 : vector<4x17xf32>
    %488 = math.exp %487 : vector<4x17xf32>
    %cst_136 = arith.constant 1.000000e+00 : f32
    %489 = vector.broadcast %cst_136 : f32 to vector<4x17xf32>
    %490 = arith.addf %489, %488 : vector<4x17xf32>
    %491 = arith.divf %489, %490 : vector<4x17xf32>
    %492 = vector.extract_strided_slice %474 {offsets = [0, 256], sizes = [4, 17], strides = [1, 1]} : vector<4x384xf32> to vector<4x17xf32>
    %493 = vector.extract_strided_slice %475 {offsets = [0, 256], sizes = [4, 17], strides = [1, 1]} : vector<4x384xf32> to vector<4x17xf32>
    %494 = arith.addf %493, %20 : vector<4x17xf32>
    %495 = arith.mulf %483, %494 : vector<4x17xf32>
    %496 = arith.addf %492, %495 : vector<4x17xf32>
    %497 = math.tanh %496 : vector<4x17xf32>
    %cst_137 = arith.constant 1.000000e+00 : f32
    %498 = vector.broadcast %cst_137 : f32 to vector<4x17xf32>
    %499 = arith.subf %498, %491 : vector<4x17xf32>
    %500 = arith.mulf %499, %497 : vector<4x17xf32>
    %501 = arith.mulf %491, %438 : vector<4x17xf32>
    %502 = arith.addf %500, %501 : vector<4x17xf32>
    %c0_138 = arith.constant 0 : index
    %c384_139 = arith.constant 384 : index
    %503 = vector.load %arg9[%c0_138, %c384_139] : memref<32x768xf32, #tpu.memory_space<vmem>>, vector<4x384xf32>
    %cst_140 = arith.constant dense<0.000000e+00> : vector<4x384xf32>
    %504 = tpu.matmul %467, %17, %cst_140 {dimension_numbers = #tpu.dot_dimension_numbers<[1], [0], [0], [1], [0, 0, 1, 1], [], []>} : vector<4x17xf32>, vector<17x384xf32>, vector<4x384xf32> -> vector<4x384xf32>
    %505 = vector.extract_strided_slice %503 {offsets = [0, 0], sizes = [4, 17], strides = [1, 1]} : vector<4x384xf32> to vector<4x17xf32>
    %506 = vector.extract_strided_slice %504 {offsets = [0, 0], sizes = [4, 17], strides = [1, 1]} : vector<4x384xf32> to vector<4x17xf32>
    %507 = arith.addf %505, %506 : vector<4x17xf32>
    %508 = arith.negf %507 : vector<4x17xf32>
    %509 = math.exp %508 : vector<4x17xf32>
    %cst_141 = arith.constant 1.000000e+00 : f32
    %510 = vector.broadcast %cst_141 : f32 to vector<4x17xf32>
    %511 = arith.addf %510, %509 : vector<4x17xf32>
    %512 = arith.divf %510, %511 : vector<4x17xf32>
    %513 = vector.extract_strided_slice %503 {offsets = [0, 128], sizes = [4, 17], strides = [1, 1]} : vector<4x384xf32> to vector<4x17xf32>
    %514 = vector.extract_strided_slice %504 {offsets = [0, 128], sizes = [4, 17], strides = [1, 1]} : vector<4x384xf32> to vector<4x17xf32>
    %515 = arith.addf %513, %514 : vector<4x17xf32>
    %516 = arith.negf %515 : vector<4x17xf32>
    %517 = math.exp %516 : vector<4x17xf32>
    %cst_142 = arith.constant 1.000000e+00 : f32
    %518 = vector.broadcast %cst_142 : f32 to vector<4x17xf32>
    %519 = arith.addf %518, %517 : vector<4x17xf32>
    %520 = arith.divf %518, %519 : vector<4x17xf32>
    %521 = vector.extract_strided_slice %503 {offsets = [0, 256], sizes = [4, 17], strides = [1, 1]} : vector<4x384xf32> to vector<4x17xf32>
    %522 = vector.extract_strided_slice %504 {offsets = [0, 256], sizes = [4, 17], strides = [1, 1]} : vector<4x384xf32> to vector<4x17xf32>
    %523 = arith.addf %522, %23 : vector<4x17xf32>
    %524 = arith.mulf %512, %523 : vector<4x17xf32>
    %525 = arith.addf %521, %524 : vector<4x17xf32>
    %526 = math.tanh %525 : vector<4x17xf32>
    %cst_143 = arith.constant 1.000000e+00 : f32
    %527 = vector.broadcast %cst_143 : f32 to vector<4x17xf32>
    %528 = arith.subf %527, %520 : vector<4x17xf32>
    %529 = arith.mulf %528, %526 : vector<4x17xf32>
    %530 = arith.mulf %520, %467 : vector<4x17xf32>
    %531 = arith.addf %529, %530 : vector<4x17xf32>
    %c7_144 = arith.constant 7 : index
    %c0_145 = arith.constant 0 : index
    %c0_146 = arith.constant 0 : index
    %532 = vector.load %arg6[%c7_144, %c0_145, %c0_146] : memref<8x4x17xf32, #tpu.memory_space<vmem>>, vector<1x4x17xf32>
    %533 = vector.shape_cast %532 : vector<1x4x17xf32> to vector<4x17xf32>
    %534 = vector.shape_cast %502 : vector<4x17xf32> to vector<1x4x17xf32>
    tpu.vector_store %arg6[%c7_144, %c0_145, %c0_146], %534 {strides = array<i32>} : memref<8x4x17xf32, #tpu.memory_space<vmem>>, vector<1x4x17xf32>,
    %c0_147 = arith.constant 0 : index
    %c0_148 = arith.constant 0 : index
    %c0_149 = arith.constant 0 : index
    %535 = vector.load %arg7[%c0_147, %c0_148, %c0_149] : memref<8x4x17xf32, #tpu.memory_space<vmem>>, vector<1x4x17xf32>
    %536 = vector.shape_cast %535 : vector<1x4x17xf32> to vector<4x17xf32>
    %537 = vector.shape_cast %531 : vector<4x17xf32> to vector<1x4x17xf32>
    tpu.vector_store %arg7[%c0_147, %c0_148, %c0_149], %537 {strides = array<i32>} : memref<8x4x17xf32, #tpu.memory_space<vmem>>, vector<1x4x17xf32>,
    %538 = tpu.concatenate %502, %531 in 1 : vector<4x17xf32>, vector<4x17xf32> -> vector<4x34xf32>
    %c0_150 = arith.constant 0 : index
    %c0_151 = arith.constant 0 : index
    %539 = vector.load %arg5[%c0_150, %c0_151] : memref<34x19xf32, #tpu.memory_space<vmem>>, vector<34x19xf32>
    %cst_152 = arith.constant dense<0.000000e+00> : vector<4x19xf32>
    %540 = tpu.matmul %538, %539, %cst_152 {dimension_numbers = #tpu.dot_dimension_numbers<[1], [0], [0], [1], [0, 0, 1, 1], [], []>} : vector<4x34xf32>, vector<34x19xf32>, vector<4x19xf32> -> vector<4x19xf32>
    %c0_153 = arith.constant 0 : index
    %c1024 = arith.constant 1024 : index
    %541 = vector.load %arg4[%c0_153, %c1024] : memref<1x1152xf32, #tpu.memory_space<vmem>>, vector<1x19xf32>
    %542 = vector.broadcast %541 : vector<1x19xf32> to vector<4x19xf32>
    %543 = arith.addf %540, %542 : vector<4x19xf32>
    %544 = math.tanh %543 : vector<4x19xf32>
    %c0_154 = arith.constant 0 : index
    %c0_155 = arith.constant 0 : index
    %545 = vector.load %arg8[%c0_154, %c0_155] : memref<4x19xf32, #tpu.memory_space<vmem>>, vector<4x19xf32>
    tpu.vector_store %arg8[%c0_154, %c0_155], %544 {strides = array<i32>} : memref<4x19xf32, #tpu.memory_space<vmem>>, vector<4x19xf32>,
    return
  }
}

</mosaic_0001>

<llo_original>
// kernel: encoder_forward.1
$region0: #{encoder_forward.1}
  #allocation0 [shape = 'u32[]', space=smem, size = 0x4, offset = 0x4, fixed_abs, tag = 'smem constant byte address 0x4 - core index']
  #allocation1 [shape = 'u32[72,128]{1,0:T(1,128)}', space=vmem, size = 0x9000, scoped, tag = 'internal scratch']
  #allocation2 [shape = 'f32[32,768]{1,0:T(8,128)}', space=vmem, size = 0x18000, scoped, tag = 'scratch operand']
  %s0 = inlined_call_operand.vmem [shape: s32[32,1], index: 0, kind: input, shape index: {}]
  %s1 = inlined_call_operand.vmem [shape: f32[29,16], index: 1, kind: input, shape index: {}]
  %s2 = inlined_call_operand.vmem [shape: f32[16,768], index: 2, kind: input, shape index: {}]
  %s3 = inlined_call_operand.vmem [shape: f32[2,17,384], index: 3, kind: input, shape index: {}]
  %s4 = inlined_call_operand.vmem [shape: f32[1,1152], index: 4, kind: input, shape index: {}]
  %s5 = inlined_call_operand.vmem [shape: f32[34,19], index: 5, kind: input, shape index: {}]
  %s6 = inlined_call_operand.vmem [shape: f32[8,4,17], index: 6, kind: output, shape index: {0}]
  %s7 = inlined_call_operand.vmem [shape: f32[8,4,17], index: 7, kind: output, shape index: {1}]
  %s8 = inlined_call_operand.hbm [shape: f32[4,19], index: 8, kind: output, shape index: {2}]
  %9 = xla_tuple %s6, %s7, %s8
  %s10 = sld [smem:[#allocation0]]
  $region50: #{encoder_forward.1} parent=0
    _
  %s12 = ssub.s32 1, %s10
  %s13 = scalar_select 0, %s12, %s10
  $region1: #{encoder_forward.1} parent=0
    #allocation3 [shape = 'u8[2048]{0}', space=vmem, size = 0x800, scoped, tag = 'output window, operand 2, single buffered']
    #allocation4 [shape = 's32[1]{0}', space=sflag, size = 0x4, scoped, tag = 'scoped memory for encoder_forward.1']
    %14 = vsyncpa [#allocation4], 0
    // Predicated region
    $region2: #{encoder_forward.1} parent=1 // pred_check
      _
    $region3: #{encoder_forward.1} parent=1 // pred_check_branch
      %16 = sbr.rel (0) target = $region5
    $region4: #{encoder_forward.1} parent=1 // pred_region
      _
    $region5: #{encoder_forward.1} parent=1 // pred_fallthru
      _
    // Predicated region
    $region6: #{encoder_forward.1} parent=1 // pred_check
      _
    $region7: #{encoder_forward.1} parent=1 // pred_check_branch
      %18 = sbr.rel (0) target = $region9
    $region8: #{encoder_forward.1} parent=1 // pred_region
      _
    $region9: #{encoder_forward.1} parent=1 // pred_fallthru
      _
    // Predicated region
    $region10: #{encoder_forward.1} parent=1 // pred_check
      _
    $region11: #{encoder_forward.1} parent=1 // pred_check_branch
      %20 = sbr.rel (0) target = $region13
    $region12: #{encoder_forward.1} parent=1 // pred_region
      _
    $region13: #{encoder_forward.1} parent=1 // pred_fallthru
      _
    // Predicated region
    $region14: #{encoder_forward.1} parent=1 // pred_check
      _
    $region15: #{encoder_forward.1} parent=1 // pred_check_branch
      %22 = sbr.rel (0) target = $region17
    $region16: #{encoder_forward.1} parent=1 // pred_region
      _
    $region17: #{encoder_forward.1} parent=1 // pred_fallthru
      _
    // Predicated region
    $region18: #{encoder_forward.1} parent=1 // pred_check
      _
    $region19: #{encoder_forward.1} parent=1 // pred_check_branch
      %24 = sbr.rel (0) target = $region21
    $region20: #{encoder_forward.1} parent=1 // pred_region
      _
    $region21: #{encoder_forward.1} parent=1 // pred_fallthru
      _
    // Predicated region
    $region22: #{encoder_forward.1} parent=1 // pred_check
      _
    $region23: #{encoder_forward.1} parent=1 // pred_check_branch
      %26 = sbr.rel (0) target = $region25
    $region24: #{encoder_forward.1} parent=1 // pred_region
      _
    $region25: #{encoder_forward.1} parent=1 // pred_fallthru
      _
    %v27 = vld [vmem:[%s0] sm:$0xff]
    %v28 = vld [vmem:[%s0 + $0x8] sm:$0xff]
    %v29 = vld [vmem:[%s0 + $0x10] sm:$0xff]
    %v30 = vld [vmem:[%s0 + $0x18] sm:$0xff]
    %v31 = vlaneseq
    %v32 = vand.u32 %v31, 127
    %33 = vset.pattern.permute.xlu0 0
    %34 = vperm.xlu0 %33, %v27
    %v35 = vpop.permute.xlu0 %34
    %36 = vset.pattern.permute.xlu0 0
    %37 = vperm.xlu0 %36, %v28
    %v38 = vpop.permute.xlu0 %37
    %39 = vset.pattern.permute.xlu0 0
    %40 = vperm.xlu0 %39, %v29
    %v41 = vpop.permute.xlu0 %40
    %42 = vset.pattern.permute.xlu0 0
    %43 = vperm.xlu0 %42, %v30
    %v44 = vpop.permute.xlu0 %43
    %vm45 = vcmp.eq.s32.totalorder %v35, %v32
    %vm46 = vcmp.eq.s32.totalorder %v38, %v32
    %vm47 = vcmp.eq.s32.totalorder %v41, %v32
    %vm48 = vcmp.eq.s32.totalorder %v44, %v32
    %v49 = vsel %vm45, 1, 0
    %v50 = vsel %vm46, 1, 0
    %v51 = vsel %vm47, 1, 0
    %v52 = vsel %vm48, 1, 0
    %v53 = vcvt.s32.f32 %v49
    %v54 = vcvt.s32.f32 %v50
    %v55 = vcvt.s32.f32 %v51
    %v56 = vcvt.s32.f32 %v52
    %v57 = vld [vmem:[%s1] sm:$0xff]
    %v58 = vld [vmem:[%s1 + $0x8] sm:$0xff]
    %v59 = vld [vmem:[%s1 + $0x10] sm:$0xff]
    %v60 = vld [vmem:[%s1 + $0x18] sm:$0x1f]
    %vm61 = vcmask 236544
    %v63 = vsel %vm61, %v53, 0
    %v66 = vsel %vm61, %v54, 0
    %v69 = vsel %vm61, %v55, 0
    %v72 = vsel %vm61, %v56, 0
    %vm74 = vcmask 1044480
    %v76 = vsel %vm74, %v60, 0
    %78 = vmatpush.msra.mxu0 0.0
    %79 = vmatpush.msra.mxu0 0.0
    %80 = vmatpush.msra.mxu0 0.0
    %81 = vmatpush.msra.mxu0 0.0
    %82 = vmatpush.msra.mxu0 0.0
    %83 = vmatpush.msra.mxu0 0.0
    %84 = vmatpush.msra.mxu0 0.0
    %85 = vmatpush.msra.mxu0 0.0
    %86 = vmatpush.msra.mxu0 0.0
    %87 = vmatpush.msra.mxu0 0.0
    %88 = vmatpush.msra.mxu0 0.0
    %89 = vmatpush.msra.mxu0 0.0
    %v90 = vand.u32 %v76, 4294901760
    %91 = vmatpush.msra.mxu0 %v90
    %v92 = vand.u32 %v59, 4294901760
    %93 = vmatpush.msra.mxu0 %v92
    %v94 = vand.u32 %v58, 4294901760
    %95 = vmatpush.msra.mxu0 %v94
    %v96 = vand.u32 %v57, 4294901760
    %97 = vmatpush.msra.mxu0 %v96
    %v98 = vand.u32 %v63, 4294901760
    %v99 = vsub.f32 %v63, %v98
    %v100 = vand.u32 %v99, 4294901760
    %v101 = vsub.f32 %v99, %v100
    %v102 = vand.u32 %v101, 4294901760
    %103 = vmatmul.f32.gmra.mxu0 %v102
    %v104 = vpop.f32.mrf.mxu0
    %v105 = vadd.f32 0.0, %v104
    %v106 = vand.u32 %v66, 4294901760
    %v107 = vsub.f32 %v66, %v106
    %v108 = vand.u32 %v107, 4294901760
    %v109 = vsub.f32 %v107, %v108
    %v110 = vand.u32 %v109, 4294901760
    %111 = vmatmul.f32.gmra.mxu0 %v110
    %v112 = vpop.f32.mrf.mxu0
    %v113 = vadd.f32 0.0, %v112
    %v114 = vand.u32 %v69, 4294901760
    %v115 = vsub.f32 %v69, %v114
    %v116 = vand.u32 %v115, 4294901760
    %v117 = vsub.f32 %v115, %v116
    %v118 = vand.u32 %v117, 4294901760
    %119 = vmatmul.f32.gmra.mxu0 %v118
    %v120 = vpop.f32.mrf.mxu0
    %v121 = vadd.f32 0.0, %v120
    %v122 = vand.u32 %v72, 4294901760
    %v123 = vsub.f32 %v72, %v122
    %v124 = vand.u32 %v123, 4294901760
    %v125 = vsub.f32 %v123, %v124
    %v126 = vand.u32 %v125, 4294901760
    %127 = vmatmul.f32.gmra.mxu0 %v126
    %v128 = vpop.f32.mrf.mxu0
    %v129 = vadd.f32 0.0, %v128
    %130 = vdwg.mxu0
    %131 = vmatpush.msra.mxu0 0.0
    %132 = vmatpush.msra.mxu0 0.0
    %133 = vmatpush.msra.mxu0 0.0
    %134 = vmatpush.msra.mxu0 0.0
    %135 = vmatpush.msra.mxu0 0.0
    %136 = vmatpush.msra.mxu0 0.0
    %137 = vmatpush.msra.mxu0 0.0
    %138 = vmatpush.msra.mxu0 0.0
    %139 = vmatpush.msra.mxu0 0.0
    %140 = vmatpush.msra.mxu0 0.0
    %141 = vmatpush.msra.mxu0 0.0
    %142 = vmatpush.msra.mxu0 0.0
    %v143 = vand.u32 %v76, 4294901760
    %v144 = vsub.f32 %v76, %v143
    %v145 = vand.u32 %v144, 4294901760
    %v146 = vsub.f32 %v144, %v145
    %v147 = vand.u32 %v146, 4294901760
    %148 = vmatpush.msra.mxu0 %v147
    %v149 = vand.u32 %v59, 4294901760
    %v150 = vsub.f32 %v59, %v149
    %v151 = vand.u32 %v150, 4294901760
    %v152 = vsub.f32 %v150, %v151
    %v153 = vand.u32 %v152, 4294901760
    %154 = vmatpush.msra.mxu0 %v153
    %v155 = vand.u32 %v58, 4294901760
    %v156 = vsub.f32 %v58, %v155
    %v157 = vand.u32 %v156, 4294901760
    %v158 = vsub.f32 %v156, %v157
    %v159 = vand.u32 %v158, 4294901760
    %160 = vmatpush.msra.mxu0 %v159
    %v161 = vand.u32 %v57, 4294901760
    %v162 = vsub.f32 %v57, %v161
    %v163 = vand.u32 %v162, 4294901760
    %v164 = vsub.f32 %v162, %v163
    %v165 = vand.u32 %v164, 4294901760
    %166 = vmatpush.msra.mxu0 %v165
    %v167 = vand.u32 %v63, 4294901760
    %168 = vmatmul.f32.gmra.mxu0 %v167
    %v169 = vpop.f32.mrf.mxu0
    %v170 = vadd.f32 %v105, %v169
    %v171 = vand.u32 %v66, 4294901760
    %172 = vmatmul.f32.gmra.mxu0 %v171
    %v173 = vpop.f32.mrf.mxu0
    %v174 = vadd.f32 %v113, %v173
    %v175 = vand.u32 %v69, 4294901760
    %176 = vmatmul.f32.gmra.mxu0 %v175
    %v177 = vpop.f32.mrf.mxu0
    %v178 = vadd.f32 %v121, %v177
    %v179 = vand.u32 %v72, 4294901760
    %180 = vmatmul.f32.gmra.mxu0 %v179
    %v181 = vpop.f32.mrf.mxu0
    %v182 = vadd.f32 %v129, %v181
    %183 = vdwg.mxu0
    %184 = vmatpush.msra.mxu0 0.0
    %185 = vmatpush.msra.mxu0 0.0
    %186 = vmatpush.msra.mxu0 0.0
    %187 = vmatpush.msra.mxu0 0.0
    %188 = vmatpush.msra.mxu0 0.0
    %189 = vmatpush.msra.mxu0 0.0
    %190 = vmatpush.msra.mxu0 0.0
    %191 = vmatpush.msra.mxu0 0.0
    %192 = vmatpush.msra.mxu0 0.0
    %193 = vmatpush.msra.mxu0 0.0
    %194 = vmatpush.msra.mxu0 0.0
    %195 = vmatpush.msra.mxu0 0.0
    %v196 = vand.u32 %v76, 4294901760
    %v197 = vsub.f32 %v76, %v196
    %198 = vmatpush.msra.mxu0 %v197
    %v199 = vand.u32 %v59, 4294901760
    %v200 = vsub.f32 %v59, %v199
    %201 = vmatpush.msra.mxu0 %v200
    %v202 = vand.u32 %v58, 4294901760
    %v203 = vsub.f32 %v58, %v202
    %204 = vmatpush.msra.mxu0 %v203
    %v205 = vand.u32 %v57, 4294901760
    %v206 = vsub.f32 %v57, %v205
    %207 = vmatpush.msra.mxu0 %v206
    %v208 = vand.u32 %v63, 4294901760
    %v209 = vsub.f32 %v63, %v208
    %210 = vmatmul.f32.gmra.mxu0 %v209
    %v211 = vpop.f32.mrf.mxu0
    %v212 = vadd.f32 %v170, %v211
    %v213 = vand.u32 %v66, 4294901760
    %v214 = vsub.f32 %v66, %v213
    %215 = vmatmul.f32.gmra.mxu0 %v214
    %v216 = vpop.f32.mrf.mxu0
    %v217 = vadd.f32 %v174, %v216
    %v218 = vand.u32 %v69, 4294901760
    %v219 = vsub.f32 %v69, %v218
    %220 = vmatmul.f32.gmra.mxu0 %v219
    %v221 = vpop.f32.mrf.mxu0
    %v222 = vadd.f32 %v178, %v221
    %v223 = vand.u32 %v72, 4294901760
    %v224 = vsub.f32 %v72, %v223
    %225 = vmatmul.f32.gmra.mxu0 %v224
    %v226 = vpop.f32.mrf.mxu0
    %v227 = vadd.f32 %v182, %v226
    %228 = vdwg.mxu0
    %229 = vmatpush.msra.mxu0 0.0
    %230 = vmatpush.msra.mxu0 0.0
    %231 = vmatpush.msra.mxu0 0.0
    %232 = vmatpush.msra.mxu0 0.0
    %233 = vmatpush.msra.mxu0 0.0
    %234 = vmatpush.msra.mxu0 0.0
    %235 = vmatpush.msra.mxu0 0.0
    %236 = vmatpush.msra.mxu0 0.0
    %237 = vmatpush.msra.mxu0 0.0
    %238 = vmatpush.msra.mxu0 0.0
    %239 = vmatpush.msra.mxu0 0.0
    %240 = vmatpush.msra.mxu0 0.0
    %v241 = vand.u32 %v76, 4294901760
    %242 = vmatpush.msra.mxu0 %v241
    %v243 = vand.u32 %v59, 4294901760
    %244 = vmatpush.msra.mxu0 %v243
    %v245 = vand.u32 %v58, 4294901760
    %246 = vmatpush.msra.mxu0 %v245
    %v247 = vand.u32 %v57, 4294901760
    %248 = vmatpush.msra.mxu0 %v247
    %v249 = vand.u32 %v63, 4294901760
    %v250 = vsub.f32 %v63, %v249
    %v251 = vand.u32 %v250, 4294901760
    %252 = vmatmul.f32.gmra.mxu0 %v251
    %v253 = vpop.f32.mrf.mxu0
    %v254 = vadd.f32 %v212, %v253
    %v255 = vand.u32 %v66, 4294901760
    %v256 = vsub.f32 %v66, %v255
    %v257 = vand.u32 %v256, 4294901760
    %258 = vmatmul.f32.gmra.mxu0 %v257
    %v259 = vpop.f32.mrf.mxu0
    %v260 = vadd.f32 %v217, %v259
    %v261 = vand.u32 %v69, 4294901760
    %v262 = vsub.f32 %v69, %v261
    %v263 = vand.u32 %v262, 4294901760
    %264 = vmatmul.f32.gmra.mxu0 %v263
    %v265 = vpop.f32.mrf.mxu0
    %v266 = vadd.f32 %v222, %v265
    %v267 = vand.u32 %v72, 4294901760
    %v268 = vsub.f32 %v72, %v267
    %v269 = vand.u32 %v268, 4294901760
    %270 = vmatmul.f32.gmra.mxu0 %v269
    %v271 = vpop.f32.mrf.mxu0
    %v272 = vadd.f32 %v227, %v271
    %273 = vdwg.mxu0
    %274 = vmatpush.msra.mxu0 0.0
    %275 = vmatpush.msra.mxu0 0.0
    %276 = vmatpush.msra.mxu0 0.0
    %277 = vmatpush.msra.mxu0 0.0
    %278 = vmatpush.msra.mxu0 0.0
    %279 = vmatpush.msra.mxu0 0.0
    %280 = vmatpush.msra.mxu0 0.0
    %281 = vmatpush.msra.mxu0 0.0
    %282 = vmatpush.msra.mxu0 0.0
    %283 = vmatpush.msra.mxu0 0.0
    %284 = vmatpush.msra.mxu0 0.0
    %285 = vmatpush.msra.mxu0 0.0
    %v286 = vand.u32 %v76, 4294901760
    %v287 = vsub.f32 %v76, %v286
    %v288 = vand.u32 %v287, 4294901760
    %289 = vmatpush.msra.mxu0 %v288
    %v290 = vand.u32 %v59, 4294901760
    %v291 = vsub.f32 %v59, %v290
    %v292 = vand.u32 %v291, 4294901760
    %293 = vmatpush.msra.mxu0 %v292
    %v294 = vand.u32 %v58, 4294901760
    %v295 = vsub.f32 %v58, %v294
    %v296 = vand.u32 %v295, 4294901760
    %297 = vmatpush.msra.mxu0 %v296
    %v298 = vand.u32 %v57, 4294901760
    %v299 = vsub.f32 %v57, %v298
    %v300 = vand.u32 %v299, 4294901760
    %301 = vmatpush.msra.mxu0 %v300
    %v302 = vand.u32 %v63, 4294901760
    %303 = vmatmul.f32.gmra.mxu0 %v302
    %v304 = vpop.f32.mrf.mxu0
    %v305 = vadd.f32 %v254, %v304
    %v306 = vand.u32 %v66, 4294901760
    %307 = vmatmul.f32.gmra.mxu0 %v306
    %v308 = vpop.f32.mrf.mxu0
    %v309 = vadd.f32 %v260, %v308
    %v310 = vand.u32 %v69, 4294901760
    %311 = vmatmul.f32.gmra.mxu0 %v310
    %v312 = vpop.f32.mrf.mxu0
    %v313 = vadd.f32 %v266, %v312
    %v314 = vand.u32 %v72, 4294901760
    %315 = vmatmul.f32.gmra.mxu0 %v314
    %v316 = vpop.f32.mrf.mxu0
    %v317 = vadd.f32 %v272, %v316
    %318 = vdwg.mxu0
    %319 = vmatpush.msra.mxu0 0.0
    %320 = vmatpush.msra.mxu0 0.0
    %321 = vmatpush.msra.mxu0 0.0
    %322 = vmatpush.msra.mxu0 0.0
    %323 = vmatpush.msra.mxu0 0.0
    %324 = vmatpush.msra.mxu0 0.0
    %325 = vmatpush.msra.mxu0 0.0
    %326 = vmatpush.msra.mxu0 0.0
    %327 = vmatpush.msra.mxu0 0.0
    %328 = vmatpush.msra.mxu0 0.0
    %329 = vmatpush.msra.mxu0 0.0
    %330 = vmatpush.msra.mxu0 0.0
    %v331 = vand.u32 %v76, 4294901760
    %332 = vmatpush.msra.mxu0 %v331
    %v333 = vand.u32 %v59, 4294901760
    %334 = vmatpush.msra.mxu0 %v333
    %v335 = vand.u32 %v58, 4294901760
    %336 = vmatpush.msra.mxu0 %v335
    %v337 = vand.u32 %v57, 4294901760
    %338 = vmatpush.msra.mxu0 %v337
    %v339 = vand.u32 %v63, 4294901760
    %340 = vmatmul.f32.gmra.mxu0 %v339
    %v341 = vpop.f32.mrf.mxu0
    %v342 = vadd.f32 %v305, %v341
    %v343 = vand.u32 %v66, 4294901760
    %344 = vmatmul.f32.gmra.mxu0 %v343
    %v345 = vpop.f32.mrf.mxu0
    %v346 = vadd.f32 %v309, %v345
    %v347 = vand.u32 %v69, 4294901760
    %348 = vmatmul.f32.gmra.mxu0 %v347
    %v349 = vpop.f32.mrf.mxu0
    %v350 = vadd.f32 %v313, %v349
    %v351 = vand.u32 %v72, 4294901760
    %352 = vmatmul.f32.gmra.mxu0 %v351
    %v353 = vpop.f32.mrf.mxu0
    %v354 = vadd.f32 %v317, %v353
    %355 = vdwg.mxu0
    %v356 = vld [vmem:[%s2] sm:$0xff]
    %v357 = vld [vmem:[%s2 + $0x8] sm:$0xff]
    %v358 = vld [vmem:[%s2 + $0x10] sm:$0xff]
    %v359 = vld [vmem:[%s2 + $0x18] sm:$0xff]
    %v360 = vld [vmem:[%s2 + $0x20] sm:$0xff]
    %v361 = vld [vmem:[%s2 + $0x28] sm:$0xff]
    %v362 = vld [vmem:[%s2 + $0x30] sm:$0xff]
    %v363 = vld [vmem:[%s2 + $0x38] sm:$0xff]
    %v364 = vld [vmem:[%s2 + $0x40] sm:$0xff]
    %v365 = vld [vmem:[%s2 + $0x48] sm:$0xff]
    %v366 = vld [vmem:[%s2 + $0x50] sm:$0xff]
    %v367 = vld [vmem:[%s2 + $0x58] sm:$0xff]
    %v368 = vld [vmem:[%s4] sm:$0x3f]
    %v370 = vperm.slane %v368, 0
    %v371 = vperm.slane %v368, 1
    %v372 = vperm.slane %v368, 2
    %v373 = vperm.slane %v368, 3
    %v374 = vperm.slane %v368, 4
    %v375 = vperm.slane %v368, 5
    %vm382 = vcmask 130048
    %v384 = vsel %vm382, %v342, 0
    %v387 = vsel %vm382, %v346, 0
    %v390 = vsel %vm382, %v350, 0
    %v393 = vsel %vm382, %v354, 0
    %395 = vmatpush.msra.mxu0 0.0
    %396 = vmatpush.msra.mxu0 0.0
    %397 = vmatpush.msra.mxu0 0.0
    %398 = vmatpush.msra.mxu0 0.0
    %399 = vmatpush.msra.mxu0 0.0
    %400 = vmatpush.msra.mxu0 0.0
    %401 = vmatpush.msra.mxu0 0.0
    %402 = vmatpush.msra.mxu0 0.0
    %403 = vmatpush.msra.mxu0 0.0
    %404 = vmatpush.msra.mxu0 0.0
    %405 = vmatpush.msra.mxu0 0.0
    %406 = vmatpush.msra.mxu0 0.0
    %407 = vmatpush.msra.mxu0 0.0
    %408 = vmatpush.msra.mxu0 0.0
    %v409 = vand.u32 %v362, 4294901760
    %410 = vmatpush.msra.mxu0 %v409
    %v411 = vand.u32 %v356, 4294901760
    %412 = vmatpush.msra.mxu0 %v411
    %v413 = vand.u32 %v384, 4294901760
    %v414 = vsub.f32 %v384, %v413
    %v415 = vand.u32 %v414, 4294901760
    %v416 = vsub.f32 %v414, %v415
    %v417 = vand.u32 %v416, 4294901760
    %418 = vmatmul.f32.gmra.mxu0 %v417
    %v419 = vpop.f32.mrf.mxu0
    %v420 = vadd.f32 %v370, %v419
    %v421 = vand.u32 %v387, 4294901760
    %v422 = vsub.f32 %v387, %v421
    %v423 = vand.u32 %v422, 4294901760
    %v424 = vsub.f32 %v422, %v423
    %v425 = vand.u32 %v424, 4294901760
    %426 = vmatmul.f32.gmra.mxu0 %v425
    %v427 = vpop.f32.mrf.mxu0
    %v428 = vadd.f32 %v370, %v427
    %v429 = vand.u32 %v390, 4294901760
    %v430 = vsub.f32 %v390, %v429
    %v431 = vand.u32 %v430, 4294901760
    %v432 = vsub.f32 %v430, %v431
    %v433 = vand.u32 %v432, 4294901760
    %434 = vmatmul.f32.gmra.mxu0 %v433
    %v435 = vpop.f32.mrf.mxu0
    %v436 = vadd.f32 %v370, %v435
    %v437 = vand.u32 %v393, 4294901760
    %v438 = vsub.f32 %v393, %v437
    %v439 = vand.u32 %v438, 4294901760
    %v440 = vsub.f32 %v438, %v439
    %v441 = vand.u32 %v440, 4294901760
    %442 = vmatmul.f32.gmra.mxu0 %v441
    %v443 = vpop.f32.mrf.mxu0
    %v444 = vadd.f32 %v370, %v443
    %445 = vdwg.mxu0
    %446 = vmatpush.msra.mxu0 0.0
    %447 = vmatpush.msra.mxu0 0.0
    %448 = vmatpush.msra.mxu0 0.0
    %449 = vmatpush.msra.mxu0 0.0
    %450 = vmatpush.msra.mxu0 0.0
    %451 = vmatpush.msra.mxu0 0.0
    %452 = vmatpush.msra.mxu0 0.0
    %453 = vmatpush.msra.mxu0 0.0
    %454 = vmatpush.msra.mxu0 0.0
    %455 = vmatpush.msra.mxu0 0.0
    %456 = vmatpush.msra.mxu0 0.0
    %457 = vmatpush.msra.mxu0 0.0
    %458 = vmatpush.msra.mxu0 0.0
    %459 = vmatpush.msra.mxu0 0.0
    %v460 = vand.u32 %v362, 4294901760
    %v461 = vsub.f32 %v362, %v460
    %v462 = vand.u32 %v461, 4294901760
    %v463 = vsub.f32 %v461, %v462
    %v464 = vand.u32 %v463, 4294901760
    %465 = vmatpush.msra.mxu0 %v464
    %v466 = vand.u32 %v356, 4294901760
    %v467 = vsub.f32 %v356, %v466
    %v468 = vand.u32 %v467, 4294901760
    %v469 = vsub.f32 %v467, %v468
    %v470 = vand.u32 %v469, 4294901760
    %471 = vmatpush.msra.mxu0 %v470
    %v472 = vand.u32 %v384, 4294901760
    %473 = vmatmul.f32.gmra.mxu0 %v472
    %v474 = vpop.f32.mrf.mxu0
    %v475 = vadd.f32 %v420, %v474
    %v476 = vand.u32 %v387, 4294901760
    %477 = vmatmul.f32.gmra.mxu0 %v476
    %v478 = vpop.f32.mrf.mxu0
    %v479 = vadd.f32 %v428, %v478
    %v480 = vand.u32 %v390, 4294901760
    %481 = vmatmul.f32.gmra.mxu0 %v480
    %v482 = vpop.f32.mrf.mxu0
    %v483 = vadd.f32 %v436, %v482
    %v484 = vand.u32 %v393, 4294901760
    %485 = vmatmul.f32.gmra.mxu0 %v484
    %v486 = vpop.f32.mrf.mxu0
    %v487 = vadd.f32 %v444, %v486
    %488 = vdwg.mxu0
    %489 = vmatpush.msra.mxu0 0.0
    %490 = vmatpush.msra.mxu0 0.0
    %491 = vmatpush.msra.mxu0 0.0
    %492 = vmatpush.msra.mxu0 0.0
    %493 = vmatpush.msra.mxu0 0.0
    %494 = vmatpush.msra.mxu0 0.0
    %495 = vmatpush.msra.mxu0 0.0
    %496 = vmatpush.msra.mxu0 0.0
    %497 = vmatpush.msra.mxu0 0.0
    %498 = vmatpush.msra.mxu0 0.0
    %499 = vmatpush.msra.mxu0 0.0
    %500 = vmatpush.msra.mxu0 0.0
    %501 = vmatpush.msra.mxu0 0.0
    %502 = vmatpush.msra.mxu0 0.0
    %v503 = vand.u32 %v362, 4294901760
    %v504 = vsub.f32 %v362, %v503
    %505 = vmatpush.msra.mxu0 %v504
    %v506 = vand.u32 %v356, 4294901760
    %v507 = vsub.f32 %v356, %v506
    %508 = vmatpush.msra.mxu0 %v507
    %v509 = vand.u32 %v384, 4294901760
    %v510 = vsub.f32 %v384, %v509
    %511 = vmatmul.f32.gmra.mxu0 %v510
    %v512 = vpop.f32.mrf.mxu0
    %v513 = vadd.f32 %v475, %v512
    %v514 = vand.u32 %v387, 4294901760
    %v515 = vsub.f32 %v387, %v514
    %516 = vmatmul.f32.gmra.mxu0 %v515
    %v517 = vpop.f32.mrf.mxu0
    %v518 = vadd.f32 %v479, %v517
    %v519 = vand.u32 %v390, 4294901760
    %v520 = vsub.f32 %v390, %v519
    %521 = vmatmul.f32.gmra.mxu0 %v520
    %v522 = vpop.f32.mrf.mxu0
    %v523 = vadd.f32 %v483, %v522
    %v524 = vand.u32 %v393, 4294901760
    %v525 = vsub.f32 %v393, %v524
    %526 = vmatmul.f32.gmra.mxu0 %v525
    %v527 = vpop.f32.mrf.mxu0
    %v528 = vadd.f32 %v487, %v527
    %529 = vdwg.mxu0
    %530 = vmatpush.msra.mxu0 0.0
    %531 = vmatpush.msra.mxu0 0.0
    %532 = vmatpush.msra.mxu0 0.0
    %533 = vmatpush.msra.mxu0 0.0
    %534 = vmatpush.msra.mxu0 0.0
    %535 = vmatpush.msra.mxu0 0.0
    %536 = vmatpush.msra.mxu0 0.0
    %537 = vmatpush.msra.mxu0 0.0
    %538 = vmatpush.msra.mxu0 0.0
    %539 = vmatpush.msra.mxu0 0.0
    %540 = vmatpush.msra.mxu0 0.0
    %541 = vmatpush.msra.mxu0 0.0
    %542 = vmatpush.msra.mxu0 0.0
    %543 = vmatpush.msra.mxu0 0.0
    %v544 = vand.u32 %v362, 4294901760
    %545 = vmatpush.msra.mxu0 %v544
    %v546 = vand.u32 %v356, 4294901760
    %547 = vmatpush.msra.mxu0 %v546
    %v548 = vand.u32 %v384, 4294901760
    %v549 = vsub.f32 %v384, %v548
    %v550 = vand.u32 %v549, 4294901760
    %551 = vmatmul.f32.gmra.mxu0 %v550
    %v552 = vpop.f32.mrf.mxu0
    %v553 = vadd.f32 %v513, %v552
    %v554 = vand.u32 %v387, 4294901760
    %v555 = vsub.f32 %v387, %v554
    %v556 = vand.u32 %v555, 4294901760
    %557 = vmatmul.f32.gmra.mxu0 %v556
    %v558 = vpop.f32.mrf.mxu0
    %v559 = vadd.f32 %v518, %v558
    %v560 = vand.u32 %v390, 4294901760
    %v561 = vsub.f32 %v390, %v560
    %v562 = vand.u32 %v561, 4294901760
    %563 = vmatmul.f32.gmra.mxu0 %v562
    %v564 = vpop.f32.mrf.mxu0
    %v565 = vadd.f32 %v523, %v564
    %v566 = vand.u32 %v393, 4294901760
    %v567 = vsub.f32 %v393, %v566
    %v568 = vand.u32 %v567, 4294901760
    %569 = vmatmul.f32.gmra.mxu0 %v568
    %v570 = vpop.f32.mrf.mxu0
    %v571 = vadd.f32 %v528, %v570
    %572 = vdwg.mxu0
    %573 = vmatpush.msra.mxu0 0.0
    %574 = vmatpush.msra.mxu0 0.0
    %575 = vmatpush.msra.mxu0 0.0
    %576 = vmatpush.msra.mxu0 0.0
    %577 = vmatpush.msra.mxu0 0.0
    %578 = vmatpush.msra.mxu0 0.0
    %579 = vmatpush.msra.mxu0 0.0
    %580 = vmatpush.msra.mxu0 0.0
    %581 = vmatpush.msra.mxu0 0.0
    %582 = vmatpush.msra.mxu0 0.0
    %583 = vmatpush.msra.mxu0 0.0
    %584 = vmatpush.msra.mxu0 0.0
    %585 = vmatpush.msra.mxu0 0.0
    %586 = vmatpush.msra.mxu0 0.0
    %v587 = vand.u32 %v362, 4294901760
    %v588 = vsub.f32 %v362, %v587
    %v589 = vand.u32 %v588, 4294901760
    %590 = vmatpush.msra.mxu0 %v589
    %v591 = vand.u32 %v356, 4294901760
    %v592 = vsub.f32 %v356, %v591
    %v593 = vand.u32 %v592, 4294901760
    %594 = vmatpush.msra.mxu0 %v593
    %v595 = vand.u32 %v384, 4294901760
    %596 = vmatmul.f32.gmra.mxu0 %v595
    %v597 = vpop.f32.mrf.mxu0
    %v598 = vadd.f32 %v553, %v597
    %v599 = vand.u32 %v387, 4294901760
    %600 = vmatmul.f32.gmra.mxu0 %v599
    %v601 = vpop.f32.mrf.mxu0
    %v602 = vadd.f32 %v559, %v601
    %v603 = vand.u32 %v390, 4294901760
    %604 = vmatmul.f32.gmra.mxu0 %v603
    %v605 = vpop.f32.mrf.mxu0
    %v606 = vadd.f32 %v565, %v605
    %v607 = vand.u32 %v393, 4294901760
    %608 = vmatmul.f32.gmra.mxu0 %v607
    %v609 = vpop.f32.mrf.mxu0
    %v610 = vadd.f32 %v571, %v609
    %611 = vdwg.mxu0
    %612 = vmatpush.msra.mxu0 0.0
    %613 = vmatpush.msra.mxu0 0.0
    %614 = vmatpush.msra.mxu0 0.0
    %615 = vmatpush.msra.mxu0 0.0
    %616 = vmatpush.msra.mxu0 0.0
    %617 = vmatpush.msra.mxu0 0.0
    %618 = vmatpush.msra.mxu0 0.0
    %619 = vmatpush.msra.mxu0 0.0
    %620 = vmatpush.msra.mxu0 0.0
    %621 = vmatpush.msra.mxu0 0.0
    %622 = vmatpush.msra.mxu0 0.0
    %623 = vmatpush.msra.mxu0 0.0
    %624 = vmatpush.msra.mxu0 0.0
    %625 = vmatpush.msra.mxu0 0.0
    %v626 = vand.u32 %v362, 4294901760
    %627 = vmatpush.msra.mxu0 %v626
    %v628 = vand.u32 %v356, 4294901760
    %629 = vmatpush.msra.mxu0 %v628
    %v630 = vand.u32 %v384, 4294901760
    %631 = vmatmul.f32.gmra.mxu0 %v630
    %v632 = vpop.f32.mrf.mxu0
    %v633 = vadd.f32 %v598, %v632
    %v634 = vand.u32 %v387, 4294901760
    %635 = vmatmul.f32.gmra.mxu0 %v634
    %v636 = vpop.f32.mrf.mxu0
    %v637 = vadd.f32 %v602, %v636
    %v638 = vand.u32 %v390, 4294901760
    %639 = vmatmul.f32.gmra.mxu0 %v638
    %v640 = vpop.f32.mrf.mxu0
    %v641 = vadd.f32 %v606, %v640
    %v642 = vand.u32 %v393, 4294901760
    %643 = vmatmul.f32.gmra.mxu0 %v642
    %v644 = vpop.f32.mrf.mxu0
    %v645 = vadd.f32 %v610, %v644
    %646 = vdwg.mxu0
    %647 = vmatpush.msra.mxu0 0.0
    %648 = vmatpush.msra.mxu0 0.0
    %649 = vmatpush.msra.mxu0 0.0
    %650 = vmatpush.msra.mxu0 0.0
    %651 = vmatpush.msra.mxu0 0.0
    %652 = vmatpush.msra.mxu0 0.0
    %653 = vmatpush.msra.mxu0 0.0
    %654 = vmatpush.msra.mxu0 0.0
    %655 = vmatpush.msra.mxu0 0.0
    %656 = vmatpush.msra.mxu0 0.0
    %657 = vmatpush.msra.mxu0 0.0
    %658 = vmatpush.msra.mxu0 0.0
    %659 = vmatpush.msra.mxu0 0.0
    %660 = vmatpush.msra.mxu0 0.0
    %v661 = vand.u32 %v363, 4294901760
    %662 = vmatpush.msra.mxu0 %v661
    %v663 = vand.u32 %v357, 4294901760
    %664 = vmatpush.msra.mxu0 %v663
    %v665 = vand.u32 %v384, 4294901760
    %v666 = vsub.f32 %v384, %v665
    %v667 = vand.u32 %v666, 4294901760
    %v668 = vsub.f32 %v666, %v667
    %v669 = vand.u32 %v668, 4294901760
    %670 = vmatmul.f32.gmra.mxu0 %v669
    %v671 = vpop.f32.mrf.mxu0
    %v672 = vadd.f32 %v371, %v671
    %v673 = vand.u32 %v387, 4294901760
    %v674 = vsub.f32 %v387, %v673
    %v675 = vand.u32 %v674, 4294901760
    %v676 = vsub.f32 %v674, %v675
    %v677 = vand.u32 %v676, 4294901760
    %678 = vmatmul.f32.gmra.mxu0 %v677
    %v679 = vpop.f32.mrf.mxu0
    %v680 = vadd.f32 %v371, %v679
    %v681 = vand.u32 %v390, 4294901760
    %v682 = vsub.f32 %v390, %v681
    %v683 = vand.u32 %v682, 4294901760
    %v684 = vsub.f32 %v682, %v683
    %v685 = vand.u32 %v684, 4294901760
    %686 = vmatmul.f32.gmra.mxu0 %v685
    %v687 = vpop.f32.mrf.mxu0
    %v688 = vadd.f32 %v371, %v687
    %v689 = vand.u32 %v393, 4294901760
    %v690 = vsub.f32 %v393, %v689
    %v691 = vand.u32 %v690, 4294901760
    %v692 = vsub.f32 %v690, %v691
    %v693 = vand.u32 %v692, 4294901760
    %694 = vmatmul.f32.gmra.mxu0 %v693
    %v695 = vpop.f32.mrf.mxu0
    %v696 = vadd.f32 %v371, %v695
    %697 = vdwg.mxu0
    %698 = vmatpush.msra.mxu0 0.0
    %699 = vmatpush.msra.mxu0 0.0
    %700 = vmatpush.msra.mxu0 0.0
    %701 = vmatpush.msra.mxu0 0.0
    %702 = vmatpush.msra.mxu0 0.0
    %703 = vmatpush.msra.mxu0 0.0
    %704 = vmatpush.msra.mxu0 0.0
    %705 = vmatpush.msra.mxu0 0.0
    %706 = vmatpush.msra.mxu0 0.0
    %707 = vmatpush.msra.mxu0 0.0
    %708 = vmatpush.msra.mxu0 0.0
    %709 = vmatpush.msra.mxu0 0.0
    %710 = vmatpush.msra.mxu0 0.0
    %711 = vmatpush.msra.mxu0 0.0
    %v712 = vand.u32 %v363, 4294901760
    %v713 = vsub.f32 %v363, %v712
    %v714 = vand.u32 %v713, 4294901760
    %v715 = vsub.f32 %v713, %v714
    %v716 = vand.u32 %v715, 4294901760
    %717 = vmatpush.msra.mxu0 %v716
    %v718 = vand.u32 %v357, 4294901760
    %v719 = vsub.f32 %v357, %v718
    %v720 = vand.u32 %v719, 4294901760
    %v721 = vsub.f32 %v719, %v720
    %v722 = vand.u32 %v721, 4294901760
    %723 = vmatpush.msra.mxu0 %v722
    %v724 = vand.u32 %v384, 4294901760
    %725 = vmatmul.f32.gmra.mxu0 %v724
    %v726 = vpop.f32.mrf.mxu0
    %v727 = vadd.f32 %v672, %v726
    %v728 = vand.u32 %v387, 4294901760
    %729 = vmatmul.f32.gmra.mxu0 %v728
    %v730 = vpop.f32.mrf.mxu0
    %v731 = vadd.f32 %v680, %v730
    %v732 = vand.u32 %v390, 4294901760
    %733 = vmatmul.f32.gmra.mxu0 %v732
    %v734 = vpop.f32.mrf.mxu0
    %v735 = vadd.f32 %v688, %v734
    %v736 = vand.u32 %v393, 4294901760
    %737 = vmatmul.f32.gmra.mxu0 %v736
    %v738 = vpop.f32.mrf.mxu0
    %v739 = vadd.f32 %v696, %v738
    %740 = vdwg.mxu0
    %741 = vmatpush.msra.mxu0 0.0
    %742 = vmatpush.msra.mxu0 0.0
    %743 = vmatpush.msra.mxu0 0.0
    %744 = vmatpush.msra.mxu0 0.0
    %745 = vmatpush.msra.mxu0 0.0
    %746 = vmatpush.msra.mxu0 0.0
    %747 = vmatpush.msra.mxu0 0.0
    %748 = vmatpush.msra.mxu0 0.0
    %749 = vmatpush.msra.mxu0 0.0
    %750 = vmatpush.msra.mxu0 0.0
    %751 = vmatpush.msra.mxu0 0.0
    %752 = vmatpush.msra.mxu0 0.0
    %753 = vmatpush.msra.mxu0 0.0
    %754 = vmatpush.msra.mxu0 0.0
    %v755 = vand.u32 %v363, 4294901760
    %v756 = vsub.f32 %v363, %v755
    %757 = vmatpush.msra.mxu0 %v756
    %v758 = vand.u32 %v357, 4294901760
    %v759 = vsub.f32 %v357, %v758
    %760 = vmatpush.msra.mxu0 %v759
    %v761 = vand.u32 %v384, 4294901760
    %v762 = vsub.f32 %v384, %v761
    %763 = vmatmul.f32.gmra.mxu0 %v762
    %v764 = vpop.f32.mrf.mxu0
    %v765 = vadd.f32 %v727, %v764
    %v766 = vand.u32 %v387, 4294901760
    %v767 = vsub.f32 %v387, %v766
    %768 = vmatmul.f32.gmra.mxu0 %v767
    %v769 = vpop.f32.mrf.mxu0
    %v770 = vadd.f32 %v731, %v769
    %v771 = vand.u32 %v390, 4294901760
    %v772 = vsub.f32 %v390, %v771
    %773 = vmatmul.f32.gmra.mxu0 %v772
    %v774 = vpop.f32.mrf.mxu0
    %v775 = vadd.f32 %v735, %v774
    %v776 = vand.u32 %v393, 4294901760
    %v777 = vsub.f32 %v393, %v776
    %778 = vmatmul.f32.gmra.mxu0 %v777
    %v779 = vpop.f32.mrf.mxu0
    %v780 = vadd.f32 %v739, %v779
    %781 = vdwg.mxu0
    %782 = vmatpush.msra.mxu0 0.0
    %783 = vmatpush.msra.mxu0 0.0
    %784 = vmatpush.msra.mxu0 0.0
    %785 = vmatpush.msra.mxu0 0.0
    %786 = vmatpush.msra.mxu0 0.0
    %787 = vmatpush.msra.mxu0 0.0
    %788 = vmatpush.msra.mxu0 0.0
    %789 = vmatpush.msra.mxu0 0.0
    %790 = vmatpush.msra.mxu0 0.0
    %791 = vmatpush.msra.mxu0 0.0
    %792 = vmatpush.msra.mxu0 0.0
    %793 = vmatpush.msra.mxu0 0.0
    %794 = vmatpush.msra.mxu0 0.0
    %795 = vmatpush.msra.mxu0 0.0
    %v796 = vand.u32 %v363, 4294901760
    %797 = vmatpush.msra.mxu0 %v796
    %v798 = vand.u32 %v357, 4294901760
    %799 = vmatpush.msra.mxu0 %v798
    %v800 = vand.u32 %v384, 4294901760
    %v801 = vsub.f32 %v384, %v800
    %v802 = vand.u32 %v801, 4294901760
    %803 = vmatmul.f32.gmra.mxu0 %v802
    %v804 = vpop.f32.mrf.mxu0
    %v805 = vadd.f32 %v765, %v804
    %v806 = vand.u32 %v387, 4294901760
    %v807 = vsub.f32 %v387, %v806
    %v808 = vand.u32 %v807, 4294901760
    %809 = vmatmul.f32.gmra.mxu0 %v808
    %v810 = vpop.f32.mrf.mxu0
    %v811 = vadd.f32 %v770, %v810
    %v812 = vand.u32 %v390, 4294901760
    %v813 = vsub.f32 %v390, %v812
    %v814 = vand.u32 %v813, 4294901760
    %815 = vmatmul.f32.gmra.mxu0 %v814
    %v816 = vpop.f32.mrf.mxu0
    %v817 = vadd.f32 %v775, %v816
    %v818 = vand.u32 %v393, 4294901760
    %v819 = vsub.f32 %v393, %v818
    %v820 = vand.u32 %v819, 4294901760
    %821 = vmatmul.f32.gmra.mxu0 %v820
    %v822 = vpop.f32.mrf.mxu0
    %v823 = vadd.f32 %v780, %v822
    %824 = vdwg.mxu0
    %825 = vmatpush.msra.mxu0 0.0
    %826 = vmatpush.msra.mxu0 0.0
    %827 = vmatpush.msra.mxu0 0.0
    %828 = vmatpush.msra.mxu0 0.0
    %829 = vmatpush.msra.mxu0 0.0
    %830 = vmatpush.msra.mxu0 0.0
    %831 = vmatpush.msra.mxu0 0.0
    %832 = vmatpush.msra.mxu0 0.0
    %833 = vmatpush.msra.mxu0 0.0
    %834 = vmatpush.msra.mxu0 0.0
    %835 = vmatpush.msra.mxu0 0.0
    %836 = vmatpush.msra.mxu0 0.0
    %837 = vmatpush.msra.mxu0 0.0
    %838 = vmatpush.msra.mxu0 0.0
    %v839 = vand.u32 %v363, 4294901760
    %v840 = vsub.f32 %v363, %v839
    %v841 = vand.u32 %v840, 4294901760
    %842 = vmatpush.msra.mxu0 %v841
    %v843 = vand.u32 %v357, 4294901760
    %v844 = vsub.f32 %v357, %v843
    %v845 = vand.u32 %v844, 4294901760
    %846 = vmatpush.msra.mxu0 %v845
    %v847 = vand.u32 %v384, 4294901760
    %848 = vmatmul.f32.gmra.mxu0 %v847
    %v849 = vpop.f32.mrf.mxu0
    %v850 = vadd.f32 %v805, %v849
    %v851 = vand.u32 %v387, 4294901760
    %852 = vmatmul.f32.gmra.mxu0 %v851
    %v853 = vpop.f32.mrf.mxu0
    %v854 = vadd.f32 %v811, %v853
    %v855 = vand.u32 %v390, 4294901760
    %856 = vmatmul.f32.gmra.mxu0 %v855
    %v857 = vpop.f32.mrf.mxu0
    %v858 = vadd.f32 %v817, %v857
    %v859 = vand.u32 %v393, 4294901760
    %860 = vmatmul.f32.gmra.mxu0 %v859
    %v861 = vpop.f32.mrf.mxu0
    %v862 = vadd.f32 %v823, %v861
    %863 = vdwg.mxu0
    %864 = vmatpush.msra.mxu0 0.0
    %865 = vmatpush.msra.mxu0 0.0
    %866 = vmatpush.msra.mxu0 0.0
    %867 = vmatpush.msra.mxu0 0.0
    %868 = vmatpush.msra.mxu0 0.0
    %869 = vmatpush.msra.mxu0 0.0
    %870 = vmatpush.msra.mxu0 0.0
    %871 = vmatpush.msra.mxu0 0.0
    %872 = vmatpush.msra.mxu0 0.0
    %873 = vmatpush.msra.mxu0 0.0
    %874 = vmatpush.msra.mxu0 0.0
    %875 = vmatpush.msra.mxu0 0.0
    %876 = vmatpush.msra.mxu0 0.0
    %877 = vmatpush.msra.mxu0 0.0
    %v878 = vand.u32 %v363, 4294901760
    %879 = vmatpush.msra.mxu0 %v878
    %v880 = vand.u32 %v357, 4294901760
    %881 = vmatpush.msra.mxu0 %v880
    %v882 = vand.u32 %v384, 4294901760
    %883 = vmatmul.f32.gmra.mxu0 %v882
    %v884 = vpop.f32.mrf.mxu0
    %v885 = vadd.f32 %v850, %v884
    %v886 = vand.u32 %v387, 4294901760
    %887 = vmatmul.f32.gmra.mxu0 %v886
    %v888 = vpop.f32.mrf.mxu0
    %v889 = vadd.f32 %v854, %v888
    %v890 = vand.u32 %v390, 4294901760
    %891 = vmatmul.f32.gmra.mxu0 %v890
    %v892 = vpop.f32.mrf.mxu0
    %v893 = vadd.f32 %v858, %v892
    %v894 = vand.u32 %v393, 4294901760
    %895 = vmatmul.f32.gmra.mxu0 %v894
    %v896 = vpop.f32.mrf.mxu0
    %v897 = vadd.f32 %v862, %v896
    %898 = vdwg.mxu0
    %899 = vmatpush.msra.mxu0 0.0
    %900 = vmatpush.msra.mxu0 0.0
    %901 = vmatpush.msra.mxu0 0.0
    %902 = vmatpush.msra.mxu0 0.0
    %903 = vmatpush.msra.mxu0 0.0
    %904 = vmatpush.msra.mxu0 0.0
    %905 = vmatpush.msra.mxu0 0.0
    %906 = vmatpush.msra.mxu0 0.0
    %907 = vmatpush.msra.mxu0 0.0
    %908 = vmatpush.msra.mxu0 0.0
    %909 = vmatpush.msra.mxu0 0.0
    %910 = vmatpush.msra.mxu0 0.0
    %911 = vmatpush.msra.mxu0 0.0
    %912 = vmatpush.msra.mxu0 0.0
    %v913 = vand.u32 %v364, 4294901760
    %914 = vmatpush.msra.mxu0 %v913
    %v915 = vand.u32 %v358, 4294901760
    %916 = vmatpush.msra.mxu0 %v915
    %v917 = vand.u32 %v384, 4294901760
    %v918 = vsub.f32 %v384, %v917
    %v919 = vand.u32 %v918, 4294901760
    %v920 = vsub.f32 %v918, %v919
    %v921 = vand.u32 %v920, 4294901760
    %922 = vmatmul.f32.gmra.mxu0 %v921
    %v923 = vpop.f32.mrf.mxu0
    %v924 = vadd.f32 %v372, %v923
    %v925 = vand.u32 %v387, 4294901760
    %v926 = vsub.f32 %v387, %v925
    %v927 = vand.u32 %v926, 4294901760
    %v928 = vsub.f32 %v926, %v927
    %v929 = vand.u32 %v928, 4294901760
    %930 = vmatmul.f32.gmra.mxu0 %v929
    %v931 = vpop.f32.mrf.mxu0
    %v932 = vadd.f32 %v372, %v931
    %v933 = vand.u32 %v390, 4294901760
    %v934 = vsub.f32 %v390, %v933
    %v935 = vand.u32 %v934, 4294901760
    %v936 = vsub.f32 %v934, %v935
    %v937 = vand.u32 %v936, 4294901760
    %938 = vmatmul.f32.gmra.mxu0 %v937
    %v939 = vpop.f32.mrf.mxu0
    %v940 = vadd.f32 %v372, %v939
    %v941 = vand.u32 %v393, 4294901760
    %v942 = vsub.f32 %v393, %v941
    %v943 = vand.u32 %v942, 4294901760
    %v944 = vsub.f32 %v942, %v943
    %v945 = vand.u32 %v944, 4294901760
    %946 = vmatmul.f32.gmra.mxu0 %v945
    %v947 = vpop.f32.mrf.mxu0
    %v948 = vadd.f32 %v372, %v947
    %949 = vdwg.mxu0
    %950 = vmatpush.msra.mxu0 0.0
    %951 = vmatpush.msra.mxu0 0.0
    %952 = vmatpush.msra.mxu0 0.0
    %953 = vmatpush.msra.mxu0 0.0
    %954 = vmatpush.msra.mxu0 0.0
    %955 = vmatpush.msra.mxu0 0.0
    %956 = vmatpush.msra.mxu0 0.0
    %957 = vmatpush.msra.mxu0 0.0
    %958 = vmatpush.msra.mxu0 0.0
    %959 = vmatpush.msra.mxu0 0.0
    %960 = vmatpush.msra.mxu0 0.0
    %961 = vmatpush.msra.mxu0 0.0
    %962 = vmatpush.msra.mxu0 0.0
    %963 = vmatpush.msra.mxu0 0.0
    %v964 = vand.u32 %v364, 4294901760
    %v965 = vsub.f32 %v364, %v964
    %v966 = vand.u32 %v965, 4294901760
    %v967 = vsub.f32 %v965, %v966
    %v968 = vand.u32 %v967, 4294901760
    %969 = vmatpush.msra.mxu0 %v968
    %v970 = vand.u32 %v358, 4294901760
    %v971 = vsub.f32 %v358, %v970
    %v972 = vand.u32 %v971, 4294901760
    %v973 = vsub.f32 %v971, %v972
    %v974 = vand.u32 %v973, 4294901760
    %975 = vmatpush.msra.mxu0 %v974
    %v976 = vand.u32 %v384, 4294901760
    %977 = vmatmul.f32.gmra.mxu0 %v976
    %v978 = vpop.f32.mrf.mxu0
    %v979 = vadd.f32 %v924, %v978
    %v980 = vand.u32 %v387, 4294901760
    %981 = vmatmul.f32.gmra.mxu0 %v980
    %v982 = vpop.f32.mrf.mxu0
    %v983 = vadd.f32 %v932, %v982
    %v984 = vand.u32 %v390, 4294901760
    %985 = vmatmul.f32.gmra.mxu0 %v984
    %v986 = vpop.f32.mrf.mxu0
    %v987 = vadd.f32 %v940, %v986
    %v988 = vand.u32 %v393, 4294901760
    %989 = vmatmul.f32.gmra.mxu0 %v988
    %v990 = vpop.f32.mrf.mxu0
    %v991 = vadd.f32 %v948, %v990
    %992 = vdwg.mxu0
    %993 = vmatpush.msra.mxu0 0.0
    %994 = vmatpush.msra.mxu0 0.0
    %995 = vmatpush.msra.mxu0 0.0
    %996 = vmatpush.msra.mxu0 0.0
    %997 = vmatpush.msra.mxu0 0.0
    %998 = vmatpush.msra.mxu0 0.0
    %999 = vmatpush.msra.mxu0 0.0
    %1000 = vmatpush.msra.mxu0 0.0
    %1001 = vmatpush.msra.mxu0 0.0
    %1002 = vmatpush.msra.mxu0 0.0
    %1003 = vmatpush.msra.mxu0 0.0
    %1004 = vmatpush.msra.mxu0 0.0
    %1005 = vmatpush.msra.mxu0 0.0
    %1006 = vmatpush.msra.mxu0 0.0
    %v1007 = vand.u32 %v364, 4294901760
    %v1008 = vsub.f32 %v364, %v1007
    %1009 = vmatpush.msra.mxu0 %v1008
    %v1010 = vand.u32 %v358, 4294901760
    %v1011 = vsub.f32 %v358, %v1010
    %1012 = vmatpush.msra.mxu0 %v1011
    %v1013 = vand.u32 %v384, 4294901760
    %v1014 = vsub.f32 %v384, %v1013
    %1015 = vmatmul.f32.gmra.mxu0 %v1014
    %v1016 = vpop.f32.mrf.mxu0
    %v1017 = vadd.f32 %v979, %v1016
    %v1018 = vand.u32 %v387, 4294901760
    %v1019 = vsub.f32 %v387, %v1018
    %1020 = vmatmul.f32.gmra.mxu0 %v1019
    %v1021 = vpop.f32.mrf.mxu0
    %v1022 = vadd.f32 %v983, %v1021
    %v1023 = vand.u32 %v390, 4294901760
    %v1024 = vsub.f32 %v390, %v1023
    %1025 = vmatmul.f32.gmra.mxu0 %v1024
    %v1026 = vpop.f32.mrf.mxu0
    %v1027 = vadd.f32 %v987, %v1026
    %v1028 = vand.u32 %v393, 4294901760
    %v1029 = vsub.f32 %v393, %v1028
    %1030 = vmatmul.f32.gmra.mxu0 %v1029
    %v1031 = vpop.f32.mrf.mxu0
    %v1032 = vadd.f32 %v991, %v1031
    %1033 = vdwg.mxu0
    %1034 = vmatpush.msra.mxu0 0.0
    %1035 = vmatpush.msra.mxu0 0.0
    %1036 = vmatpush.msra.mxu0 0.0
    %1037 = vmatpush.msra.mxu0 0.0
    %1038 = vmatpush.msra.mxu0 0.0
    %1039 = vmatpush.msra.mxu0 0.0
    %1040 = vmatpush.msra.mxu0 0.0
    %1041 = vmatpush.msra.mxu0 0.0
    %1042 = vmatpush.msra.mxu0 0.0
    %1043 = vmatpush.msra.mxu0 0.0
    %1044 = vmatpush.msra.mxu0 0.0
    %1045 = vmatpush.msra.mxu0 0.0
    %1046 = vmatpush.msra.mxu0 0.0
    %1047 = vmatpush.msra.mxu0 0.0
    %v1048 = vand.u32 %v364, 4294901760
    %1049 = vmatpush.msra.mxu0 %v1048
    %v1050 = vand.u32 %v358, 4294901760
    %1051 = vmatpush.msra.mxu0 %v1050
    %v1052 = vand.u32 %v384, 4294901760
    %v1053 = vsub.f32 %v384, %v1052
    %v1054 = vand.u32 %v1053, 4294901760
    %1055 = vmatmul.f32.gmra.mxu0 %v1054
    %v1056 = vpop.f32.mrf.mxu0
    %v1057 = vadd.f32 %v1017, %v1056
    %v1058 = vand.u32 %v387, 4294901760
    %v1059 = vsub.f32 %v387, %v1058
    %v1060 = vand.u32 %v1059, 4294901760
    %1061 = vmatmul.f32.gmra.mxu0 %v1060
    %v1062 = vpop.f32.mrf.mxu0
    %v1063 = vadd.f32 %v1022, %v1062
    %v1064 = vand.u32 %v390, 4294901760
    %v1065 = vsub.f32 %v390, %v1064
    %v1066 = vand.u32 %v1065, 4294901760
    %1067 = vmatmul.f32.gmra.mxu0 %v1066
    %v1068 = vpop.f32.mrf.mxu0
    %v1069 = vadd.f32 %v1027, %v1068
    %v1070 = vand.u32 %v393, 4294901760
    %v1071 = vsub.f32 %v393, %v1070
    %v1072 = vand.u32 %v1071, 4294901760
    %1073 = vmatmul.f32.gmra.mxu0 %v1072
    %v1074 = vpop.f32.mrf.mxu0
    %v1075 = vadd.f32 %v1032, %v1074
    %1076 = vdwg.mxu0
    %1077 = vmatpush.msra.mxu0 0.0
    %1078 = vmatpush.msra.mxu0 0.0
    %1079 = vmatpush.msra.mxu0 0.0
    %1080 = vmatpush.msra.mxu0 0.0
    %1081 = vmatpush.msra.mxu0 0.0
    %1082 = vmatpush.msra.mxu0 0.0
    %1083 = vmatpush.msra.mxu0 0.0
    %1084 = vmatpush.msra.mxu0 0.0
    %1085 = vmatpush.msra.mxu0 0.0
    %1086 = vmatpush.msra.mxu0 0.0
    %1087 = vmatpush.msra.mxu0 0.0
    %1088 = vmatpush.msra.mxu0 0.0
    %1089 = vmatpush.msra.mxu0 0.0
    %1090 = vmatpush.msra.mxu0 0.0
    %v1091 = vand.u32 %v364, 4294901760
    %v1092 = vsub.f32 %v364, %v1091
    %v1093 = vand.u32 %v1092, 4294901760
    %1094 = vmatpush.msra.mxu0 %v1093
    %v1095 = vand.u32 %v358, 4294901760
    %v1096 = vsub.f32 %v358, %v1095
    %v1097 = vand.u32 %v1096, 4294901760
    %1098 = vmatpush.msra.mxu0 %v1097
    %v1099 = vand.u32 %v384, 4294901760
    %1100 = vmatmul.f32.gmra.mxu0 %v1099
    %v1101 = vpop.f32.mrf.mxu0
    %v1102 = vadd.f32 %v1057, %v1101
    %v1103 = vand.u32 %v387, 4294901760
    %1104 = vmatmul.f32.gmra.mxu0 %v1103
    %v1105 = vpop.f32.mrf.mxu0
    %v1106 = vadd.f32 %v1063, %v1105
    %v1107 = vand.u32 %v390, 4294901760
    %1108 = vmatmul.f32.gmra.mxu0 %v1107
    %v1109 = vpop.f32.mrf.mxu0
    %v1110 = vadd.f32 %v1069, %v1109
    %v1111 = vand.u32 %v393, 4294901760
    %1112 = vmatmul.f32.gmra.mxu0 %v1111
    %v1113 = vpop.f32.mrf.mxu0
    %v1114 = vadd.f32 %v1075, %v1113
    %1115 = vdwg.mxu0
    %1116 = vmatpush.msra.mxu0 0.0
    %1117 = vmatpush.msra.mxu0 0.0
    %1118 = vmatpush.msra.mxu0 0.0
    %1119 = vmatpush.msra.mxu0 0.0
    %1120 = vmatpush.msra.mxu0 0.0
    %1121 = vmatpush.msra.mxu0 0.0
    %1122 = vmatpush.msra.mxu0 0.0
    %1123 = vmatpush.msra.mxu0 0.0
    %1124 = vmatpush.msra.mxu0 0.0
    %1125 = vmatpush.msra.mxu0 0.0
    %1126 = vmatpush.msra.mxu0 0.0
    %1127 = vmatpush.msra.mxu0 0.0
    %1128 = vmatpush.msra.mxu0 0.0
    %1129 = vmatpush.msra.mxu0 0.0
    %v1130 = vand.u32 %v364, 4294901760
    %1131 = vmatpush.msra.mxu0 %v1130
    %v1132 = vand.u32 %v358, 4294901760
    %1133 = vmatpush.msra.mxu0 %v1132
    %v1134 = vand.u32 %v384, 4294901760
    %1135 = vmatmul.f32.gmra.mxu0 %v1134
    %v1136 = vpop.f32.mrf.mxu0
    %v1137 = vadd.f32 %v1102, %v1136
    %v1138 = vand.u32 %v387, 4294901760
    %1139 = vmatmul.f32.gmra.mxu0 %v1138
    %v1140 = vpop.f32.mrf.mxu0
    %v1141 = vadd.f32 %v1106, %v1140
    %v1142 = vand.u32 %v390, 4294901760
    %1143 = vmatmul.f32.gmra.mxu0 %v1142
    %v1144 = vpop.f32.mrf.mxu0
    %v1145 = vadd.f32 %v1110, %v1144
    %v1146 = vand.u32 %v393, 4294901760
    %1147 = vmatmul.f32.gmra.mxu0 %v1146
    %v1148 = vpop.f32.mrf.mxu0
    %v1149 = vadd.f32 %v1114, %v1148
    %1150 = vdwg.mxu0
    %1151 = vmatpush.msra.mxu0 0.0
    %1152 = vmatpush.msra.mxu0 0.0
    %1153 = vmatpush.msra.mxu0 0.0
    %1154 = vmatpush.msra.mxu0 0.0
    %1155 = vmatpush.msra.mxu0 0.0
    %1156 = vmatpush.msra.mxu0 0.0
    %1157 = vmatpush.msra.mxu0 0.0
    %1158 = vmatpush.msra.mxu0 0.0
    %1159 = vmatpush.msra.mxu0 0.0
    %1160 = vmatpush.msra.mxu0 0.0
    %1161 = vmatpush.msra.mxu0 0.0
    %1162 = vmatpush.msra.mxu0 0.0
    %1163 = vmatpush.msra.mxu0 0.0
    %1164 = vmatpush.msra.mxu0 0.0
    %v1165 = vand.u32 %v365, 4294901760
    %1166 = vmatpush.msra.mxu0 %v1165
    %v1167 = vand.u32 %v359, 4294901760
    %1168 = vmatpush.msra.mxu0 %v1167
    %v1169 = vand.u32 %v384, 4294901760
    %v1170 = vsub.f32 %v384, %v1169
    %v1171 = vand.u32 %v1170, 4294901760
    %v1172 = vsub.f32 %v1170, %v1171
    %v1173 = vand.u32 %v1172, 4294901760
    %1174 = vmatmul.f32.gmra.mxu0 %v1173
    %v1175 = vpop.f32.mrf.mxu0
    %v1176 = vadd.f32 %v373, %v1175
    %v1177 = vand.u32 %v387, 4294901760
    %v1178 = vsub.f32 %v387, %v1177
    %v1179 = vand.u32 %v1178, 4294901760
    %v1180 = vsub.f32 %v1178, %v1179
    %v1181 = vand.u32 %v1180, 4294901760
    %1182 = vmatmul.f32.gmra.mxu0 %v1181
    %v1183 = vpop.f32.mrf.mxu0
    %v1184 = vadd.f32 %v373, %v1183
    %v1185 = vand.u32 %v390, 4294901760
    %v1186 = vsub.f32 %v390, %v1185
    %v1187 = vand.u32 %v1186, 4294901760
    %v1188 = vsub.f32 %v1186, %v1187
    %v1189 = vand.u32 %v1188, 4294901760
    %1190 = vmatmul.f32.gmra.mxu0 %v1189
    %v1191 = vpop.f32.mrf.mxu0
    %v1192 = vadd.f32 %v373, %v1191
    %v1193 = vand.u32 %v393, 4294901760
    %v1194 = vsub.f32 %v393, %v1193
    %v1195 = vand.u32 %v1194, 4294901760
    %v1196 = vsub.f32 %v1194, %v1195
    %v1197 = vand.u32 %v1196, 4294901760
    %1198 = vmatmul.f32.gmra.mxu0 %v1197
    %v1199 = vpop.f32.mrf.mxu0
    %v1200 = vadd.f32 %v373, %v1199
    %1201 = vdwg.mxu0
    %1202 = vmatpush.msra.mxu0 0.0
    %1203 = vmatpush.msra.mxu0 0.0
    %1204 = vmatpush.msra.mxu0 0.0
    %1205 = vmatpush.msra.mxu0 0.0
    %1206 = vmatpush.msra.mxu0 0.0
    %1207 = vmatpush.msra.mxu0 0.0
    %1208 = vmatpush.msra.mxu0 0.0
    %1209 = vmatpush.msra.mxu0 0.0
    %1210 = vmatpush.msra.mxu0 0.0
    %1211 = vmatpush.msra.mxu0 0.0
    %1212 = vmatpush.msra.mxu0 0.0
    %1213 = vmatpush.msra.mxu0 0.0
    %1214 = vmatpush.msra.mxu0 0.0
    %1215 = vmatpush.msra.mxu0 0.0
    %v1216 = vand.u32 %v365, 4294901760
    %v1217 = vsub.f32 %v365, %v1216
    %v1218 = vand.u32 %v1217, 4294901760
    %v1219 = vsub.f32 %v1217, %v1218
    %v1220 = vand.u32 %v1219, 4294901760
    %1221 = vmatpush.msra.mxu0 %v1220
    %v1222 = vand.u32 %v359, 4294901760
    %v1223 = vsub.f32 %v359, %v1222
    %v1224 = vand.u32 %v1223, 4294901760
    %v1225 = vsub.f32 %v1223, %v1224
    %v1226 = vand.u32 %v1225, 4294901760
    %1227 = vmatpush.msra.mxu0 %v1226
    %v1228 = vand.u32 %v384, 4294901760
    %1229 = vmatmul.f32.gmra.mxu0 %v1228
    %v1230 = vpop.f32.mrf.mxu0
    %v1231 = vadd.f32 %v1176, %v1230
    %v1232 = vand.u32 %v387, 4294901760
    %1233 = vmatmul.f32.gmra.mxu0 %v1232
    %v1234 = vpop.f32.mrf.mxu0
    %v1235 = vadd.f32 %v1184, %v1234
    %v1236 = vand.u32 %v390, 4294901760
    %1237 = vmatmul.f32.gmra.mxu0 %v1236
    %v1238 = vpop.f32.mrf.mxu0
    %v1239 = vadd.f32 %v1192, %v1238
    %v1240 = vand.u32 %v393, 4294901760
    %1241 = vmatmul.f32.gmra.mxu0 %v1240
    %v1242 = vpop.f32.mrf.mxu0
    %v1243 = vadd.f32 %v1200, %v1242
    %1244 = vdwg.mxu0
    %1245 = vmatpush.msra.mxu0 0.0
    %1246 = vmatpush.msra.mxu0 0.0
    %1247 = vmatpush.msra.mxu0 0.0
    %1248 = vmatpush.msra.mxu0 0.0
    %1249 = vmatpush.msra.mxu0 0.0
    %1250 = vmatpush.msra.mxu0 0.0
    %1251 = vmatpush.msra.mxu0 0.0
    %1252 = vmatpush.msra.mxu0 0.0
    %1253 = vmatpush.msra.mxu0 0.0
    %1254 = vmatpush.msra.mxu0 0.0
    %1255 = vmatpush.msra.mxu0 0.0
    %1256 = vmatpush.msra.mxu0 0.0
    %1257 = vmatpush.msra.mxu0 0.0
    %1258 = vmatpush.msra.mxu0 0.0
    %v1259 = vand.u32 %v365, 4294901760
    %v1260 = vsub.f32 %v365, %v1259
    %1261 = vmatpush.msra.mxu0 %v1260
    %v1262 = vand.u32 %v359, 4294901760
    %v1263 = vsub.f32 %v359, %v1262
    %1264 = vmatpush.msra.mxu0 %v1263
    %v1265 = vand.u32 %v384, 4294901760
    %v1266 = vsub.f32 %v384, %v1265
    %1267 = vmatmul.f32.gmra.mxu0 %v1266
    %v1268 = vpop.f32.mrf.mxu0
    %v1269 = vadd.f32 %v1231, %v1268
    %v1270 = vand.u32 %v387, 4294901760
    %v1271 = vsub.f32 %v387, %v1270
    %1272 = vmatmul.f32.gmra.mxu0 %v1271
    %v1273 = vpop.f32.mrf.mxu0
    %v1274 = vadd.f32 %v1235, %v1273
    %v1275 = vand.u32 %v390, 4294901760
    %v1276 = vsub.f32 %v390, %v1275
    %1277 = vmatmul.f32.gmra.mxu0 %v1276
    %v1278 = vpop.f32.mrf.mxu0
    %v1279 = vadd.f32 %v1239, %v1278
    %v1280 = vand.u32 %v393, 4294901760
    %v1281 = vsub.f32 %v393, %v1280
    %1282 = vmatmul.f32.gmra.mxu0 %v1281
    %v1283 = vpop.f32.mrf.mxu0
    %v1284 = vadd.f32 %v1243, %v1283
    %1285 = vdwg.mxu0
    %1286 = vmatpush.msra.mxu0 0.0
    %1287 = vmatpush.msra.mxu0 0.0
    %1288 = vmatpush.msra.mxu0 0.0
    %1289 = vmatpush.msra.mxu0 0.0
    %1290 = vmatpush.msra.mxu0 0.0
    %1291 = vmatpush.msra.mxu0 0.0
    %1292 = vmatpush.msra.mxu0 0.0
    %1293 = vmatpush.msra.mxu0 0.0
    %1294 = vmatpush.msra.mxu0 0.0
    %1295 = vmatpush.msra.mxu0 0.0
    %1296 = vmatpush.msra.mxu0 0.0
    %1297 = vmatpush.msra.mxu0 0.0
    %1298 = vmatpush.msra.mxu0 0.0
    %1299 = vmatpush.msra.mxu0 0.0
    %v1300 = vand.u32 %v365, 4294901760
    %1301 = vmatpush.msra.mxu0 %v1300
    %v1302 = vand.u32 %v359, 4294901760
    %1303 = vmatpush.msra.mxu0 %v1302
    %v1304 = vand.u32 %v384, 4294901760
    %v1305 = vsub.f32 %v384, %v1304
    %v1306 = vand.u32 %v1305, 4294901760
    %1307 = vmatmul.f32.gmra.mxu0 %v1306
    %v1308 = vpop.f32.mrf.mxu0
    %v1309 = vadd.f32 %v1269, %v1308
    %v1310 = vand.u32 %v387, 4294901760
    %v1311 = vsub.f32 %v387, %v1310
    %v1312 = vand.u32 %v1311, 4294901760
    %1313 = vmatmul.f32.gmra.mxu0 %v1312
    %v1314 = vpop.f32.mrf.mxu0
    %v1315 = vadd.f32 %v1274, %v1314
    %v1316 = vand.u32 %v390, 4294901760
    %v1317 = vsub.f32 %v390, %v1316
    %v1318 = vand.u32 %v1317, 4294901760
    %1319 = vmatmul.f32.gmra.mxu0 %v1318
    %v1320 = vpop.f32.mrf.mxu0
    %v1321 = vadd.f32 %v1279, %v1320
    %v1322 = vand.u32 %v393, 4294901760
    %v1323 = vsub.f32 %v393, %v1322
    %v1324 = vand.u32 %v1323, 4294901760
    %1325 = vmatmul.f32.gmra.mxu0 %v1324
    %v1326 = vpop.f32.mrf.mxu0
    %v1327 = vadd.f32 %v1284, %v1326
    %1328 = vdwg.mxu0
    %1329 = vmatpush.msra.mxu0 0.0
    %1330 = vmatpush.msra.mxu0 0.0
    %1331 = vmatpush.msra.mxu0 0.0
    %1332 = vmatpush.msra.mxu0 0.0
    %1333 = vmatpush.msra.mxu0 0.0
    %1334 = vmatpush.msra.mxu0 0.0
    %1335 = vmatpush.msra.mxu0 0.0
    %1336 = vmatpush.msra.mxu0 0.0
    %1337 = vmatpush.msra.mxu0 0.0
    %1338 = vmatpush.msra.mxu0 0.0
    %1339 = vmatpush.msra.mxu0 0.0
    %1340 = vmatpush.msra.mxu0 0.0
    %1341 = vmatpush.msra.mxu0 0.0
    %1342 = vmatpush.msra.mxu0 0.0
    %v1343 = vand.u32 %v365, 4294901760
    %v1344 = vsub.f32 %v365, %v1343
    %v1345 = vand.u32 %v1344, 4294901760
    %1346 = vmatpush.msra.mxu0 %v1345
    %v1347 = vand.u32 %v359, 4294901760
    %v1348 = vsub.f32 %v359, %v1347
    %v1349 = vand.u32 %v1348, 4294901760
    %1350 = vmatpush.msra.mxu0 %v1349
    %v1351 = vand.u32 %v384, 4294901760
    %1352 = vmatmul.f32.gmra.mxu0 %v1351
    %v1353 = vpop.f32.mrf.mxu0
    %v1354 = vadd.f32 %v1309, %v1353
    %v1355 = vand.u32 %v387, 4294901760
    %1356 = vmatmul.f32.gmra.mxu0 %v1355
    %v1357 = vpop.f32.mrf.mxu0
    %v1358 = vadd.f32 %v1315, %v1357
    %v1359 = vand.u32 %v390, 4294901760
    %1360 = vmatmul.f32.gmra.mxu0 %v1359
    %v1361 = vpop.f32.mrf.mxu0
    %v1362 = vadd.f32 %v1321, %v1361
    %v1363 = vand.u32 %v393, 4294901760
    %1364 = vmatmul.f32.gmra.mxu0 %v1363
    %v1365 = vpop.f32.mrf.mxu0
    %v1366 = vadd.f32 %v1327, %v1365
    %1367 = vdwg.mxu0
    %1368 = vmatpush.msra.mxu0 0.0
    %1369 = vmatpush.msra.mxu0 0.0
    %1370 = vmatpush.msra.mxu0 0.0
    %1371 = vmatpush.msra.mxu0 0.0
    %1372 = vmatpush.msra.mxu0 0.0
    %1373 = vmatpush.msra.mxu0 0.0
    %1374 = vmatpush.msra.mxu0 0.0
    %1375 = vmatpush.msra.mxu0 0.0
    %1376 = vmatpush.msra.mxu0 0.0
    %1377 = vmatpush.msra.mxu0 0.0
    %1378 = vmatpush.msra.mxu0 0.0
    %1379 = vmatpush.msra.mxu0 0.0
    %1380 = vmatpush.msra.mxu0 0.0
    %1381 = vmatpush.msra.mxu0 0.0
    %v1382 = vand.u32 %v365, 4294901760
    %1383 = vmatpush.msra.mxu0 %v1382
    %v1384 = vand.u32 %v359, 4294901760
    %1385 = vmatpush.msra.mxu0 %v1384
    %v1386 = vand.u32 %v384, 4294901760
    %1387 = vmatmul.f32.gmra.mxu0 %v1386
    %v1388 = vpop.f32.mrf.mxu0
    %v1389 = vadd.f32 %v1354, %v1388
    %v1390 = vand.u32 %v387, 4294901760
    %1391 = vmatmul.f32.gmra.mxu0 %v1390
    %v1392 = vpop.f32.mrf.mxu0
    %v1393 = vadd.f32 %v1358, %v1392
    %v1394 = vand.u32 %v390, 4294901760
    %1395 = vmatmul.f32.gmra.mxu0 %v1394
    %v1396 = vpop.f32.mrf.mxu0
    %v1397 = vadd.f32 %v1362, %v1396
    %v1398 = vand.u32 %v393, 4294901760
    %1399 = vmatmul.f32.gmra.mxu0 %v1398
    %v1400 = vpop.f32.mrf.mxu0
    %v1401 = vadd.f32 %v1366, %v1400
    %1402 = vdwg.mxu0
    %1403 = vmatpush.msra.mxu0 0.0
    %1404 = vmatpush.msra.mxu0 0.0
    %1405 = vmatpush.msra.mxu0 0.0
    %1406 = vmatpush.msra.mxu0 0.0
    %1407 = vmatpush.msra.mxu0 0.0
    %1408 = vmatpush.msra.mxu0 0.0
    %1409 = vmatpush.msra.mxu0 0.0
    %1410 = vmatpush.msra.mxu0 0.0
    %1411 = vmatpush.msra.mxu0 0.0
    %1412 = vmatpush.msra.mxu0 0.0
    %1413 = vmatpush.msra.mxu0 0.0
    %1414 = vmatpush.msra.mxu0 0.0
    %1415 = vmatpush.msra.mxu0 0.0
    %1416 = vmatpush.msra.mxu0 0.0
    %v1417 = vand.u32 %v366, 4294901760
    %1418 = vmatpush.msra.mxu0 %v1417
    %v1419 = vand.u32 %v360, 4294901760
    %1420 = vmatpush.msra.mxu0 %v1419
    %v1421 = vand.u32 %v384, 4294901760
    %v1422 = vsub.f32 %v384, %v1421
    %v1423 = vand.u32 %v1422, 4294901760
    %v1424 = vsub.f32 %v1422, %v1423
    %v1425 = vand.u32 %v1424, 4294901760
    %1426 = vmatmul.f32.gmra.mxu0 %v1425
    %v1427 = vpop.f32.mrf.mxu0
    %v1428 = vadd.f32 %v374, %v1427
    %v1429 = vand.u32 %v387, 4294901760
    %v1430 = vsub.f32 %v387, %v1429
    %v1431 = vand.u32 %v1430, 4294901760
    %v1432 = vsub.f32 %v1430, %v1431
    %v1433 = vand.u32 %v1432, 4294901760
    %1434 = vmatmul.f32.gmra.mxu0 %v1433
    %v1435 = vpop.f32.mrf.mxu0
    %v1436 = vadd.f32 %v374, %v1435
    %v1437 = vand.u32 %v390, 4294901760
    %v1438 = vsub.f32 %v390, %v1437
    %v1439 = vand.u32 %v1438, 4294901760
    %v1440 = vsub.f32 %v1438, %v1439
    %v1441 = vand.u32 %v1440, 4294901760
    %1442 = vmatmul.f32.gmra.mxu0 %v1441
    %v1443 = vpop.f32.mrf.mxu0
    %v1444 = vadd.f32 %v374, %v1443
    %v1445 = vand.u32 %v393, 4294901760
    %v1446 = vsub.f32 %v393, %v1445
    %v1447 = vand.u32 %v1446, 4294901760
    %v1448 = vsub.f32 %v1446, %v1447
    %v1449 = vand.u32 %v1448, 4294901760
    %1450 = vmatmul.f32.gmra.mxu0 %v1449
    %v1451 = vpop.f32.mrf.mxu0
    %v1452 = vadd.f32 %v374, %v1451
    %1453 = vdwg.mxu0
    %1454 = vmatpush.msra.mxu0 0.0
    %1455 = vmatpush.msra.mxu0 0.0
    %1456 = vmatpush.msra.mxu0 0.0
    %1457 = vmatpush.msra.mxu0 0.0
    %1458 = vmatpush.msra.mxu0 0.0
    %1459 = vmatpush.msra.mxu0 0.0
    %1460 = vmatpush.msra.mxu0 0.0
    %1461 = vmatpush.msra.mxu0 0.0
    %1462 = vmatpush.msra.mxu0 0.0
    %1463 = vmatpush.msra.mxu0 0.0
    %1464 = vmatpush.msra.mxu0 0.0
    %1465 = vmatpush.msra.mxu0 0.0
    %1466 = vmatpush.msra.mxu0 0.0
    %1467 = vmatpush.msra.mxu0 0.0
    %v1468 = vand.u32 %v366, 4294901760
    %v1469 = vsub.f32 %v366, %v1468
    %v1470 = vand.u32 %v1469, 4294901760
    %v1471 = vsub.f32 %v1469, %v1470
    %v1472 = vand.u32 %v1471, 4294901760
    %1473 = vmatpush.msra.mxu0 %v1472
    %v1474 = vand.u32 %v360, 4294901760
    %v1475 = vsub.f32 %v360, %v1474
    %v1476 = vand.u32 %v1475, 4294901760
    %v1477 = vsub.f32 %v1475, %v1476
    %v1478 = vand.u32 %v1477, 4294901760
    %1479 = vmatpush.msra.mxu0 %v1478
    %v1480 = vand.u32 %v384, 4294901760
    %1481 = vmatmul.f32.gmra.mxu0 %v1480
    %v1482 = vpop.f32.mrf.mxu0
    %v1483 = vadd.f32 %v1428, %v1482
    %v1484 = vand.u32 %v387, 4294901760
    %1485 = vmatmul.f32.gmra.mxu0 %v1484
    %v1486 = vpop.f32.mrf.mxu0
    %v1487 = vadd.f32 %v1436, %v1486
    %v1488 = vand.u32 %v390, 4294901760
    %1489 = vmatmul.f32.gmra.mxu0 %v1488
    %v1490 = vpop.f32.mrf.mxu0
    %v1491 = vadd.f32 %v1444, %v1490
    %v1492 = vand.u32 %v393, 4294901760
    %1493 = vmatmul.f32.gmra.mxu0 %v1492
    %v1494 = vpop.f32.mrf.mxu0
    %v1495 = vadd.f32 %v1452, %v1494
    %1496 = vdwg.mxu0
    %1497 = vmatpush.msra.mxu0 0.0
    %1498 = vmatpush.msra.mxu0 0.0
    %1499 = vmatpush.msra.mxu0 0.0
    %1500 = vmatpush.msra.mxu0 0.0
    %1501 = vmatpush.msra.mxu0 0.0
    %1502 = vmatpush.msra.mxu0 0.0
    %1503 = vmatpush.msra.mxu0 0.0
    %1504 = vmatpush.msra.mxu0 0.0
    %1505 = vmatpush.msra.mxu0 0.0
    %1506 = vmatpush.msra.mxu0 0.0
    %1507 = vmatpush.msra.mxu0 0.0
    %1508 = vmatpush.msra.mxu0 0.0
    %1509 = vmatpush.msra.mxu0 0.0
    %1510 = vmatpush.msra.mxu0 0.0
    %v1511 = vand.u32 %v366, 4294901760
    %v1512 = vsub.f32 %v366, %v1511
    %1513 = vmatpush.msra.mxu0 %v1512
    %v1514 = vand.u32 %v360, 4294901760
    %v1515 = vsub.f32 %v360, %v1514
    %1516 = vmatpush.msra.mxu0 %v1515
    %v1517 = vand.u32 %v384, 4294901760
    %v1518 = vsub.f32 %v384, %v1517
    %1519 = vmatmul.f32.gmra.mxu0 %v1518
    %v1520 = vpop.f32.mrf.mxu0
    %v1521 = vadd.f32 %v1483, %v1520
    %v1522 = vand.u32 %v387, 4294901760
    %v1523 = vsub.f32 %v387, %v1522
    %1524 = vmatmul.f32.gmra.mxu0 %v1523
    %v1525 = vpop.f32.mrf.mxu0
    %v1526 = vadd.f32 %v1487, %v1525
    %v1527 = vand.u32 %v390, 4294901760
    %v1528 = vsub.f32 %v390, %v1527
    %1529 = vmatmul.f32.gmra.mxu0 %v1528
    %v1530 = vpop.f32.mrf.mxu0
    %v1531 = vadd.f32 %v1491, %v1530
    %v1532 = vand.u32 %v393, 4294901760
    %v1533 = vsub.f32 %v393, %v1532
    %1534 = vmatmul.f32.gmra.mxu0 %v1533
    %v1535 = vpop.f32.mrf.mxu0
    %v1536 = vadd.f32 %v1495, %v1535
    %1537 = vdwg.mxu0
    %1538 = vmatpush.msra.mxu0 0.0
    %1539 = vmatpush.msra.mxu0 0.0
    %1540 = vmatpush.msra.mxu0 0.0
    %1541 = vmatpush.msra.mxu0 0.0
    %1542 = vmatpush.msra.mxu0 0.0
    %1543 = vmatpush.msra.mxu0 0.0
    %1544 = vmatpush.msra.mxu0 0.0
    %1545 = vmatpush.msra.mxu0 0.0
    %1546 = vmatpush.msra.mxu0 0.0
    %1547 = vmatpush.msra.mxu0 0.0
    %1548 = vmatpush.msra.mxu0 0.0
    %1549 = vmatpush.msra.mxu0 0.0
    %1550 = vmatpush.msra.mxu0 0.0
    %1551 = vmatpush.msra.mxu0 0.0
    %v1552 = vand.u32 %v366, 4294901760
    %1553 = vmatpush.msra.mxu0 %v1552
    %v1554 = vand.u32 %v360, 4294901760
    %1555 = vmatpush.msra.mxu0 %v1554
    %v1556 = vand.u32 %v384, 4294901760
    %v1557 = vsub.f32 %v384, %v1556
    %v1558 = vand.u32 %v1557, 4294901760
    %1559 = vmatmul.f32.gmra.mxu0 %v1558
    %v1560 = vpop.f32.mrf.mxu0
    %v1561 = vadd.f32 %v1521, %v1560
    %v1562 = vand.u32 %v387, 4294901760
    %v1563 = vsub.f32 %v387, %v1562
    %v1564 = vand.u32 %v1563, 4294901760
    %1565 = vmatmul.f32.gmra.mxu0 %v1564
    %v1566 = vpop.f32.mrf.mxu0
    %v1567 = vadd.f32 %v1526, %v1566
    %v1568 = vand.u32 %v390, 4294901760
    %v1569 = vsub.f32 %v390, %v1568
    %v1570 = vand.u32 %v1569, 4294901760
    %1571 = vmatmul.f32.gmra.mxu0 %v1570
    %v1572 = vpop.f32.mrf.mxu0
    %v1573 = vadd.f32 %v1531, %v1572
    %v1574 = vand.u32 %v393, 4294901760
    %v1575 = vsub.f32 %v393, %v1574
    %v1576 = vand.u32 %v1575, 4294901760
    %1577 = vmatmul.f32.gmra.mxu0 %v1576
    %v1578 = vpop.f32.mrf.mxu0
    %v1579 = vadd.f32 %v1536, %v1578
    %1580 = vdwg.mxu0
    %1581 = vmatpush.msra.mxu0 0.0
    %1582 = vmatpush.msra.mxu0 0.0
    %1583 = vmatpush.msra.mxu0 0.0
    %1584 = vmatpush.msra.mxu0 0.0
    %1585 = vmatpush.msra.mxu0 0.0
    %1586 = vmatpush.msra.mxu0 0.0
    %1587 = vmatpush.msra.mxu0 0.0
    %1588 = vmatpush.msra.mxu0 0.0
    %1589 = vmatpush.msra.mxu0 0.0
    %1590 = vmatpush.msra.mxu0 0.0
    %1591 = vmatpush.msra.mxu0 0.0
    %1592 = vmatpush.msra.mxu0 0.0
    %1593 = vmatpush.msra.mxu0 0.0
    %1594 = vmatpush.msra.mxu0 0.0
    %v1595 = vand.u32 %v366, 4294901760
    %v1596 = vsub.f32 %v366, %v1595
    %v1597 = vand.u32 %v1596, 4294901760
    %1598 = vmatpush.msra.mxu0 %v1597
    %v1599 = vand.u32 %v360, 4294901760
    %v1600 = vsub.f32 %v360, %v1599
    %v1601 = vand.u32 %v1600, 4294901760
    %1602 = vmatpush.msra.mxu0 %v1601
    %v1603 = vand.u32 %v384, 4294901760
    %1604 = vmatmul.f32.gmra.mxu0 %v1603
    %v1605 = vpop.f32.mrf.mxu0
    %v1606 = vadd.f32 %v1561, %v1605
    %v1607 = vand.u32 %v387, 4294901760
    %1608 = vmatmul.f32.gmra.mxu0 %v1607
    %v1609 = vpop.f32.mrf.mxu0
    %v1610 = vadd.f32 %v1567, %v1609
    %v1611 = vand.u32 %v390, 4294901760
    %1612 = vmatmul.f32.gmra.mxu0 %v1611
    %v1613 = vpop.f32.mrf.mxu0
    %v1614 = vadd.f32 %v1573, %v1613
    %v1615 = vand.u32 %v393, 4294901760
    %1616 = vmatmul.f32.gmra.mxu0 %v1615
    %v1617 = vpop.f32.mrf.mxu0
    %v1618 = vadd.f32 %v1579, %v1617
    %1619 = vdwg.mxu0
    %1620 = vmatpush.msra.mxu0 0.0
    %1621 = vmatpush.msra.mxu0 0.0
    %1622 = vmatpush.msra.mxu0 0.0
    %1623 = vmatpush.msra.mxu0 0.0
    %1624 = vmatpush.msra.mxu0 0.0
    %1625 = vmatpush.msra.mxu0 0.0
    %1626 = vmatpush.msra.mxu0 0.0
    %1627 = vmatpush.msra.mxu0 0.0
    %1628 = vmatpush.msra.mxu0 0.0
    %1629 = vmatpush.msra.mxu0 0.0
    %1630 = vmatpush.msra.mxu0 0.0
    %1631 = vmatpush.msra.mxu0 0.0
    %1632 = vmatpush.msra.mxu0 0.0
    %1633 = vmatpush.msra.mxu0 0.0
    %v1634 = vand.u32 %v366, 4294901760
    %1635 = vmatpush.msra.mxu0 %v1634
    %v1636 = vand.u32 %v360, 4294901760
    %1637 = vmatpush.msra.mxu0 %v1636
    %v1638 = vand.u32 %v384, 4294901760
    %1639 = vmatmul.f32.gmra.mxu0 %v1638
    %v1640 = vpop.f32.mrf.mxu0
    %v1641 = vadd.f32 %v1606, %v1640
    %v1642 = vand.u32 %v387, 4294901760
    %1643 = vmatmul.f32.gmra.mxu0 %v1642
    %v1644 = vpop.f32.mrf.mxu0
    %v1645 = vadd.f32 %v1610, %v1644
    %v1646 = vand.u32 %v390, 4294901760
    %1647 = vmatmul.f32.gmra.mxu0 %v1646
    %v1648 = vpop.f32.mrf.mxu0
    %v1649 = vadd.f32 %v1614, %v1648
    %v1650 = vand.u32 %v393, 4294901760
    %1651 = vmatmul.f32.gmra.mxu0 %v1650
    %v1652 = vpop.f32.mrf.mxu0
    %v1653 = vadd.f32 %v1618, %v1652
    %1654 = vdwg.mxu0
    %1655 = vmatpush.msra.mxu0 0.0
    %1656 = vmatpush.msra.mxu0 0.0
    %1657 = vmatpush.msra.mxu0 0.0
    %1658 = vmatpush.msra.mxu0 0.0
    %1659 = vmatpush.msra.mxu0 0.0
    %1660 = vmatpush.msra.mxu0 0.0
    %1661 = vmatpush.msra.mxu0 0.0
    %1662 = vmatpush.msra.mxu0 0.0
    %1663 = vmatpush.msra.mxu0 0.0
    %1664 = vmatpush.msra.mxu0 0.0
    %1665 = vmatpush.msra.mxu0 0.0
    %1666 = vmatpush.msra.mxu0 0.0
    %1667 = vmatpush.msra.mxu0 0.0
    %1668 = vmatpush.msra.mxu0 0.0
    %v1669 = vand.u32 %v367, 4294901760
    %1670 = vmatpush.msra.mxu0 %v1669
    %v1671 = vand.u32 %v361, 4294901760
    %1672 = vmatpush.msra.mxu0 %v1671
    %v1673 = vand.u32 %v384, 4294901760
    %v1674 = vsub.f32 %v384, %v1673
    %v1675 = vand.u32 %v1674, 4294901760
    %v1676 = vsub.f32 %v1674, %v1675
    %v1677 = vand.u32 %v1676, 4294901760
    %1678 = vmatmul.f32.gmra.mxu0 %v1677
    %v1679 = vpop.f32.mrf.mxu0
    %v1680 = vadd.f32 %v375, %v1679
    %v1681 = vand.u32 %v387, 4294901760
    %v1682 = vsub.f32 %v387, %v1681
    %v1683 = vand.u32 %v1682, 4294901760
    %v1684 = vsub.f32 %v1682, %v1683
    %v1685 = vand.u32 %v1684, 4294901760
    %1686 = vmatmul.f32.gmra.mxu0 %v1685
    %v1687 = vpop.f32.mrf.mxu0
    %v1688 = vadd.f32 %v375, %v1687
    %v1689 = vand.u32 %v390, 4294901760
    %v1690 = vsub.f32 %v390, %v1689
    %v1691 = vand.u32 %v1690, 4294901760
    %v1692 = vsub.f32 %v1690, %v1691
    %v1693 = vand.u32 %v1692, 4294901760
    %1694 = vmatmul.f32.gmra.mxu0 %v1693
    %v1695 = vpop.f32.mrf.mxu0
    %v1696 = vadd.f32 %v375, %v1695
    %v1697 = vand.u32 %v393, 4294901760
    %v1698 = vsub.f32 %v393, %v1697
    %v1699 = vand.u32 %v1698, 4294901760
    %v1700 = vsub.f32 %v1698, %v1699
    %v1701 = vand.u32 %v1700, 4294901760
    %1702 = vmatmul.f32.gmra.mxu0 %v1701
    %v1703 = vpop.f32.mrf.mxu0
    %v1704 = vadd.f32 %v375, %v1703
    %1705 = vdwg.mxu0
    %1706 = vmatpush.msra.mxu0 0.0
    %1707 = vmatpush.msra.mxu0 0.0
    %1708 = vmatpush.msra.mxu0 0.0
    %1709 = vmatpush.msra.mxu0 0.0
    %1710 = vmatpush.msra.mxu0 0.0
    %1711 = vmatpush.msra.mxu0 0.0
    %1712 = vmatpush.msra.mxu0 0.0
    %1713 = vmatpush.msra.mxu0 0.0
    %1714 = vmatpush.msra.mxu0 0.0
    %1715 = vmatpush.msra.mxu0 0.0
    %1716 = vmatpush.msra.mxu0 0.0
    %1717 = vmatpush.msra.mxu0 0.0
    %1718 = vmatpush.msra.mxu0 0.0
    %1719 = vmatpush.msra.mxu0 0.0
    %v1720 = vand.u32 %v367, 4294901760
    %v1721 = vsub.f32 %v367, %v1720
    %v1722 = vand.u32 %v1721, 4294901760
    %v1723 = vsub.f32 %v1721, %v1722
    %v1724 = vand.u32 %v1723, 4294901760
    %1725 = vmatpush.msra.mxu0 %v1724
    %v1726 = vand.u32 %v361, 4294901760
    %v1727 = vsub.f32 %v361, %v1726
    %v1728 = vand.u32 %v1727, 4294901760
    %v1729 = vsub.f32 %v1727, %v1728
    %v1730 = vand.u32 %v1729, 4294901760
    %1731 = vmatpush.msra.mxu0 %v1730
    %v1732 = vand.u32 %v384, 4294901760
    %1733 = vmatmul.f32.gmra.mxu0 %v1732
    %v1734 = vpop.f32.mrf.mxu0
    %v1735 = vadd.f32 %v1680, %v1734
    %v1736 = vand.u32 %v387, 4294901760
    %1737 = vmatmul.f32.gmra.mxu0 %v1736
    %v1738 = vpop.f32.mrf.mxu0
    %v1739 = vadd.f32 %v1688, %v1738
    %v1740 = vand.u32 %v390, 4294901760
    %1741 = vmatmul.f32.gmra.mxu0 %v1740
    %v1742 = vpop.f32.mrf.mxu0
    %v1743 = vadd.f32 %v1696, %v1742
    %v1744 = vand.u32 %v393, 4294901760
    %1745 = vmatmul.f32.gmra.mxu0 %v1744
    %v1746 = vpop.f32.mrf.mxu0
    %v1747 = vadd.f32 %v1704, %v1746
    %1748 = vdwg.mxu0
    %1749 = vmatpush.msra.mxu0 0.0
    %1750 = vmatpush.msra.mxu0 0.0
    %1751 = vmatpush.msra.mxu0 0.0
    %1752 = vmatpush.msra.mxu0 0.0
    %1753 = vmatpush.msra.mxu0 0.0
    %1754 = vmatpush.msra.mxu0 0.0
    %1755 = vmatpush.msra.mxu0 0.0
    %1756 = vmatpush.msra.mxu0 0.0
    %1757 = vmatpush.msra.mxu0 0.0
    %1758 = vmatpush.msra.mxu0 0.0
    %1759 = vmatpush.msra.mxu0 0.0
    %1760 = vmatpush.msra.mxu0 0.0
    %1761 = vmatpush.msra.mxu0 0.0
    %1762 = vmatpush.msra.mxu0 0.0
    %v1763 = vand.u32 %v367, 4294901760
    %v1764 = vsub.f32 %v367, %v1763
    %1765 = vmatpush.msra.mxu0 %v1764
    %v1766 = vand.u32 %v361, 4294901760
    %v1767 = vsub.f32 %v361, %v1766
    %1768 = vmatpush.msra.mxu0 %v1767
    %v1769 = vand.u32 %v384, 4294901760
    %v1770 = vsub.f32 %v384, %v1769
    %1771 = vmatmul.f32.gmra.mxu0 %v1770
    %v1772 = vpop.f32.mrf.mxu0
    %v1773 = vadd.f32 %v1735, %v1772
    %v1774 = vand.u32 %v387, 4294901760
    %v1775 = vsub.f32 %v387, %v1774
    %1776 = vmatmul.f32.gmra.mxu0 %v1775
    %v1777 = vpop.f32.mrf.mxu0
    %v1778 = vadd.f32 %v1739, %v1777
    %v1779 = vand.u32 %v390, 4294901760
    %v1780 = vsub.f32 %v390, %v1779
    %1781 = vmatmul.f32.gmra.mxu0 %v1780
    %v1782 = vpop.f32.mrf.mxu0
    %v1783 = vadd.f32 %v1743, %v1782
    %v1784 = vand.u32 %v393, 4294901760
    %v1785 = vsub.f32 %v393, %v1784
    %1786 = vmatmul.f32.gmra.mxu0 %v1785
    %v1787 = vpop.f32.mrf.mxu0
    %v1788 = vadd.f32 %v1747, %v1787
    %1789 = vdwg.mxu0
    %1790 = vmatpush.msra.mxu0 0.0
    %1791 = vmatpush.msra.mxu0 0.0
    %1792 = vmatpush.msra.mxu0 0.0
    %1793 = vmatpush.msra.mxu0 0.0
    %1794 = vmatpush.msra.mxu0 0.0
    %1795 = vmatpush.msra.mxu0 0.0
    %1796 = vmatpush.msra.mxu0 0.0
    %1797 = vmatpush.msra.mxu0 0.0
    %1798 = vmatpush.msra.mxu0 0.0
    %1799 = vmatpush.msra.mxu0 0.0
    %1800 = vmatpush.msra.mxu0 0.0
    %1801 = vmatpush.msra.mxu0 0.0
    %1802 = vmatpush.msra.mxu0 0.0
    %1803 = vmatpush.msra.mxu0 0.0
    %v1804 = vand.u32 %v367, 4294901760
    %1805 = vmatpush.msra.mxu0 %v1804
    %v1806 = vand.u32 %v361, 4294901760
    %1807 = vmatpush.msra.mxu0 %v1806
    %v1808 = vand.u32 %v384, 4294901760
    %v1809 = vsub.f32 %v384, %v1808
    %v1810 = vand.u32 %v1809, 4294901760
    %1811 = vmatmul.f32.gmra.mxu0 %v1810
    %v1812 = vpop.f32.mrf.mxu0
    %v1813 = vadd.f32 %v1773, %v1812
    %v1814 = vand.u32 %v387, 4294901760
    %v1815 = vsub.f32 %v387, %v1814
    %v1816 = vand.u32 %v1815, 4294901760
    %1817 = vmatmul.f32.gmra.mxu0 %v1816
    %v1818 = vpop.f32.mrf.mxu0
    %v1819 = vadd.f32 %v1778, %v1818
    %v1820 = vand.u32 %v390, 4294901760
    %v1821 = vsub.f32 %v390, %v1820
    %v1822 = vand.u32 %v1821, 4294901760
    %1823 = vmatmul.f32.gmra.mxu0 %v1822
    %v1824 = vpop.f32.mrf.mxu0
    %v1825 = vadd.f32 %v1783, %v1824
    %v1826 = vand.u32 %v393, 4294901760
    %v1827 = vsub.f32 %v393, %v1826
    %v1828 = vand.u32 %v1827, 4294901760
    %1829 = vmatmul.f32.gmra.mxu0 %v1828
    %v1830 = vpop.f32.mrf.mxu0
    %v1831 = vadd.f32 %v1788, %v1830
    %1832 = vdwg.mxu0
    %1833 = vmatpush.msra.mxu0 0.0
    %1834 = vmatpush.msra.mxu0 0.0
    %1835 = vmatpush.msra.mxu0 0.0
    %1836 = vmatpush.msra.mxu0 0.0
    %1837 = vmatpush.msra.mxu0 0.0
    %1838 = vmatpush.msra.mxu0 0.0
    %1839 = vmatpush.msra.mxu0 0.0
    %1840 = vmatpush.msra.mxu0 0.0
    %1841 = vmatpush.msra.mxu0 0.0
    %1842 = vmatpush.msra.mxu0 0.0
    %1843 = vmatpush.msra.mxu0 0.0
    %1844 = vmatpush.msra.mxu0 0.0
    %1845 = vmatpush.msra.mxu0 0.0
    %1846 = vmatpush.msra.mxu0 0.0
    %v1847 = vand.u32 %v367, 4294901760
    %v1848 = vsub.f32 %v367, %v1847
    %v1849 = vand.u32 %v1848, 4294901760
    %1850 = vmatpush.msra.mxu0 %v1849
    %v1851 = vand.u32 %v361, 4294901760
    %v1852 = vsub.f32 %v361, %v1851
    %v1853 = vand.u32 %v1852, 4294901760
    %1854 = vmatpush.msra.mxu0 %v1853
    %v1855 = vand.u32 %v384, 4294901760
    %1856 = vmatmul.f32.gmra.mxu0 %v1855
    %v1857 = vpop.f32.mrf.mxu0
    %v1858 = vadd.f32 %v1813, %v1857
    %v1859 = vand.u32 %v387, 4294901760
    %1860 = vmatmul.f32.gmra.mxu0 %v1859
    %v1861 = vpop.f32.mrf.mxu0
    %v1862 = vadd.f32 %v1819, %v1861
    %v1863 = vand.u32 %v390, 4294901760
    %1864 = vmatmul.f32.gmra.mxu0 %v1863
    %v1865 = vpop.f32.mrf.mxu0
    %v1866 = vadd.f32 %v1825, %v1865
    %v1867 = vand.u32 %v393, 4294901760
    %1868 = vmatmul.f32.gmra.mxu0 %v1867
    %v1869 = vpop.f32.mrf.mxu0
    %v1870 = vadd.f32 %v1831, %v1869
    %1871 = vdwg.mxu0
    %1872 = vmatpush.msra.mxu0 0.0
    %1873 = vmatpush.msra.mxu0 0.0
    %1874 = vmatpush.msra.mxu0 0.0
    %1875 = vmatpush.msra.mxu0 0.0
    %1876 = vmatpush.msra.mxu0 0.0
    %1877 = vmatpush.msra.mxu0 0.0
    %1878 = vmatpush.msra.mxu0 0.0
    %1879 = vmatpush.msra.mxu0 0.0
    %1880 = vmatpush.msra.mxu0 0.0
    %1881 = vmatpush.msra.mxu0 0.0
    %1882 = vmatpush.msra.mxu0 0.0
    %1883 = vmatpush.msra.mxu0 0.0
    %1884 = vmatpush.msra.mxu0 0.0
    %1885 = vmatpush.msra.mxu0 0.0
    %v1886 = vand.u32 %v367, 4294901760
    %1887 = vmatpush.msra.mxu0 %v1886
    %v1888 = vand.u32 %v361, 4294901760
    %1889 = vmatpush.msra.mxu0 %v1888
    %v1890 = vand.u32 %v384, 4294901760
    %1891 = vmatmul.f32.gmra.mxu0 %v1890
    %v1892 = vpop.f32.mrf.mxu0
    %v1893 = vadd.f32 %v1858, %v1892
    %v1894 = vand.u32 %v387, 4294901760
    %1895 = vmatmul.f32.gmra.mxu0 %v1894
    %v1896 = vpop.f32.mrf.mxu0
    %v1897 = vadd.f32 %v1862, %v1896
    %v1898 = vand.u32 %v390, 4294901760
    %1899 = vmatmul.f32.gmra.mxu0 %v1898
    %v1900 = vpop.f32.mrf.mxu0
    %v1901 = vadd.f32 %v1866, %v1900
    %v1902 = vand.u32 %v393, 4294901760
    %1903 = vmatmul.f32.gmra.mxu0 %v1902
    %v1904 = vpop.f32.mrf.mxu0
    %v1905 = vadd.f32 %v1870, %v1904
    %1906 = vdwg.mxu0
    %1907 = vst [vmem:[#allocation2] sm:$0xff] %v633
    %1908 = vst [vmem:[#allocation2 + $0x8] sm:$0xff] %v885
    %1909 = vst [vmem:[#allocation2 + $0x10] sm:$0xff] %v1137
    %1910 = vst [vmem:[#allocation2 + $0x18] sm:$0xff] %v1389
    %1911 = vst [vmem:[#allocation2 + $0x20] sm:$0xff] %v1641
    %1912 = vst [vmem:[#allocation2 + $0x28] sm:$0xff] %v1893
    %1913 = vst [vmem:[#allocation2 + $0x30] sm:$0xff] %v637
    %1914 = vst [vmem:[#allocation2 + $0x38] sm:$0xff] %v889
    %1915 = vst [vmem:[#allocation2 + $0x40] sm:$0xff] %v1141
    %1916 = vst [vmem:[#allocation2 + $0x48] sm:$0xff] %v1393
    %1917 = vst [vmem:[#allocation2 + $0x50] sm:$0xff] %v1645
    %1918 = vst [vmem:[#allocation2 + $0x58] sm:$0xff] %v1897
    %1919 = vst [vmem:[#allocation2 + $0x60] sm:$0xff] %v641
    %1920 = vst [vmem:[#allocation2 + $0x68] sm:$0xff] %v893
    %1921 = vst [vmem:[#allocation2 + $0x70] sm:$0xff] %v1145
    %1922 = vst [vmem:[#allocation2 + $0x78] sm:$0xff] %v1397
    %1923 = vst [vmem:[#allocation2 + $0x80] sm:$0xff] %v1649
    %1924 = vst [vmem:[#allocation2 + $0x88] sm:$0xff] %v1901
    %1925 = vst [vmem:[#allocation2 + $0x90] sm:$0xff] %v645
    %1926 = vst [vmem:[#allocation2 + $0x98] sm:$0xff] %v897
    %1927 = vst [vmem:[#allocation2 + $0xa0] sm:$0xff] %v1149
    %1928 = vst [vmem:[#allocation2 + $0xa8] sm:$0xff] %v1401
    %1929 = vst [vmem:[#allocation2 + $0xb0] sm:$0xff] %v1653
    %1930 = vst [vmem:[#allocation2 + $0xb8] sm:$0xff] %v1905
    %v1931 = vld [vmem:[%s3] sm:$0xff]
    %v1932 = vld [vmem:[%s3 + $0x8] sm:$0xff]
    %v1933 = vld [vmem:[%s3 + $0x10] sm:$0xff]
    %v1934 = vld [vmem:[%s3 + $0x18] sm:$0xff]
    %v1935 = vld [vmem:[%s3 + $0x20] sm:$0xff]
    %v1936 = vld [vmem:[%s3 + $0x28] sm:$0xff]
    %v1937 = vld [vmem:[%s3 + $0x30] sm:$0x1]
    %v1938 = vld [vmem:[%s3 + $0x38] sm:$0x1]
    %v1939 = vld [vmem:[%s3 + $0x40] sm:$0x1]
    %s1940 = scalar_lea.vmem %s3, 72
    %v1941 = vld [vmem:[%s1940] sm:$0xff]
    %v1942 = vld [vmem:[%s1940 + $0x8] sm:$0xff]
    %v1943 = vld [vmem:[%s1940 + $0x10] sm:$0xff]
    %v1944 = vld [vmem:[%s1940 + $0x18] sm:$0xff]
    %v1945 = vld [vmem:[%s1940 + $0x20] sm:$0xff]
    %v1946 = vld [vmem:[%s1940 + $0x28] sm:$0xff]
    %v1947 = vld [vmem:[%s1940 + $0x30] sm:$0x1]
    %v1948 = vld [vmem:[%s1940 + $0x38] sm:$0x1]
    %v1949 = vld [vmem:[%s1940 + $0x40] sm:$0x1]
    %v1950 = vld [vmem:[%s4 + $0x6] sm:$0x1]
    %v1952 = vperm.slane %v1950, 0
    %v1954 = vld [vmem:[%s4 + $0x7] sm:$0x1]
    %v1956 = vperm.slane %v1954, 0
    %v1958 = vld [vmem:[#allocation2] sm:$0xf]
    %v1959 = vld [vmem:[#allocation2 + $0x8] sm:$0xf]
    %v1960 = vld [vmem:[#allocation2 + $0x10] sm:$0xf]
    %vm1961 = vcmask 138240
    %v1963 = vsel %vm1961, 0.0, 0
    %vm1965 = vcmask 1040384
    %v1967 = vsel %vm1965, %v1937, 0
    %v1970 = vsel %vm1965, %v1938, 0
    %v1973 = vsel %vm1965, %v1939, 0
    %1975 = vmatpush.msra.mxu0 0.0
    %1976 = vmatpush.msra.mxu0 0.0
    %1977 = vmatpush.msra.mxu0 0.0
    %1978 = vmatpush.msra.mxu0 0.0
    %1979 = vmatpush.msra.mxu0 0.0
    %1980 = vmatpush.msra.mxu0 0.0
    %1981 = vmatpush.msra.mxu0 0.0
    %1982 = vmatpush.msra.mxu0 0.0
    %1983 = vmatpush.msra.mxu0 0.0
    %1984 = vmatpush.msra.mxu0 0.0
    %1985 = vmatpush.msra.mxu0 0.0
    %1986 = vmatpush.msra.mxu0 0.0
    %1987 = vmatpush.msra.mxu0 0.0
    %1988 = vmatpush.msra.mxu0 %v1967
    %1989 = vmatpush.msra.mxu0 %v1934
    %1990 = vmatpush.msra.mxu0 %v1931
    %1991 = vmatmul.f32.gmra.mxu0 %v1963
    %v1992 = vpop.f32.mrf.mxu0
    %v1993 = vadd.f32 0.0, %v1992
    %1994 = vdwg.mxu0
    %1995 = vmatpush.msra.mxu0 0.0
    %1996 = vmatpush.msra.mxu0 0.0
    %1997 = vmatpush.msra.mxu0 0.0
    %1998 = vmatpush.msra.mxu0 0.0
    %1999 = vmatpush.msra.mxu0 0.0
    %2000 = vmatpush.msra.mxu0 0.0
    %2001 = vmatpush.msra.mxu0 0.0
    %2002 = vmatpush.msra.mxu0 0.0
    %2003 = vmatpush.msra.mxu0 0.0
    %2004 = vmatpush.msra.mxu0 0.0
    %2005 = vmatpush.msra.mxu0 0.0
    %2006 = vmatpush.msra.mxu0 0.0
    %2007 = vmatpush.msra.mxu0 0.0
    %2008 = vmatpush.msra.mxu0 %v1970
    %2009 = vmatpush.msra.mxu0 %v1935
    %2010 = vmatpush.msra.mxu0 %v1932
    %2011 = vmatmul.f32.gmra.mxu0 %v1963
    %v2012 = vpop.f32.mrf.mxu0
    %v2013 = vadd.f32 0.0, %v2012
    %2014 = vdwg.mxu0
    %2015 = vmatpush.msra.mxu0 0.0
    %2016 = vmatpush.msra.mxu0 0.0
    %2017 = vmatpush.msra.mxu0 0.0
    %2018 = vmatpush.msra.mxu0 0.0
    %2019 = vmatpush.msra.mxu0 0.0
    %2020 = vmatpush.msra.mxu0 0.0
    %2021 = vmatpush.msra.mxu0 0.0
    %2022 = vmatpush.msra.mxu0 0.0
    %2023 = vmatpush.msra.mxu0 0.0
    %2024 = vmatpush.msra.mxu0 0.0
    %2025 = vmatpush.msra.mxu0 0.0
    %2026 = vmatpush.msra.mxu0 0.0
    %2027 = vmatpush.msra.mxu0 0.0
    %2028 = vmatpush.msra.mxu0 %v1973
    %2029 = vmatpush.msra.mxu0 %v1936
    %2030 = vmatpush.msra.mxu0 %v1933
    %2031 = vmatmul.f32.gmra.mxu0 %v1963
    %v2032 = vpop.f32.mrf.mxu0
    %v2033 = vadd.f32 0.0, %v2032
    %2034 = vdwg.mxu0
    %v2035 = vadd.f32 %v1958, %v1993
    %v2036 = vxor.u32 %v2035, 2147483648
    %v2037 = vmul.f32 %v2036, 1.442695
    %v2038 = vpow.pop %v2037
    %v2039 = vadd.f32 %v2038, 1.0
    %v2040 = vrcp.pop %v2039
    %v2041 = vmul.f32 %v2039, %v2040
    %v2042 = vsub.f32 1.0, %v2041
    %v2043 = vmul.f32 %v2040, %v2042
    %v2044 = vadd.f32 %v2040, %v2043
    %vm2045 = vweird.f32 %v2039
    %vm2046 = vweird.f32 %v2040
    %vm2047 = vmor %vm2045, %vm2046
    %v2048 = vsel %vm2047, %v2040, %v2044
    %v2049 = vand.u32 2147483647, %v2039
    %vm2050 = vcmp.eq.f32.partialorder %v2049, 8.507059e+37
    %v2051 = vand.u32 %v2039, 2147483648
    %v2052 = vor.u32 1.1754944e-38, %v2051
    %v2053 = vsel %vm2050, %v2052, %v2048
    %v2054 = vmul.f32 1.0, %v2053
    %v2055 = vadd.f32 %v1959, %v2013
    %v2056 = vxor.u32 %v2055, 2147483648
    %v2057 = vmul.f32 %v2056, 1.442695
    %v2058 = vpow.pop %v2057
    %v2059 = vadd.f32 %v2058, 1.0
    %v2060 = vrcp.pop %v2059
    %v2061 = vmul.f32 %v2059, %v2060
    %v2062 = vsub.f32 1.0, %v2061
    %v2063 = vmul.f32 %v2060, %v2062
    %v2064 = vadd.f32 %v2060, %v2063
    %vm2065 = vweird.f32 %v2059
    %vm2066 = vweird.f32 %v2060
    %vm2067 = vmor %vm2065, %vm2066
    %v2068 = vsel %vm2067, %v2060, %v2064
    %v2069 = vand.u32 2147483647, %v2059
    %vm2070 = vcmp.eq.f32.partialorder %v2069, 8.507059e+37
    %v2071 = vand.u32 %v2059, 2147483648
    %v2072 = vor.u32 1.1754944e-38, %v2071
    %v2073 = vsel %vm2070, %v2072, %v2068
    %v2074 = vmul.f32 1.0, %v2073
    %v2075 = vadd.f32 %v2033, %v1952
    %v2076 = vmul.f32 %v2054, %v2075
    %v2077 = vadd.f32 %v1960, %v2076
    %v2078 = vtanh.pop %v2077
    %v2079 = vsub.f32 1.0, %v2074
    %v2080 = vmul.f32 %v2079, %v2078
    %v2081 = vmul.f32 %v2074, 0.0
    %v2082 = vadd.f32 %v2080, %v2081
    %v2083 = vld [vmem:[#allocation2 + $0xa8] sm:$0xf0]
    %v2084 = vld [vmem:[#allocation2 + $0xb0] sm:$0xf0]
    %v2085 = vld [vmem:[#allocation2 + $0xb8] sm:$0xf0]
    %v2087 = vsel %vm1965, %v1947, 0
    %v2090 = vsel %vm1965, %v1948, 0
    %v2093 = vsel %vm1965, %v1949, 0
    %2095 = vmatpush.msra.mxu0 0.0
    %2096 = vmatpush.msra.mxu0 0.0
    %2097 = vmatpush.msra.mxu0 0.0
    %2098 = vmatpush.msra.mxu0 0.0
    %2099 = vmatpush.msra.mxu0 0.0
    %2100 = vmatpush.msra.mxu0 0.0
    %2101 = vmatpush.msra.mxu0 0.0
    %2102 = vmatpush.msra.mxu0 0.0
    %2103 = vmatpush.msra.mxu0 0.0
    %2104 = vmatpush.msra.mxu0 0.0
    %2105 = vmatpush.msra.mxu0 0.0
    %2106 = vmatpush.msra.mxu0 0.0
    %2107 = vmatpush.msra.mxu0 0.0
    %2108 = vmatpush.msra.mxu0 %v2087
    %2109 = vmatpush.msra.mxu0 %v1944
    %2110 = vmatpush.msra.mxu0 %v1941
    %2111 = vmatmul.f32.gmra.mxu0 %v1963
    %v2112 = vpop.f32.mrf.mxu0
    %v2113 = vadd.f32 0.0, %v2112
    %2114 = vdwg.mxu0
    %2115 = vmatpush.msra.mxu0 0.0
    %2116 = vmatpush.msra.mxu0 0.0
    %2117 = vmatpush.msra.mxu0 0.0
    %2118 = vmatpush.msra.mxu0 0.0
    %2119 = vmatpush.msra.mxu0 0.0
    %2120 = vmatpush.msra.mxu0 0.0
    %2121 = vmatpush.msra.mxu0 0.0
    %2122 = vmatpush.msra.mxu0 0.0
    %2123 = vmatpush.msra.mxu0 0.0
    %2124 = vmatpush.msra.mxu0 0.0
    %2125 = vmatpush.msra.mxu0 0.0
    %2126 = vmatpush.msra.mxu0 0.0
    %2127 = vmatpush.msra.mxu0 0.0
    %2128 = vmatpush.msra.mxu0 %v2090
    %2129 = vmatpush.msra.mxu0 %v1945
    %2130 = vmatpush.msra.mxu0 %v1942
    %2131 = vmatmul.f32.gmra.mxu0 %v1963
    %v2132 = vpop.f32.mrf.mxu0
    %v2133 = vadd.f32 0.0, %v2132
    %2134 = vdwg.mxu0
    %2135 = vmatpush.msra.mxu0 0.0
    %2136 = vmatpush.msra.mxu0 0.0
    %2137 = vmatpush.msra.mxu0 0.0
    %2138 = vmatpush.msra.mxu0 0.0
    %2139 = vmatpush.msra.mxu0 0.0
    %2140 = vmatpush.msra.mxu0 0.0
    %2141 = vmatpush.msra.mxu0 0.0
    %2142 = vmatpush.msra.mxu0 0.0
    %2143 = vmatpush.msra.mxu0 0.0
    %2144 = vmatpush.msra.mxu0 0.0
    %2145 = vmatpush.msra.mxu0 0.0
    %2146 = vmatpush.msra.mxu0 0.0
    %2147 = vmatpush.msra.mxu0 0.0
    %2148 = vmatpush.msra.mxu0 %v2093
    %2149 = vmatpush.msra.mxu0 %v1946
    %2150 = vmatpush.msra.mxu0 %v1943
    %2151 = vmatmul.f32.gmra.mxu0 %v1963
    %v2152 = vpop.f32.mrf.mxu0
    %v2153 = vadd.f32 0.0, %v2152
    %2154 = vdwg.mxu0
    %v2156 = vrot.slane %v2113, 4
    %v2158 = vadd.f32 %v2083, %v2156
    %v2159 = vxor.u32 %v2158, 2147483648
    %v2160 = vmul.f32 %v2159, 1.442695
    %v2161 = vpow.pop %v2160
    %v2162 = vadd.f32 %v2161, 1.0
    %v2163 = vrcp.pop %v2162
    %v2164 = vmul.f32 %v2162, %v2163
    %v2165 = vsub.f32 1.0, %v2164
    %v2166 = vmul.f32 %v2163, %v2165
    %v2167 = vadd.f32 %v2163, %v2166
    %vm2168 = vweird.f32 %v2162
    %vm2169 = vweird.f32 %v2163
    %vm2170 = vmor %vm2168, %vm2169
    %v2171 = vsel %vm2170, %v2163, %v2167
    %v2172 = vand.u32 2147483647, %v2162
    %vm2173 = vcmp.eq.f32.partialorder %v2172, 8.507059e+37
    %v2174 = vand.u32 %v2162, 2147483648
    %v2175 = vor.u32 1.1754944e-38, %v2174
    %v2176 = vsel %vm2173, %v2175, %v2171
    %v2177 = vmul.f32 1.0, %v2176
    %v2179 = vrot.slane %v2133, 4
    %v2181 = vadd.f32 %v2084, %v2179
    %v2182 = vxor.u32 %v2181, 2147483648
    %v2183 = vmul.f32 %v2182, 1.442695
    %v2184 = vpow.pop %v2183
    %v2185 = vadd.f32 %v2184, 1.0
    %v2186 = vrcp.pop %v2185
    %v2187 = vmul.f32 %v2185, %v2186
    %v2188 = vsub.f32 1.0, %v2187
    %v2189 = vmul.f32 %v2186, %v2188
    %v2190 = vadd.f32 %v2186, %v2189
    %vm2191 = vweird.f32 %v2185
    %vm2192 = vweird.f32 %v2186
    %vm2193 = vmor %vm2191, %vm2192
    %v2194 = vsel %vm2193, %v2186, %v2190
    %v2195 = vand.u32 2147483647, %v2185
    %vm2196 = vcmp.eq.f32.partialorder %v2195, 8.507059e+37
    %v2197 = vand.u32 %v2185, 2147483648
    %v2198 = vor.u32 1.1754944e-38, %v2197
    %v2199 = vsel %vm2196, %v2198, %v2194
    %v2200 = vmul.f32 1.0, %v2199
    %v2201 = vadd.f32 %v2153, %v1956
    %v2203 = vrot.slane %v2201, 4
    %v2205 = vmul.f32 %v2177, %v2203
    %v2206 = vadd.f32 %v2085, %v2205
    %v2207 = vtanh.pop %v2206
    %v2208 = vsub.f32 1.0, %v2200
    %v2209 = vmul.f32 %v2208, %v2207
    %v2210 = vmul.f32 %v2200, 0.0
    %v2211 = vadd.f32 %v2209, %v2210
    %vm2212 = vcmask 134144
    %2213 = vst.msk [vmem:[%s6] sm:$0xf] %vm2212, %v2082
    %s2214 = scalar_lea.vmem %s7, 28
    %vm2215 = vcmask 138244
    %2216 = vst.msk [vmem:[%s2214 - $0x4] sm:$0xf0] %vm2215, %v2211
    %v2217 = vld [vmem:[#allocation2] sm:$0xf0]
    %v2218 = vld [vmem:[#allocation2 + $0x8] sm:$0xf0]
    %v2219 = vld [vmem:[#allocation2 + $0x10] sm:$0xf0]
    %v2221 = vsel %vm1961, %v2082, 0
    %2223 = vmatpush.msra.mxu0 0.0
    %2224 = vmatpush.msra.mxu0 0.0
    %2225 = vmatpush.msra.mxu0 0.0
    %2226 = vmatpush.msra.mxu0 0.0
    %2227 = vmatpush.msra.mxu0 0.0
    %2228 = vmatpush.msra.mxu0 0.0
    %2229 = vmatpush.msra.mxu0 0.0
    %2230 = vmatpush.msra.mxu0 0.0
    %2231 = vmatpush.msra.mxu0 0.0
    %2232 = vmatpush.msra.mxu0 0.0
    %2233 = vmatpush.msra.mxu0 0.0
    %2234 = vmatpush.msra.mxu0 0.0
    %2235 = vmatpush.msra.mxu0 0.0
    %2236 = vmatpush.msra.mxu0 %v1967
    %2237 = vmatpush.msra.mxu0 %v1934
    %2238 = vmatpush.msra.mxu0 %v1931
    %2239 = vmatmul.f32.gmra.mxu0 %v2221
    %v2240 = vpop.f32.mrf.mxu0
    %v2241 = vadd.f32 0.0, %v2240
    %2242 = vdwg.mxu0
    %2243 = vmatpush.msra.mxu0 0.0
    %2244 = vmatpush.msra.mxu0 0.0
    %2245 = vmatpush.msra.mxu0 0.0
    %2246 = vmatpush.msra.mxu0 0.0
    %2247 = vmatpush.msra.mxu0 0.0
    %2248 = vmatpush.msra.mxu0 0.0
    %2249 = vmatpush.msra.mxu0 0.0
    %2250 = vmatpush.msra.mxu0 0.0
    %2251 = vmatpush.msra.mxu0 0.0
    %2252 = vmatpush.msra.mxu0 0.0
    %2253 = vmatpush.msra.mxu0 0.0
    %2254 = vmatpush.msra.mxu0 0.0
    %2255 = vmatpush.msra.mxu0 0.0
    %2256 = vmatpush.msra.mxu0 %v1970
    %2257 = vmatpush.msra.mxu0 %v1935
    %2258 = vmatpush.msra.mxu0 %v1932
    %2259 = vmatmul.f32.gmra.mxu0 %v2221
    %v2260 = vpop.f32.mrf.mxu0
    %v2261 = vadd.f32 0.0, %v2260
    %2262 = vdwg.mxu0
    %2263 = vmatpush.msra.mxu0 0.0
    %2264 = vmatpush.msra.mxu0 0.0
    %2265 = vmatpush.msra.mxu0 0.0
    %2266 = vmatpush.msra.mxu0 0.0
    %2267 = vmatpush.msra.mxu0 0.0
    %2268 = vmatpush.msra.mxu0 0.0
    %2269 = vmatpush.msra.mxu0 0.0
    %2270 = vmatpush.msra.mxu0 0.0
    %2271 = vmatpush.msra.mxu0 0.0
    %2272 = vmatpush.msra.mxu0 0.0
    %2273 = vmatpush.msra.mxu0 0.0
    %2274 = vmatpush.msra.mxu0 0.0
    %2275 = vmatpush.msra.mxu0 0.0
    %2276 = vmatpush.msra.mxu0 %v1973
    %2277 = vmatpush.msra.mxu0 %v1936
    %2278 = vmatpush.msra.mxu0 %v1933
    %2279 = vmatmul.f32.gmra.mxu0 %v2221
    %v2280 = vpop.f32.mrf.mxu0
    %v2281 = vadd.f32 0.0, %v2280
    %2282 = vdwg.mxu0
    %v2284 = vrot.slane %v2241, 4
    %v2286 = vadd.f32 %v2217, %v2284
    %v2287 = vxor.u32 %v2286, 2147483648
    %v2288 = vmul.f32 %v2287, 1.442695
    %v2289 = vpow.pop %v2288
    %v2290 = vadd.f32 %v2289, 1.0
    %v2291 = vrcp.pop %v2290
    %v2292 = vmul.f32 %v2290, %v2291
    %v2293 = vsub.f32 1.0, %v2292
    %v2294 = vmul.f32 %v2291, %v2293
    %v2295 = vadd.f32 %v2291, %v2294
    %vm2296 = vweird.f32 %v2290
    %vm2297 = vweird.f32 %v2291
    %vm2298 = vmor %vm2296, %vm2297
    %v2299 = vsel %vm2298, %v2291, %v2295
    %v2300 = vand.u32 2147483647, %v2290
    %vm2301 = vcmp.eq.f32.partialorder %v2300, 8.507059e+37
    %v2302 = vand.u32 %v2290, 2147483648
    %v2303 = vor.u32 1.1754944e-38, %v2302
    %v2304 = vsel %vm2301, %v2303, %v2299
    %v2305 = vmul.f32 1.0, %v2304
    %v2307 = vrot.slane %v2261, 4
    %v2309 = vadd.f32 %v2218, %v2307
    %v2310 = vxor.u32 %v2309, 2147483648
    %v2311 = vmul.f32 %v2310, 1.442695
    %v2312 = vpow.pop %v2311
    %v2313 = vadd.f32 %v2312, 1.0
    %v2314 = vrcp.pop %v2313
    %v2315 = vmul.f32 %v2313, %v2314
    %v2316 = vsub.f32 1.0, %v2315
    %v2317 = vmul.f32 %v2314, %v2316
    %v2318 = vadd.f32 %v2314, %v2317
    %vm2319 = vweird.f32 %v2313
    %vm2320 = vweird.f32 %v2314
    %vm2321 = vmor %vm2319, %vm2320
    %v2322 = vsel %vm2321, %v2314, %v2318
    %v2323 = vand.u32 2147483647, %v2313
    %vm2324 = vcmp.eq.f32.partialorder %v2323, 8.507059e+37
    %v2325 = vand.u32 %v2313, 2147483648
    %v2326 = vor.u32 1.1754944e-38, %v2325
    %v2327 = vsel %vm2324, %v2326, %v2322
    %v2328 = vmul.f32 1.0, %v2327
    %v2329 = vadd.f32 %v2281, %v1952
    %v2331 = vrot.slane %v2329, 4
    %v2333 = vmul.f32 %v2305, %v2331
    %v2334 = vadd.f32 %v2219, %v2333
    %v2335 = vtanh.pop %v2334
    %v2336 = vsub.f32 1.0, %v2328
    %v2337 = vmul.f32 %v2336, %v2335
    %v2338 = vrot.slane %v2082, 4
    %v2340 = vmul.f32 %v2328, %v2338
    %v2341 = vadd.f32 %v2337, %v2340
    %v2342 = vld [vmem:[#allocation2 + $0xa8] sm:$0xf]
    %v2343 = vld [vmem:[#allocation2 + $0xb0] sm:$0xf]
    %v2344 = vld [vmem:[#allocation2 + $0xb8] sm:$0xf]
    %v2346 = vrot.slane %v2211, 4
    %v2347 = vsel %vm1961, %v2346, 0
    %2349 = vmatpush.msra.mxu0 0.0
    %2350 = vmatpush.msra.mxu0 0.0
    %2351 = vmatpush.msra.mxu0 0.0
    %2352 = vmatpush.msra.mxu0 0.0
    %2353 = vmatpush.msra.mxu0 0.0
    %2354 = vmatpush.msra.mxu0 0.0
    %2355 = vmatpush.msra.mxu0 0.0
    %2356 = vmatpush.msra.mxu0 0.0
    %2357 = vmatpush.msra.mxu0 0.0
    %2358 = vmatpush.msra.mxu0 0.0
    %2359 = vmatpush.msra.mxu0 0.0
    %2360 = vmatpush.msra.mxu0 0.0
    %2361 = vmatpush.msra.mxu0 0.0
    %2362 = vmatpush.msra.mxu0 %v2087
    %2363 = vmatpush.msra.mxu0 %v1944
    %2364 = vmatpush.msra.mxu0 %v1941
    %2365 = vmatmul.f32.gmra.mxu0 %v2347
    %v2366 = vpop.f32.mrf.mxu0
    %v2367 = vadd.f32 0.0, %v2366
    %2368 = vdwg.mxu0
    %2369 = vmatpush.msra.mxu0 0.0
    %2370 = vmatpush.msra.mxu0 0.0
    %2371 = vmatpush.msra.mxu0 0.0
    %2372 = vmatpush.msra.mxu0 0.0
    %2373 = vmatpush.msra.mxu0 0.0
    %2374 = vmatpush.msra.mxu0 0.0
    %2375 = vmatpush.msra.mxu0 0.0
    %2376 = vmatpush.msra.mxu0 0.0
    %2377 = vmatpush.msra.mxu0 0.0
    %2378 = vmatpush.msra.mxu0 0.0
    %2379 = vmatpush.msra.mxu0 0.0
    %2380 = vmatpush.msra.mxu0 0.0
    %2381 = vmatpush.msra.mxu0 0.0
    %2382 = vmatpush.msra.mxu0 %v2090
    %2383 = vmatpush.msra.mxu0 %v1945
    %2384 = vmatpush.msra.mxu0 %v1942
    %2385 = vmatmul.f32.gmra.mxu0 %v2347
    %v2386 = vpop.f32.mrf.mxu0
    %v2387 = vadd.f32 0.0, %v2386
    %2388 = vdwg.mxu0
    %2389 = vmatpush.msra.mxu0 0.0
    %2390 = vmatpush.msra.mxu0 0.0
    %2391 = vmatpush.msra.mxu0 0.0
    %2392 = vmatpush.msra.mxu0 0.0
    %2393 = vmatpush.msra.mxu0 0.0
    %2394 = vmatpush.msra.mxu0 0.0
    %2395 = vmatpush.msra.mxu0 0.0
    %2396 = vmatpush.msra.mxu0 0.0
    %2397 = vmatpush.msra.mxu0 0.0
    %2398 = vmatpush.msra.mxu0 0.0
    %2399 = vmatpush.msra.mxu0 0.0
    %2400 = vmatpush.msra.mxu0 0.0
    %2401 = vmatpush.msra.mxu0 0.0
    %2402 = vmatpush.msra.mxu0 %v2093
    %2403 = vmatpush.msra.mxu0 %v1946
    %2404 = vmatpush.msra.mxu0 %v1943
    %2405 = vmatmul.f32.gmra.mxu0 %v2347
    %v2406 = vpop.f32.mrf.mxu0
    %v2407 = vadd.f32 0.0, %v2406
    %2408 = vdwg.mxu0
    %v2409 = vadd.f32 %v2342, %v2367
    %v2410 = vxor.u32 %v2409, 2147483648
    %v2411 = vmul.f32 %v2410, 1.442695
    %v2412 = vpow.pop %v2411
    %v2413 = vadd.f32 %v2412, 1.0
    %v2414 = vrcp.pop %v2413
    %v2415 = vmul.f32 %v2413, %v2414
    %v2416 = vsub.f32 1.0, %v2415
    %v2417 = vmul.f32 %v2414, %v2416
    %v2418 = vadd.f32 %v2414, %v2417
    %vm2419 = vweird.f32 %v2413
    %vm2420 = vweird.f32 %v2414
    %vm2421 = vmor %vm2419, %vm2420
    %v2422 = vsel %vm2421, %v2414, %v2418
    %v2423 = vand.u32 2147483647, %v2413
    %vm2424 = vcmp.eq.f32.partialorder %v2423, 8.507059e+37
    %v2425 = vand.u32 %v2413, 2147483648
    %v2426 = vor.u32 1.1754944e-38, %v2425
    %v2427 = vsel %vm2424, %v2426, %v2422
    %v2428 = vmul.f32 1.0, %v2427
    %v2429 = vadd.f32 %v2343, %v2387
    %v2430 = vxor.u32 %v2429, 2147483648
    %v2431 = vmul.f32 %v2430, 1.442695
    %v2432 = vpow.pop %v2431
    %v2433 = vadd.f32 %v2432, 1.0
    %v2434 = vrcp.pop %v2433
    %v2435 = vmul.f32 %v2433, %v2434
    %v2436 = vsub.f32 1.0, %v2435
    %v2437 = vmul.f32 %v2434, %v2436
    %v2438 = vadd.f32 %v2434, %v2437
    %vm2439 = vweird.f32 %v2433
    %vm2440 = vweird.f32 %v2434
    %vm2441 = vmor %vm2439, %vm2440
    %v2442 = vsel %vm2441, %v2434, %v2438
    %v2443 = vand.u32 2147483647, %v2433
    %vm2444 = vcmp.eq.f32.partialorder %v2443, 8.507059e+37
    %v2445 = vand.u32 %v2433, 2147483648
    %v2446 = vor.u32 1.1754944e-38, %v2445
    %v2447 = vsel %vm2444, %v2446, %v2442
    %v2448 = vmul.f32 1.0, %v2447
    %v2449 = vadd.f32 %v2407, %v1956
    %v2450 = vmul.f32 %v2428, %v2449
    %v2451 = vadd.f32 %v2344, %v2450
    %v2452 = vtanh.pop %v2451
    %v2453 = vsub.f32 1.0, %v2448
    %v2454 = vmul.f32 %v2453, %v2452
    %v2456 = vmul.f32 %v2448, %v2346
    %v2457 = vadd.f32 %v2454, %v2456
    %s2458 = scalar_lea.vmem %s6, 4
    %2459 = vst.msk [vmem:[%s2458 - $0x4] sm:$0xf0] %vm2215, %v2341
    %s2460 = scalar_lea.vmem %s7, 24
    %2461 = vst.msk [vmem:[%s2460] sm:$0xf] %vm2212, %v2457
    %v2462 = vld [vmem:[#allocation2 + $0x30] sm:$0xf]
    %v2463 = vld [vmem:[#allocation2 + $0x38] sm:$0xf]
    %v2464 = vld [vmem:[#allocation2 + $0x40] sm:$0xf]
    %v2466 = vrot.slane %v2341, 4
    %v2467 = vsel %vm1961, %v2466, 0
    %2469 = vmatpush.msra.mxu0 0.0
    %2470 = vmatpush.msra.mxu0 0.0
    %2471 = vmatpush.msra.mxu0 0.0
    %2472 = vmatpush.msra.mxu0 0.0
    %2473 = vmatpush.msra.mxu0 0.0
    %2474 = vmatpush.msra.mxu0 0.0
    %2475 = vmatpush.msra.mxu0 0.0
    %2476 = vmatpush.msra.mxu0 0.0
    %2477 = vmatpush.msra.mxu0 0.0
    %2478 = vmatpush.msra.mxu0 0.0
    %2479 = vmatpush.msra.mxu0 0.0
    %2480 = vmatpush.msra.mxu0 0.0
    %2481 = vmatpush.msra.mxu0 0.0
    %2482 = vmatpush.msra.mxu0 %v1967
    %2483 = vmatpush.msra.mxu0 %v1934
    %2484 = vmatpush.msra.mxu0 %v1931
    %2485 = vmatmul.f32.gmra.mxu0 %v2467
    %v2486 = vpop.f32.mrf.mxu0
    %v2487 = vadd.f32 0.0, %v2486
    %2488 = vdwg.mxu0
    %2489 = vmatpush.msra.mxu0 0.0
    %2490 = vmatpush.msra.mxu0 0.0
    %2491 = vmatpush.msra.mxu0 0.0
    %2492 = vmatpush.msra.mxu0 0.0
    %2493 = vmatpush.msra.mxu0 0.0
    %2494 = vmatpush.msra.mxu0 0.0
    %2495 = vmatpush.msra.mxu0 0.0
    %2496 = vmatpush.msra.mxu0 0.0
    %2497 = vmatpush.msra.mxu0 0.0
    %2498 = vmatpush.msra.mxu0 0.0
    %2499 = vmatpush.msra.mxu0 0.0
    %2500 = vmatpush.msra.mxu0 0.0
    %2501 = vmatpush.msra.mxu0 0.0
    %2502 = vmatpush.msra.mxu0 %v1970
    %2503 = vmatpush.msra.mxu0 %v1935
    %2504 = vmatpush.msra.mxu0 %v1932
    %2505 = vmatmul.f32.gmra.mxu0 %v2467
    %v2506 = vpop.f32.mrf.mxu0
    %v2507 = vadd.f32 0.0, %v2506
    %2508 = vdwg.mxu0
    %2509 = vmatpush.msra.mxu0 0.0
    %2510 = vmatpush.msra.mxu0 0.0
    %2511 = vmatpush.msra.mxu0 0.0
    %2512 = vmatpush.msra.mxu0 0.0
    %2513 = vmatpush.msra.mxu0 0.0
    %2514 = vmatpush.msra.mxu0 0.0
    %2515 = vmatpush.msra.mxu0 0.0
    %2516 = vmatpush.msra.mxu0 0.0
    %2517 = vmatpush.msra.mxu0 0.0
    %2518 = vmatpush.msra.mxu0 0.0
    %2519 = vmatpush.msra.mxu0 0.0
    %2520 = vmatpush.msra.mxu0 0.0
    %2521 = vmatpush.msra.mxu0 0.0
    %2522 = vmatpush.msra.mxu0 %v1973
    %2523 = vmatpush.msra.mxu0 %v1936
    %2524 = vmatpush.msra.mxu0 %v1933
    %2525 = vmatmul.f32.gmra.mxu0 %v2467
    %v2526 = vpop.f32.mrf.mxu0
    %v2527 = vadd.f32 0.0, %v2526
    %2528 = vdwg.mxu0
    %v2529 = vadd.f32 %v2462, %v2487
    %v2530 = vxor.u32 %v2529, 2147483648
    %v2531 = vmul.f32 %v2530, 1.442695
    %v2532 = vpow.pop %v2531
    %v2533 = vadd.f32 %v2532, 1.0
    %v2534 = vrcp.pop %v2533
    %v2535 = vmul.f32 %v2533, %v2534
    %v2536 = vsub.f32 1.0, %v2535
    %v2537 = vmul.f32 %v2534, %v2536
    %v2538 = vadd.f32 %v2534, %v2537
    %vm2539 = vweird.f32 %v2533
    %vm2540 = vweird.f32 %v2534
    %vm2541 = vmor %vm2539, %vm2540
    %v2542 = vsel %vm2541, %v2534, %v2538
    %v2543 = vand.u32 2147483647, %v2533
    %vm2544 = vcmp.eq.f32.partialorder %v2543, 8.507059e+37
    %v2545 = vand.u32 %v2533, 2147483648
    %v2546 = vor.u32 1.1754944e-38, %v2545
    %v2547 = vsel %vm2544, %v2546, %v2542
    %v2548 = vmul.f32 1.0, %v2547
    %v2549 = vadd.f32 %v2463, %v2507
    %v2550 = vxor.u32 %v2549, 2147483648
    %v2551 = vmul.f32 %v2550, 1.442695
    %v2552 = vpow.pop %v2551
    %v2553 = vadd.f32 %v2552, 1.0
    %v2554 = vrcp.pop %v2553
    %v2555 = vmul.f32 %v2553, %v2554
    %v2556 = vsub.f32 1.0, %v2555
    %v2557 = vmul.f32 %v2554, %v2556
    %v2558 = vadd.f32 %v2554, %v2557
    %vm2559 = vweird.f32 %v2553
    %vm2560 = vweird.f32 %v2554
    %vm2561 = vmor %vm2559, %vm2560
    %v2562 = vsel %vm2561, %v2554, %v2558
    %v2563 = vand.u32 2147483647, %v2553
    %vm2564 = vcmp.eq.f32.partialorder %v2563, 8.507059e+37
    %v2565 = vand.u32 %v2553, 2147483648
    %v2566 = vor.u32 1.1754944e-38, %v2565
    %v2567 = vsel %vm2564, %v2566, %v2562
    %v2568 = vmul.f32 1.0, %v2567
    %v2569 = vadd.f32 %v2527, %v1952
    %v2570 = vmul.f32 %v2548, %v2569
    %v2571 = vadd.f32 %v2464, %v2570
    %v2572 = vtanh.pop %v2571
    %v2573 = vsub.f32 1.0, %v2568
    %v2574 = vmul.f32 %v2573, %v2572
    %v2576 = vmul.f32 %v2568, %v2466
    %v2577 = vadd.f32 %v2574, %v2576
    %v2578 = vld [vmem:[#allocation2 + $0x78] sm:$0xf0]
    %v2579 = vld [vmem:[#allocation2 + $0x80] sm:$0xf0]
    %v2580 = vld [vmem:[#allocation2 + $0x88] sm:$0xf0]
    %v2582 = vsel %vm1961, %v2457, 0
    %2584 = vmatpush.msra.mxu0 0.0
    %2585 = vmatpush.msra.mxu0 0.0
    %2586 = vmatpush.msra.mxu0 0.0
    %2587 = vmatpush.msra.mxu0 0.0
    %2588 = vmatpush.msra.mxu0 0.0
    %2589 = vmatpush.msra.mxu0 0.0
    %2590 = vmatpush.msra.mxu0 0.0
    %2591 = vmatpush.msra.mxu0 0.0
    %2592 = vmatpush.msra.mxu0 0.0
    %2593 = vmatpush.msra.mxu0 0.0
    %2594 = vmatpush.msra.mxu0 0.0
    %2595 = vmatpush.msra.mxu0 0.0
    %2596 = vmatpush.msra.mxu0 0.0
    %2597 = vmatpush.msra.mxu0 %v2087
    %2598 = vmatpush.msra.mxu0 %v1944
    %2599 = vmatpush.msra.mxu0 %v1941
    %2600 = vmatmul.f32.gmra.mxu0 %v2582
    %v2601 = vpop.f32.mrf.mxu0
    %v2602 = vadd.f32 0.0, %v2601
    %2603 = vdwg.mxu0
    %2604 = vmatpush.msra.mxu0 0.0
    %2605 = vmatpush.msra.mxu0 0.0
    %2606 = vmatpush.msra.mxu0 0.0
    %2607 = vmatpush.msra.mxu0 0.0
    %2608 = vmatpush.msra.mxu0 0.0
    %2609 = vmatpush.msra.mxu0 0.0
    %2610 = vmatpush.msra.mxu0 0.0
    %2611 = vmatpush.msra.mxu0 0.0
    %2612 = vmatpush.msra.mxu0 0.0
    %2613 = vmatpush.msra.mxu0 0.0
    %2614 = vmatpush.msra.mxu0 0.0
    %2615 = vmatpush.msra.mxu0 0.0
    %2616 = vmatpush.msra.mxu0 0.0
    %2617 = vmatpush.msra.mxu0 %v2090
    %2618 = vmatpush.msra.mxu0 %v1945
    %2619 = vmatpush.msra.mxu0 %v1942
    %2620 = vmatmul.f32.gmra.mxu0 %v2582
    %v2621 = vpop.f32.mrf.mxu0
    %v2622 = vadd.f32 0.0, %v2621
    %2623 = vdwg.mxu0
    %2624 = vmatpush.msra.mxu0 0.0
    %2625 = vmatpush.msra.mxu0 0.0
    %2626 = vmatpush.msra.mxu0 0.0
    %2627 = vmatpush.msra.mxu0 0.0
    %2628 = vmatpush.msra.mxu0 0.0
    %2629 = vmatpush.msra.mxu0 0.0
    %2630 = vmatpush.msra.mxu0 0.0
    %2631 = vmatpush.msra.mxu0 0.0
    %2632 = vmatpush.msra.mxu0 0.0
    %2633 = vmatpush.msra.mxu0 0.0
    %2634 = vmatpush.msra.mxu0 0.0
    %2635 = vmatpush.msra.mxu0 0.0
    %2636 = vmatpush.msra.mxu0 0.0
    %2637 = vmatpush.msra.mxu0 %v2093
    %2638 = vmatpush.msra.mxu0 %v1946
    %2639 = vmatpush.msra.mxu0 %v1943
    %2640 = vmatmul.f32.gmra.mxu0 %v2582
    %v2641 = vpop.f32.mrf.mxu0
    %v2642 = vadd.f32 0.0, %v2641
    %2643 = vdwg.mxu0
    %v2645 = vrot.slane %v2602, 4
    %v2647 = vadd.f32 %v2578, %v2645
    %v2648 = vxor.u32 %v2647, 2147483648
    %v2649 = vmul.f32 %v2648, 1.442695
    %v2650 = vpow.pop %v2649
    %v2651 = vadd.f32 %v2650, 1.0
    %v2652 = vrcp.pop %v2651
    %v2653 = vmul.f32 %v2651, %v2652
    %v2654 = vsub.f32 1.0, %v2653
    %v2655 = vmul.f32 %v2652, %v2654
    %v2656 = vadd.f32 %v2652, %v2655
    %vm2657 = vweird.f32 %v2651
    %vm2658 = vweird.f32 %v2652
    %vm2659 = vmor %vm2657, %vm2658
    %v2660 = vsel %vm2659, %v2652, %v2656
    %v2661 = vand.u32 2147483647, %v2651
    %vm2662 = vcmp.eq.f32.partialorder %v2661, 8.507059e+37
    %v2663 = vand.u32 %v2651, 2147483648
    %v2664 = vor.u32 1.1754944e-38, %v2663
    %v2665 = vsel %vm2662, %v2664, %v2660
    %v2666 = vmul.f32 1.0, %v2665
    %v2668 = vrot.slane %v2622, 4
    %v2670 = vadd.f32 %v2579, %v2668
    %v2671 = vxor.u32 %v2670, 2147483648
    %v2672 = vmul.f32 %v2671, 1.442695
    %v2673 = vpow.pop %v2672
    %v2674 = vadd.f32 %v2673, 1.0
    %v2675 = vrcp.pop %v2674
    %v2676 = vmul.f32 %v2674, %v2675
    %v2677 = vsub.f32 1.0, %v2676
    %v2678 = vmul.f32 %v2675, %v2677
    %v2679 = vadd.f32 %v2675, %v2678
    %vm2680 = vweird.f32 %v2674
    %vm2681 = vweird.f32 %v2675
    %vm2682 = vmor %vm2680, %vm2681
    %v2683 = vsel %vm2682, %v2675, %v2679
    %v2684 = vand.u32 2147483647, %v2674
    %vm2685 = vcmp.eq.f32.partialorder %v2684, 8.507059e+37
    %v2686 = vand.u32 %v2674, 2147483648
    %v2687 = vor.u32 1.1754944e-38, %v2686
    %v2688 = vsel %vm2685, %v2687, %v2683
    %v2689 = vmul.f32 1.0, %v2688
    %v2690 = vadd.f32 %v2642, %v1956
    %v2692 = vrot.slane %v2690, 4
    %v2694 = vmul.f32 %v2666, %v2692
    %v2695 = vadd.f32 %v2580, %v2694
    %v2696 = vtanh.pop %v2695
    %v2697 = vsub.f32 1.0, %v2689
    %v2698 = vmul.f32 %v2697, %v2696
    %v2699 = vrot.slane %v2457, 4
    %v2701 = vmul.f32 %v2689, %v2699
    %v2702 = vadd.f32 %v2698, %v2701
    %s2703 = scalar_lea.vmem %s6, 8
    %2704 = vst.msk [vmem:[%s2703] sm:$0xf] %vm2212, %v2577
    %s2705 = scalar_lea.vmem %s7, 20
    %2706 = vst.msk [vmem:[%s2705 - $0x4] sm:$0xf0] %vm2215, %v2702
    %v2707 = vld [vmem:[#allocation2 + $0x30] sm:$0xf0]
    %v2708 = vld [vmem:[#allocation2 + $0x38] sm:$0xf0]
    %v2709 = vld [vmem:[#allocation2 + $0x40] sm:$0xf0]
    %v2711 = vsel %vm1961, %v2577, 0
    %2713 = vmatpush.msra.mxu0 0.0
    %2714 = vmatpush.msra.mxu0 0.0
    %2715 = vmatpush.msra.mxu0 0.0
    %2716 = vmatpush.msra.mxu0 0.0
    %2717 = vmatpush.msra.mxu0 0.0
    %2718 = vmatpush.msra.mxu0 0.0
    %2719 = vmatpush.msra.mxu0 0.0
    %2720 = vmatpush.msra.mxu0 0.0
    %2721 = vmatpush.msra.mxu0 0.0
    %2722 = vmatpush.msra.mxu0 0.0
    %2723 = vmatpush.msra.mxu0 0.0
    %2724 = vmatpush.msra.mxu0 0.0
    %2725 = vmatpush.msra.mxu0 0.0
    %2726 = vmatpush.msra.mxu0 %v1967
    %2727 = vmatpush.msra.mxu0 %v1934
    %2728 = vmatpush.msra.mxu0 %v1931
    %2729 = vmatmul.f32.gmra.mxu0 %v2711
    %v2730 = vpop.f32.mrf.mxu0
    %v2731 = vadd.f32 0.0, %v2730
    %2732 = vdwg.mxu0
    %2733 = vmatpush.msra.mxu0 0.0
    %2734 = vmatpush.msra.mxu0 0.0
    %2735 = vmatpush.msra.mxu0 0.0
    %2736 = vmatpush.msra.mxu0 0.0
    %2737 = vmatpush.msra.mxu0 0.0
    %2738 = vmatpush.msra.mxu0 0.0
    %2739 = vmatpush.msra.mxu0 0.0
    %2740 = vmatpush.msra.mxu0 0.0
    %2741 = vmatpush.msra.mxu0 0.0
    %2742 = vmatpush.msra.mxu0 0.0
    %2743 = vmatpush.msra.mxu0 0.0
    %2744 = vmatpush.msra.mxu0 0.0
    %2745 = vmatpush.msra.mxu0 0.0
    %2746 = vmatpush.msra.mxu0 %v1970
    %2747 = vmatpush.msra.mxu0 %v1935
    %2748 = vmatpush.msra.mxu0 %v1932
    %2749 = vmatmul.f32.gmra.mxu0 %v2711
    %v2750 = vpop.f32.mrf.mxu0
    %v2751 = vadd.f32 0.0, %v2750
    %2752 = vdwg.mxu0
    %2753 = vmatpush.msra.mxu0 0.0
    %2754 = vmatpush.msra.mxu0 0.0
    %2755 = vmatpush.msra.mxu0 0.0
    %2756 = vmatpush.msra.mxu0 0.0
    %2757 = vmatpush.msra.mxu0 0.0
    %2758 = vmatpush.msra.mxu0 0.0
    %2759 = vmatpush.msra.mxu0 0.0
    %2760 = vmatpush.msra.mxu0 0.0
    %2761 = vmatpush.msra.mxu0 0.0
    %2762 = vmatpush.msra.mxu0 0.0
    %2763 = vmatpush.msra.mxu0 0.0
    %2764 = vmatpush.msra.mxu0 0.0
    %2765 = vmatpush.msra.mxu0 0.0
    %2766 = vmatpush.msra.mxu0 %v1973
    %2767 = vmatpush.msra.mxu0 %v1936
    %2768 = vmatpush.msra.mxu0 %v1933
    %2769 = vmatmul.f32.gmra.mxu0 %v2711
    %v2770 = vpop.f32.mrf.mxu0
    %v2771 = vadd.f32 0.0, %v2770
    %2772 = vdwg.mxu0
    %v2774 = vrot.slane %v2731, 4
    %v2776 = vadd.f32 %v2707, %v2774
    %v2777 = vxor.u32 %v2776, 2147483648
    %v2778 = vmul.f32 %v2777, 1.442695
    %v2779 = vpow.pop %v2778
    %v2780 = vadd.f32 %v2779, 1.0
    %v2781 = vrcp.pop %v2780
    %v2782 = vmul.f32 %v2780, %v2781
    %v2783 = vsub.f32 1.0, %v2782
    %v2784 = vmul.f32 %v2781, %v2783
    %v2785 = vadd.f32 %v2781, %v2784
    %vm2786 = vweird.f32 %v2780
    %vm2787 = vweird.f32 %v2781
    %vm2788 = vmor %vm2786, %vm2787
    %v2789 = vsel %vm2788, %v2781, %v2785
    %v2790 = vand.u32 2147483647, %v2780
    %vm2791 = vcmp.eq.f32.partialorder %v2790, 8.507059e+37
    %v2792 = vand.u32 %v2780, 2147483648
    %v2793 = vor.u32 1.1754944e-38, %v2792
    %v2794 = vsel %vm2791, %v2793, %v2789
    %v2795 = vmul.f32 1.0, %v2794
    %v2797 = vrot.slane %v2751, 4
    %v2799 = vadd.f32 %v2708, %v2797
    %v2800 = vxor.u32 %v2799, 2147483648
    %v2801 = vmul.f32 %v2800, 1.442695
    %v2802 = vpow.pop %v2801
    %v2803 = vadd.f32 %v2802, 1.0
    %v2804 = vrcp.pop %v2803
    %v2805 = vmul.f32 %v2803, %v2804
    %v2806 = vsub.f32 1.0, %v2805
    %v2807 = vmul.f32 %v2804, %v2806
    %v2808 = vadd.f32 %v2804, %v2807
    %vm2809 = vweird.f32 %v2803
    %vm2810 = vweird.f32 %v2804
    %vm2811 = vmor %vm2809, %vm2810
    %v2812 = vsel %vm2811, %v2804, %v2808
    %v2813 = vand.u32 2147483647, %v2803
    %vm2814 = vcmp.eq.f32.partialorder %v2813, 8.507059e+37
    %v2815 = vand.u32 %v2803, 2147483648
    %v2816 = vor.u32 1.1754944e-38, %v2815
    %v2817 = vsel %vm2814, %v2816, %v2812
    %v2818 = vmul.f32 1.0, %v2817
    %v2819 = vadd.f32 %v2771, %v1952
    %v2821 = vrot.slane %v2819, 4
    %v2823 = vmul.f32 %v2795, %v2821
    %v2824 = vadd.f32 %v2709, %v2823
    %v2825 = vtanh.pop %v2824
    %v2826 = vsub.f32 1.0, %v2818
    %v2827 = vmul.f32 %v2826, %v2825
    %v2828 = vrot.slane %v2577, 4
    %v2830 = vmul.f32 %v2818, %v2828
    %v2831 = vadd.f32 %v2827, %v2830
    %v2832 = vld [vmem:[#allocation2 + $0x78] sm:$0xf]
    %v2833 = vld [vmem:[#allocation2 + $0x80] sm:$0xf]
    %v2834 = vld [vmem:[#allocation2 + $0x88] sm:$0xf]
    %v2836 = vrot.slane %v2702, 4
    %v2837 = vsel %vm1961, %v2836, 0
    %2839 = vmatpush.msra.mxu0 0.0
    %2840 = vmatpush.msra.mxu0 0.0
    %2841 = vmatpush.msra.mxu0 0.0
    %2842 = vmatpush.msra.mxu0 0.0
    %2843 = vmatpush.msra.mxu0 0.0
    %2844 = vmatpush.msra.mxu0 0.0
    %2845 = vmatpush.msra.mxu0 0.0
    %2846 = vmatpush.msra.mxu0 0.0
    %2847 = vmatpush.msra.mxu0 0.0
    %2848 = vmatpush.msra.mxu0 0.0
    %2849 = vmatpush.msra.mxu0 0.0
    %2850 = vmatpush.msra.mxu0 0.0
    %2851 = vmatpush.msra.mxu0 0.0
    %2852 = vmatpush.msra.mxu0 %v2087
    %2853 = vmatpush.msra.mxu0 %v1944
    %2854 = vmatpush.msra.mxu0 %v1941
    %2855 = vmatmul.f32.gmra.mxu0 %v2837
    %v2856 = vpop.f32.mrf.mxu0
    %v2857 = vadd.f32 0.0, %v2856
    %2858 = vdwg.mxu0
    %2859 = vmatpush.msra.mxu0 0.0
    %2860 = vmatpush.msra.mxu0 0.0
    %2861 = vmatpush.msra.mxu0 0.0
    %2862 = vmatpush.msra.mxu0 0.0
    %2863 = vmatpush.msra.mxu0 0.0
    %2864 = vmatpush.msra.mxu0 0.0
    %2865 = vmatpush.msra.mxu0 0.0
    %2866 = vmatpush.msra.mxu0 0.0
    %2867 = vmatpush.msra.mxu0 0.0
    %2868 = vmatpush.msra.mxu0 0.0
    %2869 = vmatpush.msra.mxu0 0.0
    %2870 = vmatpush.msra.mxu0 0.0
    %2871 = vmatpush.msra.mxu0 0.0
    %2872 = vmatpush.msra.mxu0 %v2090
    %2873 = vmatpush.msra.mxu0 %v1945
    %2874 = vmatpush.msra.mxu0 %v1942
    %2875 = vmatmul.f32.gmra.mxu0 %v2837
    %v2876 = vpop.f32.mrf.mxu0
    %v2877 = vadd.f32 0.0, %v2876
    %2878 = vdwg.mxu0
    %2879 = vmatpush.msra.mxu0 0.0
    %2880 = vmatpush.msra.mxu0 0.0
    %2881 = vmatpush.msra.mxu0 0.0
    %2882 = vmatpush.msra.mxu0 0.0
    %2883 = vmatpush.msra.mxu0 0.0
    %2884 = vmatpush.msra.mxu0 0.0
    %2885 = vmatpush.msra.mxu0 0.0
    %2886 = vmatpush.msra.mxu0 0.0
    %2887 = vmatpush.msra.mxu0 0.0
    %2888 = vmatpush.msra.mxu0 0.0
    %2889 = vmatpush.msra.mxu0 0.0
    %2890 = vmatpush.msra.mxu0 0.0
    %2891 = vmatpush.msra.mxu0 0.0
    %2892 = vmatpush.msra.mxu0 %v2093
    %2893 = vmatpush.msra.mxu0 %v1946
    %2894 = vmatpush.msra.mxu0 %v1943
    %2895 = vmatmul.f32.gmra.mxu0 %v2837
    %v2896 = vpop.f32.mrf.mxu0
    %v2897 = vadd.f32 0.0, %v2896
    %2898 = vdwg.mxu0
    %v2899 = vadd.f32 %v2832, %v2857
    %v2900 = vxor.u32 %v2899, 2147483648
    %v2901 = vmul.f32 %v2900, 1.442695
    %v2902 = vpow.pop %v2901
    %v2903 = vadd.f32 %v2902, 1.0
    %v2904 = vrcp.pop %v2903
    %v2905 = vmul.f32 %v2903, %v2904
    %v2906 = vsub.f32 1.0, %v2905
    %v2907 = vmul.f32 %v2904, %v2906
    %v2908 = vadd.f32 %v2904, %v2907
    %vm2909 = vweird.f32 %v2903
    %vm2910 = vweird.f32 %v2904
    %vm2911 = vmor %vm2909, %vm2910
    %v2912 = vsel %vm2911, %v2904, %v2908
    %v2913 = vand.u32 2147483647, %v2903
    %vm2914 = vcmp.eq.f32.partialorder %v2913, 8.507059e+37
    %v2915 = vand.u32 %v2903, 2147483648
    %v2916 = vor.u32 1.1754944e-38, %v2915
    %v2917 = vsel %vm2914, %v2916, %v2912
    %v2918 = vmul.f32 1.0, %v2917
    %v2919 = vadd.f32 %v2833, %v2877
    %v2920 = vxor.u32 %v2919, 2147483648
    %v2921 = vmul.f32 %v2920, 1.442695
    %v2922 = vpow.pop %v2921
    %v2923 = vadd.f32 %v2922, 1.0
    %v2924 = vrcp.pop %v2923
    %v2925 = vmul.f32 %v2923, %v2924
    %v2926 = vsub.f32 1.0, %v2925
    %v2927 = vmul.f32 %v2924, %v2926
    %v2928 = vadd.f32 %v2924, %v2927
    %vm2929 = vweird.f32 %v2923
    %vm2930 = vweird.f32 %v2924
    %vm2931 = vmor %vm2929, %vm2930
    %v2932 = vsel %vm2931, %v2924, %v2928
    %v2933 = vand.u32 2147483647, %v2923
    %vm2934 = vcmp.eq.f32.partialorder %v2933, 8.507059e+37
    %v2935 = vand.u32 %v2923, 2147483648
    %v2936 = vor.u32 1.1754944e-38, %v2935
    %v2937 = vsel %vm2934, %v2936, %v2932
    %v2938 = vmul.f32 1.0, %v2937
    %v2939 = vadd.f32 %v2897, %v1956
    %v2940 = vmul.f32 %v2918, %v2939
    %v2941 = vadd.f32 %v2834, %v2940
    %v2942 = vtanh.pop %v2941
    %v2943 = vsub.f32 1.0, %v2938
    %v2944 = vmul.f32 %v2943, %v2942
    %v2946 = vmul.f32 %v2938, %v2836
    %v2947 = vadd.f32 %v2944, %v2946
    %s2948 = scalar_lea.vmem %s6, 12
    %2949 = vst.msk [vmem:[%s2948 - $0x4] sm:$0xf0] %vm2215, %v2831
    %s2950 = scalar_lea.vmem %s7, 16
    %2951 = vst.msk [vmem:[%s2950] sm:$0xf] %vm2212, %v2947
    %v2952 = vld [vmem:[#allocation2 + $0x60] sm:$0xf]
    %v2953 = vld [vmem:[#allocation2 + $0x68] sm:$0xf]
    %v2954 = vld [vmem:[#allocation2 + $0x70] sm:$0xf]
    %v2956 = vrot.slane %v2831, 4
    %v2957 = vsel %vm1961, %v2956, 0
    %2959 = vmatpush.msra.mxu0 0.0
    %2960 = vmatpush.msra.mxu0 0.0
    %2961 = vmatpush.msra.mxu0 0.0
    %2962 = vmatpush.msra.mxu0 0.0
    %2963 = vmatpush.msra.mxu0 0.0
    %2964 = vmatpush.msra.mxu0 0.0
    %2965 = vmatpush.msra.mxu0 0.0
    %2966 = vmatpush.msra.mxu0 0.0
    %2967 = vmatpush.msra.mxu0 0.0
    %2968 = vmatpush.msra.mxu0 0.0
    %2969 = vmatpush.msra.mxu0 0.0
    %2970 = vmatpush.msra.mxu0 0.0
    %2971 = vmatpush.msra.mxu0 0.0
    %2972 = vmatpush.msra.mxu0 %v1967
    %2973 = vmatpush.msra.mxu0 %v1934
    %2974 = vmatpush.msra.mxu0 %v1931
    %2975 = vmatmul.f32.gmra.mxu0 %v2957
    %v2976 = vpop.f32.mrf.mxu0
    %v2977 = vadd.f32 0.0, %v2976
    %2978 = vdwg.mxu0
    %2979 = vmatpush.msra.mxu0 0.0
    %2980 = vmatpush.msra.mxu0 0.0
    %2981 = vmatpush.msra.mxu0 0.0
    %2982 = vmatpush.msra.mxu0 0.0
    %2983 = vmatpush.msra.mxu0 0.0
    %2984 = vmatpush.msra.mxu0 0.0
    %2985 = vmatpush.msra.mxu0 0.0
    %2986 = vmatpush.msra.mxu0 0.0
    %2987 = vmatpush.msra.mxu0 0.0
    %2988 = vmatpush.msra.mxu0 0.0
    %2989 = vmatpush.msra.mxu0 0.0
    %2990 = vmatpush.msra.mxu0 0.0
    %2991 = vmatpush.msra.mxu0 0.0
    %2992 = vmatpush.msra.mxu0 %v1970
    %2993 = vmatpush.msra.mxu0 %v1935
    %2994 = vmatpush.msra.mxu0 %v1932
    %2995 = vmatmul.f32.gmra.mxu0 %v2957
    %v2996 = vpop.f32.mrf.mxu0
    %v2997 = vadd.f32 0.0, %v2996
    %2998 = vdwg.mxu0
    %2999 = vmatpush.msra.mxu0 0.0
    %3000 = vmatpush.msra.mxu0 0.0
    %3001 = vmatpush.msra.mxu0 0.0
    %3002 = vmatpush.msra.mxu0 0.0
    %3003 = vmatpush.msra.mxu0 0.0
    %3004 = vmatpush.msra.mxu0 0.0
    %3005 = vmatpush.msra.mxu0 0.0
    %3006 = vmatpush.msra.mxu0 0.0
    %3007 = vmatpush.msra.mxu0 0.0
    %3008 = vmatpush.msra.mxu0 0.0
    %3009 = vmatpush.msra.mxu0 0.0
    %3010 = vmatpush.msra.mxu0 0.0
    %3011 = vmatpush.msra.mxu0 0.0
    %3012 = vmatpush.msra.mxu0 %v1973
    %3013 = vmatpush.msra.mxu0 %v1936
    %3014 = vmatpush.msra.mxu0 %v1933
    %3015 = vmatmul.f32.gmra.mxu0 %v2957
    %v3016 = vpop.f32.mrf.mxu0
    %v3017 = vadd.f32 0.0, %v3016
    %3018 = vdwg.mxu0
    %v3019 = vadd.f32 %v2952, %v2977
    %v3020 = vxor.u32 %v3019, 2147483648
    %v3021 = vmul.f32 %v3020, 1.442695
    %v3022 = vpow.pop %v3021
    %v3023 = vadd.f32 %v3022, 1.0
    %v3024 = vrcp.pop %v3023
    %v3025 = vmul.f32 %v3023, %v3024
    %v3026 = vsub.f32 1.0, %v3025
    %v3027 = vmul.f32 %v3024, %v3026
    %v3028 = vadd.f32 %v3024, %v3027
    %vm3029 = vweird.f32 %v3023
    %vm3030 = vweird.f32 %v3024
    %vm3031 = vmor %vm3029, %vm3030
    %v3032 = vsel %vm3031, %v3024, %v3028
    %v3033 = vand.u32 2147483647, %v3023
    %vm3034 = vcmp.eq.f32.partialorder %v3033, 8.507059e+37
    %v3035 = vand.u32 %v3023, 2147483648
    %v3036 = vor.u32 1.1754944e-38, %v3035
    %v3037 = vsel %vm3034, %v3036, %v3032
    %v3038 = vmul.f32 1.0, %v3037
    %v3039 = vadd.f32 %v2953, %v2997
    %v3040 = vxor.u32 %v3039, 2147483648
    %v3041 = vmul.f32 %v3040, 1.442695
    %v3042 = vpow.pop %v3041
    %v3043 = vadd.f32 %v3042, 1.0
    %v3044 = vrcp.pop %v3043
    %v3045 = vmul.f32 %v3043, %v3044
    %v3046 = vsub.f32 1.0, %v3045
    %v3047 = vmul.f32 %v3044, %v3046
    %v3048 = vadd.f32 %v3044, %v3047
    %vm3049 = vweird.f32 %v3043
    %vm3050 = vweird.f32 %v3044
    %vm3051 = vmor %vm3049, %vm3050
    %v3052 = vsel %vm3051, %v3044, %v3048
    %v3053 = vand.u32 2147483647, %v3043
    %vm3054 = vcmp.eq.f32.partialorder %v3053, 8.507059e+37
    %v3055 = vand.u32 %v3043, 2147483648
    %v3056 = vor.u32 1.1754944e-38, %v3055
    %v3057 = vsel %vm3054, %v3056, %v3052
    %v3058 = vmul.f32 1.0, %v3057
    %v3059 = vadd.f32 %v3017, %v1952
    %v3060 = vmul.f32 %v3038, %v3059
    %v3061 = vadd.f32 %v2954, %v3060
    %v3062 = vtanh.pop %v3061
    %v3063 = vsub.f32 1.0, %v3058
    %v3064 = vmul.f32 %v3063, %v3062
    %v3066 = vmul.f32 %v3058, %v2956
    %v3067 = vadd.f32 %v3064, %v3066
    %v3068 = vld [vmem:[#allocation2 + $0x48] sm:$0xf0]
    %v3069 = vld [vmem:[#allocation2 + $0x50] sm:$0xf0]
    %v3070 = vld [vmem:[#allocation2 + $0x58] sm:$0xf0]
    %v3072 = vsel %vm1961, %v2947, 0
    %3074 = vmatpush.msra.mxu0 0.0
    %3075 = vmatpush.msra.mxu0 0.0
    %3076 = vmatpush.msra.mxu0 0.0
    %3077 = vmatpush.msra.mxu0 0.0
    %3078 = vmatpush.msra.mxu0 0.0
    %3079 = vmatpush.msra.mxu0 0.0
    %3080 = vmatpush.msra.mxu0 0.0
    %3081 = vmatpush.msra.mxu0 0.0
    %3082 = vmatpush.msra.mxu0 0.0
    %3083 = vmatpush.msra.mxu0 0.0
    %3084 = vmatpush.msra.mxu0 0.0
    %3085 = vmatpush.msra.mxu0 0.0
    %3086 = vmatpush.msra.mxu0 0.0
    %3087 = vmatpush.msra.mxu0 %v2087
    %3088 = vmatpush.msra.mxu0 %v1944
    %3089 = vmatpush.msra.mxu0 %v1941
    %3090 = vmatmul.f32.gmra.mxu0 %v3072
    %v3091 = vpop.f32.mrf.mxu0
    %v3092 = vadd.f32 0.0, %v3091
    %3093 = vdwg.mxu0
    %3094 = vmatpush.msra.mxu0 0.0
    %3095 = vmatpush.msra.mxu0 0.0
    %3096 = vmatpush.msra.mxu0 0.0
    %3097 = vmatpush.msra.mxu0 0.0
    %3098 = vmatpush.msra.mxu0 0.0
    %3099 = vmatpush.msra.mxu0 0.0
    %3100 = vmatpush.msra.mxu0 0.0
    %3101 = vmatpush.msra.mxu0 0.0
    %3102 = vmatpush.msra.mxu0 0.0
    %3103 = vmatpush.msra.mxu0 0.0
    %3104 = vmatpush.msra.mxu0 0.0
    %3105 = vmatpush.msra.mxu0 0.0
    %3106 = vmatpush.msra.mxu0 0.0
    %3107 = vmatpush.msra.mxu0 %v2090
    %3108 = vmatpush.msra.mxu0 %v1945
    %3109 = vmatpush.msra.mxu0 %v1942
    %3110 = vmatmul.f32.gmra.mxu0 %v3072
    %v3111 = vpop.f32.mrf.mxu0
    %v3112 = vadd.f32 0.0, %v3111
    %3113 = vdwg.mxu0
    %3114 = vmatpush.msra.mxu0 0.0
    %3115 = vmatpush.msra.mxu0 0.0
    %3116 = vmatpush.msra.mxu0 0.0
    %3117 = vmatpush.msra.mxu0 0.0
    %3118 = vmatpush.msra.mxu0 0.0
    %3119 = vmatpush.msra.mxu0 0.0
    %3120 = vmatpush.msra.mxu0 0.0
    %3121 = vmatpush.msra.mxu0 0.0
    %3122 = vmatpush.msra.mxu0 0.0
    %3123 = vmatpush.msra.mxu0 0.0
    %3124 = vmatpush.msra.mxu0 0.0
    %3125 = vmatpush.msra.mxu0 0.0
    %3126 = vmatpush.msra.mxu0 0.0
    %3127 = vmatpush.msra.mxu0 %v2093
    %3128 = vmatpush.msra.mxu0 %v1946
    %3129 = vmatpush.msra.mxu0 %v1943
    %3130 = vmatmul.f32.gmra.mxu0 %v3072
    %v3131 = vpop.f32.mrf.mxu0
    %v3132 = vadd.f32 0.0, %v3131
    %3133 = vdwg.mxu0
    %v3135 = vrot.slane %v3092, 4
    %v3137 = vadd.f32 %v3068, %v3135
    %v3138 = vxor.u32 %v3137, 2147483648
    %v3139 = vmul.f32 %v3138, 1.442695
    %v3140 = vpow.pop %v3139
    %v3141 = vadd.f32 %v3140, 1.0
    %v3142 = vrcp.pop %v3141
    %v3143 = vmul.f32 %v3141, %v3142
    %v3144 = vsub.f32 1.0, %v3143
    %v3145 = vmul.f32 %v3142, %v3144
    %v3146 = vadd.f32 %v3142, %v3145
    %vm3147 = vweird.f32 %v3141
    %vm3148 = vweird.f32 %v3142
    %vm3149 = vmor %vm3147, %vm3148
    %v3150 = vsel %vm3149, %v3142, %v3146
    %v3151 = vand.u32 2147483647, %v3141
    %vm3152 = vcmp.eq.f32.partialorder %v3151, 8.507059e+37
    %v3153 = vand.u32 %v3141, 2147483648
    %v3154 = vor.u32 1.1754944e-38, %v3153
    %v3155 = vsel %vm3152, %v3154, %v3150
    %v3156 = vmul.f32 1.0, %v3155
    %v3158 = vrot.slane %v3112, 4
    %v3160 = vadd.f32 %v3069, %v3158
    %v3161 = vxor.u32 %v3160, 2147483648
    %v3162 = vmul.f32 %v3161, 1.442695
    %v3163 = vpow.pop %v3162
    %v3164 = vadd.f32 %v3163, 1.0
    %v3165 = vrcp.pop %v3164
    %v3166 = vmul.f32 %v3164, %v3165
    %v3167 = vsub.f32 1.0, %v3166
    %v3168 = vmul.f32 %v3165, %v3167
    %v3169 = vadd.f32 %v3165, %v3168
    %vm3170 = vweird.f32 %v3164
    %vm3171 = vweird.f32 %v3165
    %vm3172 = vmor %vm3170, %vm3171
    %v3173 = vsel %vm3172, %v3165, %v3169
    %v3174 = vand.u32 2147483647, %v3164
    %vm3175 = vcmp.eq.f32.partialorder %v3174, 8.507059e+37
    %v3176 = vand.u32 %v3164, 2147483648
    %v3177 = vor.u32 1.1754944e-38, %v3176
    %v3178 = vsel %vm3175, %v3177, %v3173
    %v3179 = vmul.f32 1.0, %v3178
    %v3180 = vadd.f32 %v3132, %v1956
    %v3182 = vrot.slane %v3180, 4
    %v3184 = vmul.f32 %v3156, %v3182
    %v3185 = vadd.f32 %v3070, %v3184
    %v3186 = vtanh.pop %v3185
    %v3187 = vsub.f32 1.0, %v3179
    %v3188 = vmul.f32 %v3187, %v3186
    %v3189 = vrot.slane %v2947, 4
    %v3191 = vmul.f32 %v3179, %v3189
    %v3192 = vadd.f32 %v3188, %v3191
    %s3193 = scalar_lea.vmem %s6, 16
    %3194 = vst.msk [vmem:[%s3193] sm:$0xf] %vm2212, %v3067
    %s3195 = scalar_lea.vmem %s7, 12
    %3196 = vst.msk [vmem:[%s3195 - $0x4] sm:$0xf0] %vm2215, %v3192
    %v3197 = vld [vmem:[#allocation2 + $0x60] sm:$0xf0]
    %v3198 = vld [vmem:[#allocation2 + $0x68] sm:$0xf0]
    %v3199 = vld [vmem:[#allocation2 + $0x70] sm:$0xf0]
    %v3201 = vsel %vm1961, %v3067, 0
    %3203 = vmatpush.msra.mxu0 0.0
    %3204 = vmatpush.msra.mxu0 0.0
    %3205 = vmatpush.msra.mxu0 0.0
    %3206 = vmatpush.msra.mxu0 0.0
    %3207 = vmatpush.msra.mxu0 0.0
    %3208 = vmatpush.msra.mxu0 0.0
    %3209 = vmatpush.msra.mxu0 0.0
    %3210 = vmatpush.msra.mxu0 0.0
    %3211 = vmatpush.msra.mxu0 0.0
    %3212 = vmatpush.msra.mxu0 0.0
    %3213 = vmatpush.msra.mxu0 0.0
    %3214 = vmatpush.msra.mxu0 0.0
    %3215 = vmatpush.msra.mxu0 0.0
    %3216 = vmatpush.msra.mxu0 %v1967
    %3217 = vmatpush.msra.mxu0 %v1934
    %3218 = vmatpush.msra.mxu0 %v1931
    %3219 = vmatmul.f32.gmra.mxu0 %v3201
    %v3220 = vpop.f32.mrf.mxu0
    %v3221 = vadd.f32 0.0, %v3220
    %3222 = vdwg.mxu0
    %3223 = vmatpush.msra.mxu0 0.0
    %3224 = vmatpush.msra.mxu0 0.0
    %3225 = vmatpush.msra.mxu0 0.0
    %3226 = vmatpush.msra.mxu0 0.0
    %3227 = vmatpush.msra.mxu0 0.0
    %3228 = vmatpush.msra.mxu0 0.0
    %3229 = vmatpush.msra.mxu0 0.0
    %3230 = vmatpush.msra.mxu0 0.0
    %3231 = vmatpush.msra.mxu0 0.0
    %3232 = vmatpush.msra.mxu0 0.0
    %3233 = vmatpush.msra.mxu0 0.0
    %3234 = vmatpush.msra.mxu0 0.0
    %3235 = vmatpush.msra.mxu0 0.0
    %3236 = vmatpush.msra.mxu0 %v1970
    %3237 = vmatpush.msra.mxu0 %v1935
    %3238 = vmatpush.msra.mxu0 %v1932
    %3239 = vmatmul.f32.gmra.mxu0 %v3201
    %v3240 = vpop.f32.mrf.mxu0
    %v3241 = vadd.f32 0.0, %v3240
    %3242 = vdwg.mxu0
    %3243 = vmatpush.msra.mxu0 0.0
    %3244 = vmatpush.msra.mxu0 0.0
    %3245 = vmatpush.msra.mxu0 0.0
    %3246 = vmatpush.msra.mxu0 0.0
    %3247 = vmatpush.msra.mxu0 0.0
    %3248 = vmatpush.msra.mxu0 0.0
    %3249 = vmatpush.msra.mxu0 0.0
    %3250 = vmatpush.msra.mxu0 0.0
    %3251 = vmatpush.msra.mxu0 0.0
    %3252 = vmatpush.msra.mxu0 0.0
    %3253 = vmatpush.msra.mxu0 0.0
    %3254 = vmatpush.msra.mxu0 0.0
    %3255 = vmatpush.msra.mxu0 0.0
    %3256 = vmatpush.msra.mxu0 %v1973
    %3257 = vmatpush.msra.mxu0 %v1936
    %3258 = vmatpush.msra.mxu0 %v1933
    %3259 = vmatmul.f32.gmra.mxu0 %v3201
    %v3260 = vpop.f32.mrf.mxu0
    %v3261 = vadd.f32 0.0, %v3260
    %3262 = vdwg.mxu0
    %v3264 = vrot.slane %v3221, 4
    %v3266 = vadd.f32 %v3197, %v3264
    %v3267 = vxor.u32 %v3266, 2147483648
    %v3268 = vmul.f32 %v3267, 1.442695
    %v3269 = vpow.pop %v3268
    %v3270 = vadd.f32 %v3269, 1.0
    %v3271 = vrcp.pop %v3270
    %v3272 = vmul.f32 %v3270, %v3271
    %v3273 = vsub.f32 1.0, %v3272
    %v3274 = vmul.f32 %v3271, %v3273
    %v3275 = vadd.f32 %v3271, %v3274
    %vm3276 = vweird.f32 %v3270
    %vm3277 = vweird.f32 %v3271
    %vm3278 = vmor %vm3276, %vm3277
    %v3279 = vsel %vm3278, %v3271, %v3275
    %v3280 = vand.u32 2147483647, %v3270
    %vm3281 = vcmp.eq.f32.partialorder %v3280, 8.507059e+37
    %v3282 = vand.u32 %v3270, 2147483648
    %v3283 = vor.u32 1.1754944e-38, %v3282
    %v3284 = vsel %vm3281, %v3283, %v3279
    %v3285 = vmul.f32 1.0, %v3284
    %v3287 = vrot.slane %v3241, 4
    %v3289 = vadd.f32 %v3198, %v3287
    %v3290 = vxor.u32 %v3289, 2147483648
    %v3291 = vmul.f32 %v3290, 1.442695
    %v3292 = vpow.pop %v3291
    %v3293 = vadd.f32 %v3292, 1.0
    %v3294 = vrcp.pop %v3293
    %v3295 = vmul.f32 %v3293, %v3294
    %v3296 = vsub.f32 1.0, %v3295
    %v3297 = vmul.f32 %v3294, %v3296
    %v3298 = vadd.f32 %v3294, %v3297
    %vm3299 = vweird.f32 %v3293
    %vm3300 = vweird.f32 %v3294
    %vm3301 = vmor %vm3299, %vm3300
    %v3302 = vsel %vm3301, %v3294, %v3298
    %v3303 = vand.u32 2147483647, %v3293
    %vm3304 = vcmp.eq.f32.partialorder %v3303, 8.507059e+37
    %v3305 = vand.u32 %v3293, 2147483648
    %v3306 = vor.u32 1.1754944e-38, %v3305
    %v3307 = vsel %vm3304, %v3306, %v3302
    %v3308 = vmul.f32 1.0, %v3307
    %v3309 = vadd.f32 %v3261, %v1952
    %v3311 = vrot.slane %v3309, 4
    %v3313 = vmul.f32 %v3285, %v3311
    %v3314 = vadd.f32 %v3199, %v3313
    %v3315 = vtanh.pop %v3314
    %v3316 = vsub.f32 1.0, %v3308
    %v3317 = vmul.f32 %v3316, %v3315
    %v3318 = vrot.slane %v3067, 4
    %v3320 = vmul.f32 %v3308, %v3318
    %v3321 = vadd.f32 %v3317, %v3320
    %v3322 = vld [vmem:[#allocation2 + $0x48] sm:$0xf]
    %v3323 = vld [vmem:[#allocation2 + $0x50] sm:$0xf]
    %v3324 = vld [vmem:[#allocation2 + $0x58] sm:$0xf]
    %v3326 = vrot.slane %v3192, 4
    %v3327 = vsel %vm1961, %v3326, 0
    %3329 = vmatpush.msra.mxu0 0.0
    %3330 = vmatpush.msra.mxu0 0.0
    %3331 = vmatpush.msra.mxu0 0.0
    %3332 = vmatpush.msra.mxu0 0.0
    %3333 = vmatpush.msra.mxu0 0.0
    %3334 = vmatpush.msra.mxu0 0.0
    %3335 = vmatpush.msra.mxu0 0.0
    %3336 = vmatpush.msra.mxu0 0.0
    %3337 = vmatpush.msra.mxu0 0.0
    %3338 = vmatpush.msra.mxu0 0.0
    %3339 = vmatpush.msra.mxu0 0.0
    %3340 = vmatpush.msra.mxu0 0.0
    %3341 = vmatpush.msra.mxu0 0.0
    %3342 = vmatpush.msra.mxu0 %v2087
    %3343 = vmatpush.msra.mxu0 %v1944
    %3344 = vmatpush.msra.mxu0 %v1941
    %3345 = vmatmul.f32.gmra.mxu0 %v3327
    %v3346 = vpop.f32.mrf.mxu0
    %v3347 = vadd.f32 0.0, %v3346
    %3348 = vdwg.mxu0
    %3349 = vmatpush.msra.mxu0 0.0
    %3350 = vmatpush.msra.mxu0 0.0
    %3351 = vmatpush.msra.mxu0 0.0
    %3352 = vmatpush.msra.mxu0 0.0
    %3353 = vmatpush.msra.mxu0 0.0
    %3354 = vmatpush.msra.mxu0 0.0
    %3355 = vmatpush.msra.mxu0 0.0
    %3356 = vmatpush.msra.mxu0 0.0
    %3357 = vmatpush.msra.mxu0 0.0
    %3358 = vmatpush.msra.mxu0 0.0
    %3359 = vmatpush.msra.mxu0 0.0
    %3360 = vmatpush.msra.mxu0 0.0
    %3361 = vmatpush.msra.mxu0 0.0
    %3362 = vmatpush.msra.mxu0 %v2090
    %3363 = vmatpush.msra.mxu0 %v1945
    %3364 = vmatpush.msra.mxu0 %v1942
    %3365 = vmatmul.f32.gmra.mxu0 %v3327
    %v3366 = vpop.f32.mrf.mxu0
    %v3367 = vadd.f32 0.0, %v3366
    %3368 = vdwg.mxu0
    %3369 = vmatpush.msra.mxu0 0.0
    %3370 = vmatpush.msra.mxu0 0.0
    %3371 = vmatpush.msra.mxu0 0.0
    %3372 = vmatpush.msra.mxu0 0.0
    %3373 = vmatpush.msra.mxu0 0.0
    %3374 = vmatpush.msra.mxu0 0.0
    %3375 = vmatpush.msra.mxu0 0.0
    %3376 = vmatpush.msra.mxu0 0.0
    %3377 = vmatpush.msra.mxu0 0.0
    %3378 = vmatpush.msra.mxu0 0.0
    %3379 = vmatpush.msra.mxu0 0.0
    %3380 = vmatpush.msra.mxu0 0.0
    %3381 = vmatpush.msra.mxu0 0.0
    %3382 = vmatpush.msra.mxu0 %v2093
    %3383 = vmatpush.msra.mxu0 %v1946
    %3384 = vmatpush.msra.mxu0 %v1943
    %3385 = vmatmul.f32.gmra.mxu0 %v3327
    %v3386 = vpop.f32.mrf.mxu0
    %v3387 = vadd.f32 0.0, %v3386
    %3388 = vdwg.mxu0
    %v3389 = vadd.f32 %v3322, %v3347
    %v3390 = vxor.u32 %v3389, 2147483648
    %v3391 = vmul.f32 %v3390, 1.442695
    %v3392 = vpow.pop %v3391
    %v3393 = vadd.f32 %v3392, 1.0
    %v3394 = vrcp.pop %v3393
    %v3395 = vmul.f32 %v3393, %v3394
    %v3396 = vsub.f32 1.0, %v3395
    %v3397 = vmul.f32 %v3394, %v3396
    %v3398 = vadd.f32 %v3394, %v3397
    %vm3399 = vweird.f32 %v3393
    %vm3400 = vweird.f32 %v3394
    %vm3401 = vmor %vm3399, %vm3400
    %v3402 = vsel %vm3401, %v3394, %v3398
    %v3403 = vand.u32 2147483647, %v3393
    %vm3404 = vcmp.eq.f32.partialorder %v3403, 8.507059e+37
    %v3405 = vand.u32 %v3393, 2147483648
    %v3406 = vor.u32 1.1754944e-38, %v3405
    %v3407 = vsel %vm3404, %v3406, %v3402
    %v3408 = vmul.f32 1.0, %v3407
    %v3409 = vadd.f32 %v3323, %v3367
    %v3410 = vxor.u32 %v3409, 2147483648
    %v3411 = vmul.f32 %v3410, 1.442695
    %v3412 = vpow.pop %v3411
    %v3413 = vadd.f32 %v3412, 1.0
    %v3414 = vrcp.pop %v3413
    %v3415 = vmul.f32 %v3413, %v3414
    %v3416 = vsub.f32 1.0, %v3415
    %v3417 = vmul.f32 %v3414, %v3416
    %v3418 = vadd.f32 %v3414, %v3417
    %vm3419 = vweird.f32 %v3413
    %vm3420 = vweird.f32 %v3414
    %vm3421 = vmor %vm3419, %vm3420
    %v3422 = vsel %vm3421, %v3414, %v3418
    %v3423 = vand.u32 2147483647, %v3413
    %vm3424 = vcmp.eq.f32.partialorder %v3423, 8.507059e+37
    %v3425 = vand.u32 %v3413, 2147483648
    %v3426 = vor.u32 1.1754944e-38, %v3425
    %v3427 = vsel %vm3424, %v3426, %v3422
    %v3428 = vmul.f32 1.0, %v3427
    %v3429 = vadd.f32 %v3387, %v1956
    %v3430 = vmul.f32 %v3408, %v3429
    %v3431 = vadd.f32 %v3324, %v3430
    %v3432 = vtanh.pop %v3431
    %v3433 = vsub.f32 1.0, %v3428
    %v3434 = vmul.f32 %v3433, %v3432
    %v3436 = vmul.f32 %v3428, %v3326
    %v3437 = vadd.f32 %v3434, %v3436
    %s3438 = scalar_lea.vmem %s6, 20
    %3439 = vst.msk [vmem:[%s3438 - $0x4] sm:$0xf0] %vm2215, %v3321
    %s3440 = scalar_lea.vmem %s7, 8
    %3441 = vst.msk [vmem:[%s3440] sm:$0xf] %vm2212, %v3437
    %v3442 = vld [vmem:[#allocation2 + $0x90] sm:$0xf]
    %v3443 = vld [vmem:[#allocation2 + $0x98] sm:$0xf]
    %v3444 = vld [vmem:[#allocation2 + $0xa0] sm:$0xf]
    %v3446 = vrot.slane %v3321, 4
    %v3447 = vsel %vm1961, %v3446, 0
    %3449 = vmatpush.msra.mxu0 0.0
    %3450 = vmatpush.msra.mxu0 0.0
    %3451 = vmatpush.msra.mxu0 0.0
    %3452 = vmatpush.msra.mxu0 0.0
    %3453 = vmatpush.msra.mxu0 0.0
    %3454 = vmatpush.msra.mxu0 0.0
    %3455 = vmatpush.msra.mxu0 0.0
    %3456 = vmatpush.msra.mxu0 0.0
    %3457 = vmatpush.msra.mxu0 0.0
    %3458 = vmatpush.msra.mxu0 0.0
    %3459 = vmatpush.msra.mxu0 0.0
    %3460 = vmatpush.msra.mxu0 0.0
    %3461 = vmatpush.msra.mxu0 0.0
    %3462 = vmatpush.msra.mxu0 %v1967
    %3463 = vmatpush.msra.mxu0 %v1934
    %3464 = vmatpush.msra.mxu0 %v1931
    %3465 = vmatmul.f32.gmra.mxu0 %v3447
    %v3466 = vpop.f32.mrf.mxu0
    %v3467 = vadd.f32 0.0, %v3466
    %3468 = vdwg.mxu0
    %3469 = vmatpush.msra.mxu0 0.0
    %3470 = vmatpush.msra.mxu0 0.0
    %3471 = vmatpush.msra.mxu0 0.0
    %3472 = vmatpush.msra.mxu0 0.0
    %3473 = vmatpush.msra.mxu0 0.0
    %3474 = vmatpush.msra.mxu0 0.0
    %3475 = vmatpush.msra.mxu0 0.0
    %3476 = vmatpush.msra.mxu0 0.0
    %3477 = vmatpush.msra.mxu0 0.0
    %3478 = vmatpush.msra.mxu0 0.0
    %3479 = vmatpush.msra.mxu0 0.0
    %3480 = vmatpush.msra.mxu0 0.0
    %3481 = vmatpush.msra.mxu0 0.0
    %3482 = vmatpush.msra.mxu0 %v1970
    %3483 = vmatpush.msra.mxu0 %v1935
    %3484 = vmatpush.msra.mxu0 %v1932
    %3485 = vmatmul.f32.gmra.mxu0 %v3447
    %v3486 = vpop.f32.mrf.mxu0
    %v3487 = vadd.f32 0.0, %v3486
    %3488 = vdwg.mxu0
    %3489 = vmatpush.msra.mxu0 0.0
    %3490 = vmatpush.msra.mxu0 0.0
    %3491 = vmatpush.msra.mxu0 0.0
    %3492 = vmatpush.msra.mxu0 0.0
    %3493 = vmatpush.msra.mxu0 0.0
    %3494 = vmatpush.msra.mxu0 0.0
    %3495 = vmatpush.msra.mxu0 0.0
    %3496 = vmatpush.msra.mxu0 0.0
    %3497 = vmatpush.msra.mxu0 0.0
    %3498 = vmatpush.msra.mxu0 0.0
    %3499 = vmatpush.msra.mxu0 0.0
    %3500 = vmatpush.msra.mxu0 0.0
    %3501 = vmatpush.msra.mxu0 0.0
    %3502 = vmatpush.msra.mxu0 %v1973
    %3503 = vmatpush.msra.mxu0 %v1936
    %3504 = vmatpush.msra.mxu0 %v1933
    %3505 = vmatmul.f32.gmra.mxu0 %v3447
    %v3506 = vpop.f32.mrf.mxu0
    %v3507 = vadd.f32 0.0, %v3506
    %3508 = vdwg.mxu0
    %v3509 = vadd.f32 %v3442, %v3467
    %v3510 = vxor.u32 %v3509, 2147483648
    %v3511 = vmul.f32 %v3510, 1.442695
    %v3512 = vpow.pop %v3511
    %v3513 = vadd.f32 %v3512, 1.0
    %v3514 = vrcp.pop %v3513
    %v3515 = vmul.f32 %v3513, %v3514
    %v3516 = vsub.f32 1.0, %v3515
    %v3517 = vmul.f32 %v3514, %v3516
    %v3518 = vadd.f32 %v3514, %v3517
    %vm3519 = vweird.f32 %v3513
    %vm3520 = vweird.f32 %v3514
    %vm3521 = vmor %vm3519, %vm3520
    %v3522 = vsel %vm3521, %v3514, %v3518
    %v3523 = vand.u32 2147483647, %v3513
    %vm3524 = vcmp.eq.f32.partialorder %v3523, 8.507059e+37
    %v3525 = vand.u32 %v3513, 2147483648
    %v3526 = vor.u32 1.1754944e-38, %v3525
    %v3527 = vsel %vm3524, %v3526, %v3522
    %v3528 = vmul.f32 1.0, %v3527
    %v3529 = vadd.f32 %v3443, %v3487
    %v3530 = vxor.u32 %v3529, 2147483648
    %v3531 = vmul.f32 %v3530, 1.442695
    %v3532 = vpow.pop %v3531
    %v3533 = vadd.f32 %v3532, 1.0
    %v3534 = vrcp.pop %v3533
    %v3535 = vmul.f32 %v3533, %v3534
    %v3536 = vsub.f32 1.0, %v3535
    %v3537 = vmul.f32 %v3534, %v3536
    %v3538 = vadd.f32 %v3534, %v3537
    %vm3539 = vweird.f32 %v3533
    %vm3540 = vweird.f32 %v3534
    %vm3541 = vmor %vm3539, %vm3540
    %v3542 = vsel %vm3541, %v3534, %v3538
    %v3543 = vand.u32 2147483647, %v3533
    %vm3544 = vcmp.eq.f32.partialorder %v3543, 8.507059e+37
    %v3545 = vand.u32 %v3533, 2147483648
    %v3546 = vor.u32 1.1754944e-38, %v3545
    %v3547 = vsel %vm3544, %v3546, %v3542
    %v3548 = vmul.f32 1.0, %v3547
    %v3549 = vadd.f32 %v3507, %v1952
    %v3550 = vmul.f32 %v3528, %v3549
    %v3551 = vadd.f32 %v3444, %v3550
    %v3552 = vtanh.pop %v3551
    %v3553 = vsub.f32 1.0, %v3548
    %v3554 = vmul.f32 %v3553, %v3552
    %v3556 = vmul.f32 %v3548, %v3446
    %v3557 = vadd.f32 %v3554, %v3556
    %v3558 = vld [vmem:[#allocation2 + $0x18] sm:$0xf0]
    %v3559 = vld [vmem:[#allocation2 + $0x20] sm:$0xf0]
    %v3560 = vld [vmem:[#allocation2 + $0x28] sm:$0xf0]
    %v3562 = vsel %vm1961, %v3437, 0
    %3564 = vmatpush.msra.mxu0 0.0
    %3565 = vmatpush.msra.mxu0 0.0
    %3566 = vmatpush.msra.mxu0 0.0
    %3567 = vmatpush.msra.mxu0 0.0
    %3568 = vmatpush.msra.mxu0 0.0
    %3569 = vmatpush.msra.mxu0 0.0
    %3570 = vmatpush.msra.mxu0 0.0
    %3571 = vmatpush.msra.mxu0 0.0
    %3572 = vmatpush.msra.mxu0 0.0
    %3573 = vmatpush.msra.mxu0 0.0
    %3574 = vmatpush.msra.mxu0 0.0
    %3575 = vmatpush.msra.mxu0 0.0
    %3576 = vmatpush.msra.mxu0 0.0
    %3577 = vmatpush.msra.mxu0 %v2087
    %3578 = vmatpush.msra.mxu0 %v1944
    %3579 = vmatpush.msra.mxu0 %v1941
    %3580 = vmatmul.f32.gmra.mxu0 %v3562
    %v3581 = vpop.f32.mrf.mxu0
    %v3582 = vadd.f32 0.0, %v3581
    %3583 = vdwg.mxu0
    %3584 = vmatpush.msra.mxu0 0.0
    %3585 = vmatpush.msra.mxu0 0.0
    %3586 = vmatpush.msra.mxu0 0.0
    %3587 = vmatpush.msra.mxu0 0.0
    %3588 = vmatpush.msra.mxu0 0.0
    %3589 = vmatpush.msra.mxu0 0.0
    %3590 = vmatpush.msra.mxu0 0.0
    %3591 = vmatpush.msra.mxu0 0.0
    %3592 = vmatpush.msra.mxu0 0.0
    %3593 = vmatpush.msra.mxu0 0.0
    %3594 = vmatpush.msra.mxu0 0.0
    %3595 = vmatpush.msra.mxu0 0.0
    %3596 = vmatpush.msra.mxu0 0.0
    %3597 = vmatpush.msra.mxu0 %v2090
    %3598 = vmatpush.msra.mxu0 %v1945
    %3599 = vmatpush.msra.mxu0 %v1942
    %3600 = vmatmul.f32.gmra.mxu0 %v3562
    %v3601 = vpop.f32.mrf.mxu0
    %v3602 = vadd.f32 0.0, %v3601
    %3603 = vdwg.mxu0
    %3604 = vmatpush.msra.mxu0 0.0
    %3605 = vmatpush.msra.mxu0 0.0
    %3606 = vmatpush.msra.mxu0 0.0
    %3607 = vmatpush.msra.mxu0 0.0
    %3608 = vmatpush.msra.mxu0 0.0
    %3609 = vmatpush.msra.mxu0 0.0
    %3610 = vmatpush.msra.mxu0 0.0
    %3611 = vmatpush.msra.mxu0 0.0
    %3612 = vmatpush.msra.mxu0 0.0
    %3613 = vmatpush.msra.mxu0 0.0
    %3614 = vmatpush.msra.mxu0 0.0
    %3615 = vmatpush.msra.mxu0 0.0
    %3616 = vmatpush.msra.mxu0 0.0
    %3617 = vmatpush.msra.mxu0 %v2093
    %3618 = vmatpush.msra.mxu0 %v1946
    %3619 = vmatpush.msra.mxu0 %v1943
    %3620 = vmatmul.f32.gmra.mxu0 %v3562
    %v3621 = vpop.f32.mrf.mxu0
    %v3622 = vadd.f32 0.0, %v3621
    %3623 = vdwg.mxu0
    %v3625 = vrot.slane %v3582, 4
    %v3627 = vadd.f32 %v3558, %v3625
    %v3628 = vxor.u32 %v3627, 2147483648
    %v3629 = vmul.f32 %v3628, 1.442695
    %v3630 = vpow.pop %v3629
    %v3631 = vadd.f32 %v3630, 1.0
    %v3632 = vrcp.pop %v3631
    %v3633 = vmul.f32 %v3631, %v3632
    %v3634 = vsub.f32 1.0, %v3633
    %v3635 = vmul.f32 %v3632, %v3634
    %v3636 = vadd.f32 %v3632, %v3635
    %vm3637 = vweird.f32 %v3631
    %vm3638 = vweird.f32 %v3632
    %vm3639 = vmor %vm3637, %vm3638
    %v3640 = vsel %vm3639, %v3632, %v3636
    %v3641 = vand.u32 2147483647, %v3631
    %vm3642 = vcmp.eq.f32.partialorder %v3641, 8.507059e+37
    %v3643 = vand.u32 %v3631, 2147483648
    %v3644 = vor.u32 1.1754944e-38, %v3643
    %v3645 = vsel %vm3642, %v3644, %v3640
    %v3646 = vmul.f32 1.0, %v3645
    %v3648 = vrot.slane %v3602, 4
    %v3650 = vadd.f32 %v3559, %v3648
    %v3651 = vxor.u32 %v3650, 2147483648
    %v3652 = vmul.f32 %v3651, 1.442695
    %v3653 = vpow.pop %v3652
    %v3654 = vadd.f32 %v3653, 1.0
    %v3655 = vrcp.pop %v3654
    %v3656 = vmul.f32 %v3654, %v3655
    %v3657 = vsub.f32 1.0, %v3656
    %v3658 = vmul.f32 %v3655, %v3657
    %v3659 = vadd.f32 %v3655, %v3658
    %vm3660 = vweird.f32 %v3654
    %vm3661 = vweird.f32 %v3655
    %vm3662 = vmor %vm3660, %vm3661
    %v3663 = vsel %vm3662, %v3655, %v3659
    %v3664 = vand.u32 2147483647, %v3654
    %vm3665 = vcmp.eq.f32.partialorder %v3664, 8.507059e+37
    %v3666 = vand.u32 %v3654, 2147483648
    %v3667 = vor.u32 1.1754944e-38, %v3666
    %v3668 = vsel %vm3665, %v3667, %v3663
    %v3669 = vmul.f32 1.0, %v3668
    %v3670 = vadd.f32 %v3622, %v1956
    %v3672 = vrot.slane %v3670, 4
    %v3674 = vmul.f32 %v3646, %v3672
    %v3675 = vadd.f32 %v3560, %v3674
    %v3676 = vtanh.pop %v3675
    %v3677 = vsub.f32 1.0, %v3669
    %v3678 = vmul.f32 %v3677, %v3676
    %v3679 = vrot.slane %v3437, 4
    %v3681 = vmul.f32 %v3669, %v3679
    %v3682 = vadd.f32 %v3678, %v3681
    %s3683 = scalar_lea.vmem %s6, 24
    %3684 = vst.msk [vmem:[%s3683] sm:$0xf] %vm2212, %v3557
    %s3685 = scalar_lea.vmem %s7, 4
    %3686 = vst.msk [vmem:[%s3685 - $0x4] sm:$0xf0] %vm2215, %v3682
    %v3687 = vld [vmem:[#allocation2 + $0x90] sm:$0xf0]
    %v3688 = vld [vmem:[#allocation2 + $0x98] sm:$0xf0]
    %v3689 = vld [vmem:[#allocation2 + $0xa0] sm:$0xf0]
    %v3691 = vsel %vm1961, %v3557, 0
    %3693 = vmatpush.msra.mxu0 0.0
    %3694 = vmatpush.msra.mxu0 0.0
    %3695 = vmatpush.msra.mxu0 0.0
    %3696 = vmatpush.msra.mxu0 0.0
    %3697 = vmatpush.msra.mxu0 0.0
    %3698 = vmatpush.msra.mxu0 0.0
    %3699 = vmatpush.msra.mxu0 0.0
    %3700 = vmatpush.msra.mxu0 0.0
    %3701 = vmatpush.msra.mxu0 0.0
    %3702 = vmatpush.msra.mxu0 0.0
    %3703 = vmatpush.msra.mxu0 0.0
    %3704 = vmatpush.msra.mxu0 0.0
    %3705 = vmatpush.msra.mxu0 0.0
    %3706 = vmatpush.msra.mxu0 %v1967
    %3707 = vmatpush.msra.mxu0 %v1934
    %3708 = vmatpush.msra.mxu0 %v1931
    %3709 = vmatmul.f32.gmra.mxu0 %v3691
    %v3710 = vpop.f32.mrf.mxu0
    %v3711 = vadd.f32 0.0, %v3710
    %3712 = vdwg.mxu0
    %3713 = vmatpush.msra.mxu0 0.0
    %3714 = vmatpush.msra.mxu0 0.0
    %3715 = vmatpush.msra.mxu0 0.0
    %3716 = vmatpush.msra.mxu0 0.0
    %3717 = vmatpush.msra.mxu0 0.0
    %3718 = vmatpush.msra.mxu0 0.0
    %3719 = vmatpush.msra.mxu0 0.0
    %3720 = vmatpush.msra.mxu0 0.0
    %3721 = vmatpush.msra.mxu0 0.0
    %3722 = vmatpush.msra.mxu0 0.0
    %3723 = vmatpush.msra.mxu0 0.0
    %3724 = vmatpush.msra.mxu0 0.0
    %3725 = vmatpush.msra.mxu0 0.0
    %3726 = vmatpush.msra.mxu0 %v1970
    %3727 = vmatpush.msra.mxu0 %v1935
    %3728 = vmatpush.msra.mxu0 %v1932
    %3729 = vmatmul.f32.gmra.mxu0 %v3691
    %v3730 = vpop.f32.mrf.mxu0
    %v3731 = vadd.f32 0.0, %v3730
    %3732 = vdwg.mxu0
    %3733 = vmatpush.msra.mxu0 0.0
    %3734 = vmatpush.msra.mxu0 0.0
    %3735 = vmatpush.msra.mxu0 0.0
    %3736 = vmatpush.msra.mxu0 0.0
    %3737 = vmatpush.msra.mxu0 0.0
    %3738 = vmatpush.msra.mxu0 0.0
    %3739 = vmatpush.msra.mxu0 0.0
    %3740 = vmatpush.msra.mxu0 0.0
    %3741 = vmatpush.msra.mxu0 0.0
    %3742 = vmatpush.msra.mxu0 0.0
    %3743 = vmatpush.msra.mxu0 0.0
    %3744 = vmatpush.msra.mxu0 0.0
    %3745 = vmatpush.msra.mxu0 0.0
    %3746 = vmatpush.msra.mxu0 %v1973
    %3747 = vmatpush.msra.mxu0 %v1936
    %3748 = vmatpush.msra.mxu0 %v1933
    %3749 = vmatmul.f32.gmra.mxu0 %v3691
    %v3750 = vpop.f32.mrf.mxu0
    %v3751 = vadd.f32 0.0, %v3750
    %3752 = vdwg.mxu0
    %v3754 = vrot.slane %v3711, 4
    %v3756 = vadd.f32 %v3687, %v3754
    %v3757 = vxor.u32 %v3756, 2147483648
    %v3758 = vmul.f32 %v3757, 1.442695
    %v3759 = vpow.pop %v3758
    %v3760 = vadd.f32 %v3759, 1.0
    %v3761 = vrcp.pop %v3760
    %v3762 = vmul.f32 %v3760, %v3761
    %v3763 = vsub.f32 1.0, %v3762
    %v3764 = vmul.f32 %v3761, %v3763
    %v3765 = vadd.f32 %v3761, %v3764
    %vm3766 = vweird.f32 %v3760
    %vm3767 = vweird.f32 %v3761
    %vm3768 = vmor %vm3766, %vm3767
    %v3769 = vsel %vm3768, %v3761, %v3765
    %v3770 = vand.u32 2147483647, %v3760
    %vm3771 = vcmp.eq.f32.partialorder %v3770, 8.507059e+37
    %v3772 = vand.u32 %v3760, 2147483648
    %v3773 = vor.u32 1.1754944e-38, %v3772
    %v3774 = vsel %vm3771, %v3773, %v3769
    %v3775 = vmul.f32 1.0, %v3774
    %v3777 = vrot.slane %v3731, 4
    %v3779 = vadd.f32 %v3688, %v3777
    %v3780 = vxor.u32 %v3779, 2147483648
    %v3781 = vmul.f32 %v3780, 1.442695
    %v3782 = vpow.pop %v3781
    %v3783 = vadd.f32 %v3782, 1.0
    %v3784 = vrcp.pop %v3783
    %v3785 = vmul.f32 %v3783, %v3784
    %v3786 = vsub.f32 1.0, %v3785
    %v3787 = vmul.f32 %v3784, %v3786
    %v3788 = vadd.f32 %v3784, %v3787
    %vm3789 = vweird.f32 %v3783
    %vm3790 = vweird.f32 %v3784
    %vm3791 = vmor %vm3789, %vm3790
    %v3792 = vsel %vm3791, %v3784, %v3788
    %v3793 = vand.u32 2147483647, %v3783
    %vm3794 = vcmp.eq.f32.partialorder %v3793, 8.507059e+37
    %v3795 = vand.u32 %v3783, 2147483648
    %v3796 = vor.u32 1.1754944e-38, %v3795
    %v3797 = vsel %vm3794, %v3796, %v3792
    %v3798 = vmul.f32 1.0, %v3797
    %v3799 = vadd.f32 %v3751, %v1952
    %v3801 = vrot.slane %v3799, 4
    %v3803 = vmul.f32 %v3775, %v3801
    %v3804 = vadd.f32 %v3689, %v3803
    %v3805 = vtanh.pop %v3804
    %v3806 = vsub.f32 1.0, %v3798
    %v3807 = vmul.f32 %v3806, %v3805
    %v3808 = vrot.slane %v3557, 4
    %v3810 = vmul.f32 %v3798, %v3808
    %v3811 = vadd.f32 %v3807, %v3810
    %v3812 = vld [vmem:[#allocation2 + $0x18] sm:$0xf]
    %v3813 = vld [vmem:[#allocation2 + $0x20] sm:$0xf]
    %v3814 = vld [vmem:[#allocation2 + $0x28] sm:$0xf]
    %v3816 = vrot.slane %v3682, 4
    %v3817 = vsel %vm1961, %v3816, 0
    %3819 = vmatpush.msra.mxu0 0.0
    %3820 = vmatpush.msra.mxu0 0.0
    %3821 = vmatpush.msra.mxu0 0.0
    %3822 = vmatpush.msra.mxu0 0.0
    %3823 = vmatpush.msra.mxu0 0.0
    %3824 = vmatpush.msra.mxu0 0.0
    %3825 = vmatpush.msra.mxu0 0.0
    %3826 = vmatpush.msra.mxu0 0.0
    %3827 = vmatpush.msra.mxu0 0.0
    %3828 = vmatpush.msra.mxu0 0.0
    %3829 = vmatpush.msra.mxu0 0.0
    %3830 = vmatpush.msra.mxu0 0.0
    %3831 = vmatpush.msra.mxu0 0.0
    %3832 = vmatpush.msra.mxu0 %v2087
    %3833 = vmatpush.msra.mxu0 %v1944
    %3834 = vmatpush.msra.mxu0 %v1941
    %3835 = vmatmul.f32.gmra.mxu0 %v3817
    %v3836 = vpop.f32.mrf.mxu0
    %v3837 = vadd.f32 0.0, %v3836
    %3838 = vdwg.mxu0
    %3839 = vmatpush.msra.mxu0 0.0
    %3840 = vmatpush.msra.mxu0 0.0
    %3841 = vmatpush.msra.mxu0 0.0
    %3842 = vmatpush.msra.mxu0 0.0
    %3843 = vmatpush.msra.mxu0 0.0
    %3844 = vmatpush.msra.mxu0 0.0
    %3845 = vmatpush.msra.mxu0 0.0
    %3846 = vmatpush.msra.mxu0 0.0
    %3847 = vmatpush.msra.mxu0 0.0
    %3848 = vmatpush.msra.mxu0 0.0
    %3849 = vmatpush.msra.mxu0 0.0
    %3850 = vmatpush.msra.mxu0 0.0
    %3851 = vmatpush.msra.mxu0 0.0
    %3852 = vmatpush.msra.mxu0 %v2090
    %3853 = vmatpush.msra.mxu0 %v1945
    %3854 = vmatpush.msra.mxu0 %v1942
    %3855 = vmatmul.f32.gmra.mxu0 %v3817
    %v3856 = vpop.f32.mrf.mxu0
    %v3857 = vadd.f32 0.0, %v3856
    %3858 = vdwg.mxu0
    %3859 = vmatpush.msra.mxu0 0.0
    %3860 = vmatpush.msra.mxu0 0.0
    %3861 = vmatpush.msra.mxu0 0.0
    %3862 = vmatpush.msra.mxu0 0.0
    %3863 = vmatpush.msra.mxu0 0.0
    %3864 = vmatpush.msra.mxu0 0.0
    %3865 = vmatpush.msra.mxu0 0.0
    %3866 = vmatpush.msra.mxu0 0.0
    %3867 = vmatpush.msra.mxu0 0.0
    %3868 = vmatpush.msra.mxu0 0.0
    %3869 = vmatpush.msra.mxu0 0.0
    %3870 = vmatpush.msra.mxu0 0.0
    %3871 = vmatpush.msra.mxu0 0.0
    %3872 = vmatpush.msra.mxu0 %v2093
    %3873 = vmatpush.msra.mxu0 %v1946
    %3874 = vmatpush.msra.mxu0 %v1943
    %3875 = vmatmul.f32.gmra.mxu0 %v3817
    %v3876 = vpop.f32.mrf.mxu0
    %v3877 = vadd.f32 0.0, %v3876
    %3878 = vdwg.mxu0
    %v3879 = vadd.f32 %v3812, %v3837
    %v3880 = vxor.u32 %v3879, 2147483648
    %v3881 = vmul.f32 %v3880, 1.442695
    %v3882 = vpow.pop %v3881
    %v3883 = vadd.f32 %v3882, 1.0
    %v3884 = vrcp.pop %v3883
    %v3885 = vmul.f32 %v3883, %v3884
    %v3886 = vsub.f32 1.0, %v3885
    %v3887 = vmul.f32 %v3884, %v3886
    %v3888 = vadd.f32 %v3884, %v3887
    %vm3889 = vweird.f32 %v3883
    %vm3890 = vweird.f32 %v3884
    %vm3891 = vmor %vm3889, %vm3890
    %v3892 = vsel %vm3891, %v3884, %v3888
    %v3893 = vand.u32 2147483647, %v3883
    %vm3894 = vcmp.eq.f32.partialorder %v3893, 8.507059e+37
    %v3895 = vand.u32 %v3883, 2147483648
    %v3896 = vor.u32 1.1754944e-38, %v3895
    %v3897 = vsel %vm3894, %v3896, %v3892
    %v3898 = vmul.f32 1.0, %v3897
    %v3899 = vadd.f32 %v3813, %v3857
    %v3900 = vxor.u32 %v3899, 2147483648
    %v3901 = vmul.f32 %v3900, 1.442695
    %v3902 = vpow.pop %v3901
    %v3903 = vadd.f32 %v3902, 1.0
    %v3904 = vrcp.pop %v3903
    %v3905 = vmul.f32 %v3903, %v3904
    %v3906 = vsub.f32 1.0, %v3905
    %v3907 = vmul.f32 %v3904, %v3906
    %v3908 = vadd.f32 %v3904, %v3907
    %vm3909 = vweird.f32 %v3903
    %vm3910 = vweird.f32 %v3904
    %vm3911 = vmor %vm3909, %vm3910
    %v3912 = vsel %vm3911, %v3904, %v3908
    %v3913 = vand.u32 2147483647, %v3903
    %vm3914 = vcmp.eq.f32.partialorder %v3913, 8.507059e+37
    %v3915 = vand.u32 %v3903, 2147483648
    %v3916 = vor.u32 1.1754944e-38, %v3915
    %v3917 = vsel %vm3914, %v3916, %v3912
    %v3918 = vmul.f32 1.0, %v3917
    %v3919 = vadd.f32 %v3877, %v1956
    %v3920 = vmul.f32 %v3898, %v3919
    %v3921 = vadd.f32 %v3814, %v3920
    %v3922 = vtanh.pop %v3921
    %v3923 = vsub.f32 1.0, %v3918
    %v3924 = vmul.f32 %v3923, %v3922
    %v3926 = vmul.f32 %v3918, %v3816
    %v3927 = vadd.f32 %v3924, %v3926
    %s3928 = scalar_lea.vmem %s6, 28
    %3929 = vst.msk [vmem:[%s3928 - $0x4] sm:$0xf0] %vm2215, %v3811
    %3930 = vst.msk [vmem:[%s7] sm:$0xf] %vm2212, %v3927
    %v3932 = vrot.slane %v3927, 4
    %3933 = vrot.lane.b32.xlu0 %v3932, 17
    %v3934 = vpop.permute.xlu0 %3933
    %v3936 = vsel %vm1961, %v3811, %v3934
    %v3937 = vld [vmem:[%s5] sm:$0xff]
    %v3938 = vld [vmem:[%s5 + $0x8] sm:$0xff]
    %v3939 = vld [vmem:[%s5 + $0x10] sm:$0xff]
    %v3940 = vld [vmem:[%s5 + $0x18] sm:$0xff]
    %v3941 = vld [vmem:[%s5 + $0x20] sm:$0x3]
    %v3942 = vld [vmem:[%s4 + $0x8] sm:$0x1]
    %v3944 = vperm.slane %v3942, 0
    %v3947 = vrot.slane %v3936, 4
    %vm3948 = vcmask 277504
    %v3949 = vsel %vm3948, %v3947, 0
    %vm3951 = vcmask 1041408
    %v3953 = vsel %vm3951, %v3941, 0
    %3955 = vmatpush.msra.mxu0 0.0
    %3956 = vmatpush.msra.mxu0 0.0
    %3957 = vmatpush.msra.mxu0 0.0
    %3958 = vmatpush.msra.mxu0 0.0
    %3959 = vmatpush.msra.mxu0 0.0
    %3960 = vmatpush.msra.mxu0 0.0
    %3961 = vmatpush.msra.mxu0 0.0
    %3962 = vmatpush.msra.mxu0 0.0
    %3963 = vmatpush.msra.mxu0 0.0
    %3964 = vmatpush.msra.mxu0 0.0
    %3965 = vmatpush.msra.mxu0 0.0
    %3966 = vmatpush.msra.mxu0 %v3953
    %3967 = vmatpush.msra.mxu0 %v3940
    %3968 = vmatpush.msra.mxu0 %v3939
    %3969 = vmatpush.msra.mxu0 %v3938
    %3970 = vmatpush.msra.mxu0 %v3937
    %3971 = vmatmul.f32.gmra.mxu0 %v3949
    %v3972 = vpop.f32.mrf.mxu0
    %v3973 = vadd.f32 %v3944, %v3972
    %3974 = vdwg.mxu0
    %v3975 = vtanh.pop %v3973
    %vm3976 = vcmask 150528
    %3977 = vst.msk [vmem:[#allocation3] sm:$0xf] %vm3976, %v3975
    // Predicated region
    $region26: #{encoder_forward.1} parent=1 // pred_check
      _
    $region27: #{encoder_forward.1} parent=1 // pred_check_branch
      %3979 = sbr.rel (0) target = $region29
    $region28: #{encoder_forward.1} parent=1 // pred_region
      _
    $region29: #{encoder_forward.1} parent=1 // pred_fallthru
      _
    // Predicated region
    $region30: #{encoder_forward.1} parent=1 // pred_check
      _
    $region31: #{encoder_forward.1} parent=1 // pred_check_branch
      %3981 = sbr.rel (0) target = $region33
    $region32: #{encoder_forward.1} parent=1 // pred_region
      _
    $region33: #{encoder_forward.1} parent=1 // pred_fallthru
      _
    // Predicated region
    $region34: #{encoder_forward.1} parent=1 // pred_check
      _
    $region35: #{encoder_forward.1} parent=1 // pred_check_branch
      %3983 = sbr.rel (0) target = $region37
    $region36: #{encoder_forward.1} parent=1 // pred_region
      %3985 = vsyncadd [#allocation4], 0
      %s3987 = sshll.u32 [#allocation3], 4
      %s3988 = int_to_ptr.vmem [resolvable:$true] %s3987
      %s3989 = sshll.u32 %s8, 4
      %s3990 = int_to_ptr.hbm [resolvable:$true] %s3989
      %3992 = dma.vmem_to_hbm [thread:$0]  %s3988, 64, %s3990, [#allocation4]
    $region37: #{encoder_forward.1} parent=1 // pred_fallthru
      _
    // Predicated region
    $region38: #{encoder_forward.1} parent=1 // pred_check
      _
    $region39: #{encoder_forward.1} parent=1 // pred_check_branch
      %3994 = sbr.rel (0) target = $region41
    $region40: #{encoder_forward.1} parent=1 // pred_region
      _
    $region41: #{encoder_forward.1} parent=1 // pred_fallthru
      _
    // Predicated region
    $region42: #{encoder_forward.1} parent=1 // pred_check
      _
    $region43: #{encoder_forward.1} parent=1 // pred_check_branch
      %3996 = sbr.rel (0) target = $region45
    $region44: #{encoder_forward.1} parent=1 // pred_region
      _
    $region45: #{encoder_forward.1} parent=1 // pred_fallthru
      _
    // Predicated region
    $region46: #{encoder_forward.1} parent=1 // pred_check
      _
    $region47: #{encoder_forward.1} parent=1 // pred_check_branch
      %3998 = sbr.rel (0) target = $region49
    $region48: #{encoder_forward.1} parent=1 // pred_region
      %4000 = dma.done [#allocation4], 64
    $region49: #{encoder_forward.1} parent=1 // pred_fallthru
      _
    %4001 = vsyncpa [#allocation4], 1

</llo_original>
